<compile_context>
chip_gen: v6e
topology: v6e:2x2x1
jax: 0.10.0
libtpu: 0.0.40
codegen_flags: <defaults>
</compile_context>

<pallas_src>
import jax
import jax.numpy as jnp
from jax import lax
from jax.experimental import pallas as pl
from jax.experimental.pallas import tpu as pltpu

_EPS = 1e-5
_LANE = 128


def _conv_im2col(xpad_ref, w_ref, b_ref, lhs_ref):
    """One 3x3 conv tile (single image) as a single im2col MXU matmul.

    xpad_ref: (1, H+2, W+2, Cin)  padded NHWC input block
    w_ref   : (9*Cin, Cpad)       conv taps, row index = (dy*3+dx)*Cin + cin
    b_ref   : (1, Cpad)           conv bias (zero-padded to Cpad)
    lhs_ref : (H*W, 9*Cin)        VMEM scratch for the im2col matrix
    returns : (H*W, Cpad) f32     conv(x) + bias
    """
    _, Hp, Wp, Cin = xpad_ref.shape
    H, W = Hp - 2, Wp - 2
    x = xpad_ref[...]                                    # (1, Hp, Wp, Cin)
    # Assemble the im2col LHS once in VMEM scratch (9 shifted windows).
    for dy in range(3):
        for dx in range(3):
            t = dy * 3 + dx
            patch = x[0, dy:dy + H, dx:dx + W, :]        # (H, W, Cin)
            lhs_ref[:, t * Cin:(t + 1) * Cin] = patch.reshape(H * W, Cin)
    # Single MXU matmul: (H*W, 9*Cin) x (9*Cin, Cpad) -> (H*W, Cpad).
    return jnp.dot(lhs_ref[...], w_ref[...],
                   preferred_element_type=jnp.float32) + b_ref[...]


def _stats_kernel(xpad_ref, w_ref, b_ref, stat_ref, lhs_ref):
    """Pass 1: per-image partial BN statistics (sum, sum of squares)."""
    conv = _conv_im2col(xpad_ref, w_ref, b_ref, lhs_ref)          # (H*W, Cpad)
    stat_ref[0, 0:1, :] = jnp.sum(conv, axis=0, keepdims=True)
    stat_ref[0, 1:2, :] = jnp.sum(conv * conv, axis=0, keepdims=True)


def _apply_kernel(xpad_ref, w_ref, b_ref, scale_ref, shift_ref, o_ref, lhs_ref):
    """Pass 2: conv tile -> folded BN affine -> ReLU, lane-dense store."""
    conv = _conv_im2col(xpad_ref, w_ref, b_ref, lhs_ref)          # (H*W, Cpad)
    y = jnp.maximum(conv * scale_ref[...] + shift_ref[...], 0.0)
    _, H, W, Cpad = o_ref.shape
    o_ref[...] = y.reshape(1, H, W, Cpad).astype(o_ref.dtype)


@jax.jit
def unit_forward(x_nchw, w_oihw, bias, gamma, beta):
    """Conv3x3(pad=1) + BatchNorm2d(training batch stats) + ReLU.

    x_nchw: (N, Cin, H, W) f32 -> (N, Cout, H, W) f32 (PyTorch NCHW layout).
    """
    N, Cin, H, W = x_nchw.shape
    Cout = w_oihw.shape[0]
    K = 9 * Cin
    Cpad = ((Cout + _LANE - 1) // _LANE) * _LANE      # lane-dense channel axis

    # Single fused layout op: NCHW -> NHWC + 1-px halo pad (tiny tensor).
    xpad = jnp.pad(jnp.transpose(x_nchw, (0, 2, 3, 1)),
                   ((0, 0), (1, 1), (1, 1), (0, 0)))

    # (Cout, Cin, 3, 3) -> (3, 3, Cin, Cout) -> (9*Cin, Cout) -> pad to Cpad.
    w2 = jnp.transpose(w_oihw, (2, 3, 1, 0)).reshape(K, Cout)
    w2 = jnp.pad(w2, ((0, 0), (0, Cpad - Cout)))
    b2 = jnp.pad(bias, (0, Cpad - Cout)).reshape(1, Cpad)
    g_pad = jnp.pad(gamma, (0, Cpad - Cout))
    be_pad = jnp.pad(beta, (0, Cpad - Cout))

    cparams = pltpu.CompilerParams(
        dimension_semantics=("parallel",),            # pipelined; both TCs on v7x
        vmem_limit_bytes=32 * 1024 * 1024)            # safe on v5e/v6e/v7x

    x_spec = pl.BlockSpec((1, H + 2, W + 2, Cin), lambda n: (n, 0, 0, 0))
    w_spec = pl.BlockSpec((K, Cpad), lambda n: (0, 0))
    vec_spec = pl.BlockSpec((1, Cpad), lambda n: (0, 0))
    lhs_scratch = pltpu.VMEM((H * W, K), jnp.float32)

    # ---- Pass 1: per-image partial sum / sum-of-squares of conv(x) ----
    stats = pl.pallas_call(
        _stats_kernel,
        out_shape=jax.ShapeDtypeStruct((N, 2, Cpad), jnp.float32),
        grid_spec=pltpu.PrefetchScalarGridSpec(
            num_scalar_prefetch=0,
            grid=(N,),
            in_specs=[x_spec, w_spec, vec_spec],
            out_specs=pl.BlockSpec((1, 2, Cpad), lambda n: (n, 0, 0)),
            scratch_shapes=[lhs_scratch]),
        compiler_params=cparams,
    )(xpad, w2, b2)

    # Fold BN (training mode: biased variance, eps) into one scale/shift pair.
    count = jnp.float32(N * H * W)
    total = jnp.sum(stats, axis=0)                    # (2, Cpad) — tiny reduce
    mean = total[0] / count
    var = jnp.maximum(total[1] / count - mean * mean, 0.0)
    inv = lax.rsqrt(var + _EPS)
    scale = (g_pad * inv).reshape(1, Cpad)
    shift = (be_pad - mean * g_pad * inv).reshape(1, Cpad)
    # TODO(synk): BatchNorm2d running_mean/running_var buffer updates
    # (training-mode side effects) are not produced; only the activation is.

    # ---- Pass 2: conv (recomputed) * scale + shift -> ReLU ----
    out_pad = pl.pallas_call(
        _apply_kernel,
        out_shape=jax.ShapeDtypeStruct((N, H, W, Cpad), jnp.float32),
        grid_spec=pltpu.PrefetchScalarGridSpec(
            num_scalar_prefetch=0,
            grid=(N,),
            in_specs=[x_spec, w_spec, vec_spec, vec_spec, vec_spec],
            out_specs=pl.BlockSpec((1, H, W, Cpad), lambda n: (n, 0, 0, 0)),
            scratch_shapes=[lhs_scratch]),
        compiler_params=cparams,
    )(xpad, w2, b2, scale, shift)

    # Drop the channel padding, back to PyTorch NCHW.
    return jnp.transpose(out_pad[..., :Cout], (0, 3, 1, 2))


def _reference(x, w, b, gamma, beta, eps=_EPS):
    """Pure-JAX reference: Conv2d(3x3, pad=1) + BN (batch stats) + ReLU."""
    conv = lax.conv_general_dilated(
        x, w, window_strides=(1, 1), padding=((1, 1), (1, 1)),
        dimension_numbers=("NCHW", "OIHW", "NCHW"))
    conv = conv + b[None, :, None, None]
    mean = jnp.mean(conv, axis=(0, 2, 3), keepdims=True)
    var = jnp.mean((conv - mean) ** 2, axis=(0, 2, 3), keepdims=True)
    y = (conv - mean) * lax.rsqrt(var + eps)
    y = y * gamma[None, :, None, None] + beta[None, :, None, None]
    return jnp.maximum(y, 0.0)


if __name__ == "__main__":
    key = jax.random.PRNGKey(0)
    k_x, k_w, k_b = jax.random.split(key, 3)

    # Small shapes consistent with the module's forward.
    N, Cin, H, W = 2, 4, 16, 16
    Cout = 8

    x = jax.random.normal(k_x, (N, Cin, H, W), dtype=jnp.float32)

    # Deterministic parameter init (synthetic; mimics Conv2d fan_in-scaled init).
    fan_in = Cin * 3 * 3
    bound = 1.0 / (fan_in ** 0.5)
    w = jax.random.uniform(k_w, (Cout, Cin, 3, 3), jnp.float32, -bound, bound)
    b = jax.random.uniform(k_b, (Cout,), jnp.float32, -bound, bound)
    gamma = jnp.ones((Cout,), jnp.float32)   # BatchNorm2d default weight
    beta = jnp.zeros((Cout,), jnp.float32)   # BatchNorm2d default bias

    out = unit_forward(x, w, b, gamma, beta)
    jax.block_until_ready(out)

    assert out.shape == (N, Cout, H, W)
    assert bool(jnp.all(out >= 0.0))         # ReLU post-condition

    ref = _reference(x, w, b, gamma, beta)
    max_err = float(jnp.max(jnp.abs(out - ref)))
    assert max_err < 1e-3, f"mismatch vs reference: {max_err}"

    print("KERNEL_OK")
</pallas_src>

<mosaic_0001>
module attributes {stable_mosaic.version = 11 : i64} {
  func.func @_stats_kernel(%arg0: i32, %arg1: memref<1x18x18x4xf32, #tpu.memory_space<vmem>>, %arg2: memref<36x128xf32, #tpu.memory_space<vmem>>, %arg3: memref<1x128xf32, #tpu.memory_space<vmem>>, %arg4: memref<1x2x128xf32, #tpu.memory_space<vmem>>, %arg5: memref<256x36xf32, #tpu.memory_space<vmem>>) attributes {dimension_semantics = [#tpu.dimension_semantics<parallel>], iteration_bounds = array<i64: 2>, scalar_prefetch = 0 : i64, scratch_operands = 1 : i64, tpu.core_type = #tpu.core_type<tc>, window_params = [{transform_indices = @transform_0, window_bounds = array<i64: 1, 18, 18, 4>}, {pipeline_mode = #tpu.pipeline_mode<synchronous>, transform_indices = @transform_1, window_bounds = array<i64: 36, 128>}, {pipeline_mode = #tpu.pipeline_mode<synchronous>, transform_indices = @transform_2, window_bounds = array<i64: 1, 128>}, {transform_indices = @transform_3, window_bounds = array<i64: 1, 2, 128>}]} {
    %c0 = arith.constant 0 : index
    %c0_0 = arith.constant 0 : index
    %c0_1 = arith.constant 0 : index
    %c0_2 = arith.constant 0 : index
    %0 = vector.load %arg1[%c0, %c0_0, %c0_1, %c0_2] : memref<1x18x18x4xf32, #tpu.memory_space<vmem>>, vector<1x18x18x4xf32>
    %1 = vector.extract_strided_slice %0 {offsets = [0, 0, 0, 0], sizes = [1, 16, 16, 4], strides = [1, 1, 1, 1]} : vector<1x18x18x4xf32> to vector<1x16x16x4xf32>
    %2 = vector.shape_cast %1 : vector<1x16x16x4xf32> to vector<16x16x4xf32>
    %3 = vector.shape_cast %2 : vector<16x16x4xf32> to vector<256x4xf32>
    %c0_3 = arith.constant 0 : index
    %c0_4 = arith.constant 0 : index
    %4 = vector.load %arg5[%c0_3, %c0_4] : memref<256x36xf32, #tpu.memory_space<vmem>>, vector<256x4xf32>
    tpu.vector_store %arg5[%c0_3, %c0_4], %3 {strides = array<i32>} : memref<256x36xf32, #tpu.memory_space<vmem>>, vector<256x4xf32>,
    %5 = vector.extract_strided_slice %0 {offsets = [0, 0, 1, 0], sizes = [1, 16, 16, 4], strides = [1, 1, 1, 1]} : vector<1x18x18x4xf32> to vector<1x16x16x4xf32>
    %6 = vector.shape_cast %5 : vector<1x16x16x4xf32> to vector<16x16x4xf32>
    %7 = vector.shape_cast %6 : vector<16x16x4xf32> to vector<256x4xf32>
    %c0_5 = arith.constant 0 : index
    %c4 = arith.constant 4 : index
    %8 = vector.load %arg5[%c0_5, %c4] : memref<256x36xf32, #tpu.memory_space<vmem>>, vector<256x4xf32>
    tpu.vector_store %arg5[%c0_5, %c4], %7 {strides = array<i32>} : memref<256x36xf32, #tpu.memory_space<vmem>>, vector<256x4xf32>,
    %9 = vector.extract_strided_slice %0 {offsets = [0, 0, 2, 0], sizes = [1, 16, 16, 4], strides = [1, 1, 1, 1]} : vector<1x18x18x4xf32> to vector<1x16x16x4xf32>
    %10 = vector.shape_cast %9 : vector<1x16x16x4xf32> to vector<16x16x4xf32>
    %11 = vector.shape_cast %10 : vector<16x16x4xf32> to vector<256x4xf32>
    %c0_6 = arith.constant 0 : index
    %c8 = arith.constant 8 : index
    %12 = vector.load %arg5[%c0_6, %c8] : memref<256x36xf32, #tpu.memory_space<vmem>>, vector<256x4xf32>
    tpu.vector_store %arg5[%c0_6, %c8], %11 {strides = array<i32>} : memref<256x36xf32, #tpu.memory_space<vmem>>, vector<256x4xf32>,
    %13 = vector.extract_strided_slice %0 {offsets = [0, 1, 0, 0], sizes = [1, 16, 16, 4], strides = [1, 1, 1, 1]} : vector<1x18x18x4xf32> to vector<1x16x16x4xf32>
    %14 = vector.shape_cast %13 : vector<1x16x16x4xf32> to vector<16x16x4xf32>
    %15 = vector.shape_cast %14 : vector<16x16x4xf32> to vector<256x4xf32>
    %c0_7 = arith.constant 0 : index
    %c12 = arith.constant 12 : index
    %16 = vector.load %arg5[%c0_7, %c12] : memref<256x36xf32, #tpu.memory_space<vmem>>, vector<256x4xf32>
    tpu.vector_store %arg5[%c0_7, %c12], %15 {strides = array<i32>} : memref<256x36xf32, #tpu.memory_space<vmem>>, vector<256x4xf32>,
    %17 = vector.extract_strided_slice %0 {offsets = [0, 1, 1, 0], sizes = [1, 16, 16, 4], strides = [1, 1, 1, 1]} : vector<1x18x18x4xf32> to vector<1x16x16x4xf32>
    %18 = vector.shape_cast %17 : vector<1x16x16x4xf32> to vector<16x16x4xf32>
    %19 = vector.shape_cast %18 : vector<16x16x4xf32> to vector<256x4xf32>
    %c0_8 = arith.constant 0 : index
    %c16 = arith.constant 16 : index
    %20 = vector.load %arg5[%c0_8, %c16] : memref<256x36xf32, #tpu.memory_space<vmem>>, vector<256x4xf32>
    tpu.vector_store %arg5[%c0_8, %c16], %19 {strides = array<i32>} : memref<256x36xf32, #tpu.memory_space<vmem>>, vector<256x4xf32>,
    %21 = vector.extract_strided_slice %0 {offsets = [0, 1, 2, 0], sizes = [1, 16, 16, 4], strides = [1, 1, 1, 1]} : vector<1x18x18x4xf32> to vector<1x16x16x4xf32>
    %22 = vector.shape_cast %21 : vector<1x16x16x4xf32> to vector<16x16x4xf32>
    %23 = vector.shape_cast %22 : vector<16x16x4xf32> to vector<256x4xf32>
    %c0_9 = arith.constant 0 : index
    %c20 = arith.constant 20 : index
    %24 = vector.load %arg5[%c0_9, %c20] : memref<256x36xf32, #tpu.memory_space<vmem>>, vector<256x4xf32>
    tpu.vector_store %arg5[%c0_9, %c20], %23 {strides = array<i32>} : memref<256x36xf32, #tpu.memory_space<vmem>>, vector<256x4xf32>,
    %25 = vector.extract_strided_slice %0 {offsets = [0, 2, 0, 0], sizes = [1, 16, 16, 4], strides = [1, 1, 1, 1]} : vector<1x18x18x4xf32> to vector<1x16x16x4xf32>
    %26 = vector.shape_cast %25 : vector<1x16x16x4xf32> to vector<16x16x4xf32>
    %27 = vector.shape_cast %26 : vector<16x16x4xf32> to vector<256x4xf32>
    %c0_10 = arith.constant 0 : index
    %c24 = arith.constant 24 : index
    %28 = vector.load %arg5[%c0_10, %c24] : memref<256x36xf32, #tpu.memory_space<vmem>>, vector<256x4xf32>
    tpu.vector_store %arg5[%c0_10, %c24], %27 {strides = array<i32>} : memref<256x36xf32, #tpu.memory_space<vmem>>, vector<256x4xf32>,
    %29 = vector.extract_strided_slice %0 {offsets = [0, 2, 1, 0], sizes = [1, 16, 16, 4], strides = [1, 1, 1, 1]} : vector<1x18x18x4xf32> to vector<1x16x16x4xf32>
    %30 = vector.shape_cast %29 : vector<1x16x16x4xf32> to vector<16x16x4xf32>
    %31 = vector.shape_cast %30 : vector<16x16x4xf32> to vector<256x4xf32>
    %c0_11 = arith.constant 0 : index
    %c28 = arith.constant 28 : index
    %32 = vector.load %arg5[%c0_11, %c28] : memref<256x36xf32, #tpu.memory_space<vmem>>, vector<256x4xf32>
    tpu.vector_store %arg5[%c0_11, %c28], %31 {strides = array<i32>} : memref<256x36xf32, #tpu.memory_space<vmem>>, vector<256x4xf32>,
    %33 = vector.extract_strided_slice %0 {offsets = [0, 2, 2, 0], sizes = [1, 16, 16, 4], strides = [1, 1, 1, 1]} : vector<1x18x18x4xf32> to vector<1x16x16x4xf32>
    %34 = vector.shape_cast %33 : vector<1x16x16x4xf32> to vector<16x16x4xf32>
    %35 = vector.shape_cast %34 : vector<16x16x4xf32> to vector<256x4xf32>
    %c0_12 = arith.constant 0 : index
    %c32 = arith.constant 32 : index
    %36 = vector.load %arg5[%c0_12, %c32] : memref<256x36xf32, #tpu.memory_space<vmem>>, vector<256x4xf32>
    tpu.vector_store %arg5[%c0_12, %c32], %35 {strides = array<i32>} : memref<256x36xf32, #tpu.memory_space<vmem>>, vector<256x4xf32>,
    %c0_13 = arith.constant 0 : index
    %c0_14 = arith.constant 0 : index
    %37 = vector.load %arg5[%c0_13, %c0_14] : memref<256x36xf32, #tpu.memory_space<vmem>>, vector<256x36xf32>
    %c0_15 = arith.constant 0 : index
    %c0_16 = arith.constant 0 : index
    %38 = vector.load %arg2[%c0_15, %c0_16] : memref<36x128xf32, #tpu.memory_space<vmem>>, vector<36x128xf32>
    %cst = arith.constant dense<0.000000e+00> : vector<256x128xf32>
    %39 = tpu.matmul %37, %38, %cst {dimension_numbers = #tpu.dot_dimension_numbers<[1], [0], [0], [1], [0, 0, 1, 1], [], []>} : vector<256x36xf32>, vector<36x128xf32>, vector<256x128xf32> -> vector<256x128xf32>
    %c0_17 = arith.constant 0 : index
    %c0_18 = arith.constant 0 : index
    %40 = vector.load %arg3[%c0_17, %c0_18] : memref<1x128xf32, #tpu.memory_space<vmem>>, vector<1x128xf32>
    %41 = vector.broadcast %40 : vector<1x128xf32> to vector<256x128xf32>
    %42 = arith.addf %39, %41 : vector<256x128xf32>
    %cst_19 = arith.constant dense<0.000000e+00> : vector<128xf32>
    %43 = vector.multi_reduction <add>, %42, %cst_19 [0] : vector<256x128xf32> to vector<128xf32>
    %44 = vector.shape_cast %43 : vector<128xf32> to vector<1x128xf32>
    %c0_20 = arith.constant 0 : index
    %c0_21 = arith.constant 0 : index
    %c0_22 = arith.constant 0 : index
    %45 = vector.load %arg4[%c0_20, %c0_21, %c0_22] : memref<1x2x128xf32, #tpu.memory_space<vmem>>, vector<1x1x128xf32>
    %46 = vector.shape_cast %45 : vector<1x1x128xf32> to vector<1x128xf32>
    %47 = vector.shape_cast %44 : vector<1x128xf32> to vector<1x1x128xf32>
    tpu.vector_store %arg4[%c0_20, %c0_21, %c0_22], %47 {strides = array<i32>} : memref<1x2x128xf32, #tpu.memory_space<vmem>>, vector<1x1x128xf32>,
    %48 = arith.mulf %42, %42 : vector<256x128xf32>
    %cst_23 = arith.constant dense<0.000000e+00> : vector<128xf32>
    %49 = vector.multi_reduction <add>, %48, %cst_23 [0] : vector<256x128xf32> to vector<128xf32>
    %50 = vector.shape_cast %49 : vector<128xf32> to vector<1x128xf32>
    %c0_24 = arith.constant 0 : index
    %c1 = arith.constant 1 : index
    %c0_25 = arith.constant 0 : index
    %51 = vector.load %arg4[%c0_24, %c1, %c0_25] : memref<1x2x128xf32, #tpu.memory_space<vmem>>, vector<1x1x128xf32>
    %52 = vector.shape_cast %51 : vector<1x1x128xf32> to vector<1x128xf32>
    %53 = vector.shape_cast %50 : vector<1x128xf32> to vector<1x1x128xf32>
    tpu.vector_store %arg4[%c0_24, %c1, %c0_25], %53 {strides = array<i32>} : memref<1x2x128xf32, #tpu.memory_space<vmem>>, vector<1x1x128xf32>,
    return
  }
  func.func @transform_0(%arg0: i32) -> (i32, i32, i32, i32) {
    %c0_i32 = arith.constant 0 : i32
    %c0_i32_0 = arith.constant 0 : i32
    %c0_i32_1 = arith.constant 0 : i32
    %c0_i32_2 = arith.constant 0 : i32
    return %arg0, %c0_i32, %c0_i32_0, %c0_i32_1 : i32, i32, i32, i32
  }
  func.func @transform_1(%arg0: i32) -> (i32, i32) {
    %c0_i32 = arith.constant 0 : i32
    %c0_i32_0 = arith.constant 0 : i32
    %c0_i32_1 = arith.constant 0 : i32
    return %c0_i32, %c0_i32_0 : i32, i32
  }
  func.func @transform_2(%arg0: i32) -> (i32, i32) {
    %c0_i32 = arith.constant 0 : i32
    %c0_i32_0 = arith.constant 0 : i32
    %c0_i32_1 = arith.constant 0 : i32
    return %c0_i32, %c0_i32_0 : i32, i32
  }
  func.func @transform_3(%arg0: i32) -> (i32, i32, i32) {
    %c0_i32 = arith.constant 0 : i32
    %c0_i32_0 = arith.constant 0 : i32
    %c0_i32_1 = arith.constant 0 : i32
    return %arg0, %c0_i32, %c0_i32_0 : i32, i32, i32
  }
}

module attributes {stable_mosaic.version = 11 : i64} {
  func.func @_apply_kernel(%arg0: i32, %arg1: memref<1x18x18x4xf32, #tpu.memory_space<vmem>>, %arg2: memref<36x128xf32, #tpu.memory_space<vmem>>, %arg3: memref<1x128xf32, #tpu.memory_space<vmem>>, %arg4: memref<1x128xf32, #tpu.memory_space<vmem>>, %arg5: memref<1x128xf32, #tpu.memory_space<vmem>>, %arg6: memref<1x16x16x128xf32, #tpu.memory_space<vmem>>, %arg7: memref<256x36xf32, #tpu.memory_space<vmem>>) attributes {dimension_semantics = [#tpu.dimension_semantics<parallel>], iteration_bounds = array<i64: 2>, scalar_prefetch = 0 : i64, scratch_operands = 1 : i64, tpu.core_type = #tpu.core_type<tc>, window_params = [{transform_indices = @transform_0, window_bounds = array<i64: 1, 18, 18, 4>}, {pipeline_mode = #tpu.pipeline_mode<synchronous>, transform_indices = @transform_1, window_bounds = array<i64: 36, 128>}, {pipeline_mode = #tpu.pipeline_mode<synchronous>, transform_indices = @transform_2, window_bounds = array<i64: 1, 128>}, {pipeline_mode = #tpu.pipeline_mode<synchronous>, transform_indices = @transform_3, window_bounds = array<i64: 1, 128>}, {pipeline_mode = #tpu.pipeline_mode<synchronous>, transform_indices = @transform_4, window_bounds = array<i64: 1, 128>}, {transform_indices = @transform_5, window_bounds = array<i64: 1, 16, 16, 128>}]} {
    %c0 = arith.constant 0 : index
    %c0_0 = arith.constant 0 : index
    %c0_1 = arith.constant 0 : index
    %c0_2 = arith.constant 0 : index
    %0 = vector.load %arg1[%c0, %c0_0, %c0_1, %c0_2] : memref<1x18x18x4xf32, #tpu.memory_space<vmem>>, vector<1x18x18x4xf32>
    %1 = vector.extract_strided_slice %0 {offsets = [0, 0, 0, 0], sizes = [1, 16, 16, 4], strides = [1, 1, 1, 1]} : vector<1x18x18x4xf32> to vector<1x16x16x4xf32>
    %2 = vector.shape_cast %1 : vector<1x16x16x4xf32> to vector<16x16x4xf32>
    %3 = vector.shape_cast %2 : vector<16x16x4xf32> to vector<256x4xf32>
    %c0_3 = arith.constant 0 : index
    %c0_4 = arith.constant 0 : index
    %4 = vector.load %arg7[%c0_3, %c0_4] : memref<256x36xf32, #tpu.memory_space<vmem>>, vector<256x4xf32>
    tpu.vector_store %arg7[%c0_3, %c0_4], %3 {strides = array<i32>} : memref<256x36xf32, #tpu.memory_space<vmem>>, vector<256x4xf32>,
    %5 = vector.extract_strided_slice %0 {offsets = [0, 0, 1, 0], sizes = [1, 16, 16, 4], strides = [1, 1, 1, 1]} : vector<1x18x18x4xf32> to vector<1x16x16x4xf32>
    %6 = vector.shape_cast %5 : vector<1x16x16x4xf32> to vector<16x16x4xf32>
    %7 = vector.shape_cast %6 : vector<16x16x4xf32> to vector<256x4xf32>
    %c0_5 = arith.constant 0 : index
    %c4 = arith.constant 4 : index
    %8 = vector.load %arg7[%c0_5, %c4] : memref<256x36xf32, #tpu.memory_space<vmem>>, vector<256x4xf32>
    tpu.vector_store %arg7[%c0_5, %c4], %7 {strides = array<i32>} : memref<256x36xf32, #tpu.memory_space<vmem>>, vector<256x4xf32>,
    %9 = vector.extract_strided_slice %0 {offsets = [0, 0, 2, 0], sizes = [1, 16, 16, 4], strides = [1, 1, 1, 1]} : vector<1x18x18x4xf32> to vector<1x16x16x4xf32>
    %10 = vector.shape_cast %9 : vector<1x16x16x4xf32> to vector<16x16x4xf32>
    %11 = vector.shape_cast %10 : vector<16x16x4xf32> to vector<256x4xf32>
    %c0_6 = arith.constant 0 : index
    %c8 = arith.constant 8 : index
    %12 = vector.load %arg7[%c0_6, %c8] : memref<256x36xf32, #tpu.memory_space<vmem>>, vector<256x4xf32>
    tpu.vector_store %arg7[%c0_6, %c8], %11 {strides = array<i32>} : memref<256x36xf32, #tpu.memory_space<vmem>>, vector<256x4xf32>,
    %13 = vector.extract_strided_slice %0 {offsets = [0, 1, 0, 0], sizes = [1, 16, 16, 4], strides = [1, 1, 1, 1]} : vector<1x18x18x4xf32> to vector<1x16x16x4xf32>
    %14 = vector.shape_cast %13 : vector<1x16x16x4xf32> to vector<16x16x4xf32>
    %15 = vector.shape_cast %14 : vector<16x16x4xf32> to vector<256x4xf32>
    %c0_7 = arith.constant 0 : index
    %c12 = arith.constant 12 : index
    %16 = vector.load %arg7[%c0_7, %c12] : memref<256x36xf32, #tpu.memory_space<vmem>>, vector<256x4xf32>
    tpu.vector_store %arg7[%c0_7, %c12], %15 {strides = array<i32>} : memref<256x36xf32, #tpu.memory_space<vmem>>, vector<256x4xf32>,
    %17 = vector.extract_strided_slice %0 {offsets = [0, 1, 1, 0], sizes = [1, 16, 16, 4], strides = [1, 1, 1, 1]} : vector<1x18x18x4xf32> to vector<1x16x16x4xf32>
    %18 = vector.shape_cast %17 : vector<1x16x16x4xf32> to vector<16x16x4xf32>
    %19 = vector.shape_cast %18 : vector<16x16x4xf32> to vector<256x4xf32>
    %c0_8 = arith.constant 0 : index
    %c16 = arith.constant 16 : index
    %20 = vector.load %arg7[%c0_8, %c16] : memref<256x36xf32, #tpu.memory_space<vmem>>, vector<256x4xf32>
    tpu.vector_store %arg7[%c0_8, %c16], %19 {strides = array<i32>} : memref<256x36xf32, #tpu.memory_space<vmem>>, vector<256x4xf32>,
    %21 = vector.extract_strided_slice %0 {offsets = [0, 1, 2, 0], sizes = [1, 16, 16, 4], strides = [1, 1, 1, 1]} : vector<1x18x18x4xf32> to vector<1x16x16x4xf32>
    %22 = vector.shape_cast %21 : vector<1x16x16x4xf32> to vector<16x16x4xf32>
    %23 = vector.shape_cast %22 : vector<16x16x4xf32> to vector<256x4xf32>
    %c0_9 = arith.constant 0 : index
    %c20 = arith.constant 20 : index
    %24 = vector.load %arg7[%c0_9, %c20] : memref<256x36xf32, #tpu.memory_space<vmem>>, vector<256x4xf32>
    tpu.vector_store %arg7[%c0_9, %c20], %23 {strides = array<i32>} : memref<256x36xf32, #tpu.memory_space<vmem>>, vector<256x4xf32>,
    %25 = vector.extract_strided_slice %0 {offsets = [0, 2, 0, 0], sizes = [1, 16, 16, 4], strides = [1, 1, 1, 1]} : vector<1x18x18x4xf32> to vector<1x16x16x4xf32>
    %26 = vector.shape_cast %25 : vector<1x16x16x4xf32> to vector<16x16x4xf32>
    %27 = vector.shape_cast %26 : vector<16x16x4xf32> to vector<256x4xf32>
    %c0_10 = arith.constant 0 : index
    %c24 = arith.constant 24 : index
    %28 = vector.load %arg7[%c0_10, %c24] : memref<256x36xf32, #tpu.memory_space<vmem>>, vector<256x4xf32>
    tpu.vector_store %arg7[%c0_10, %c24], %27 {strides = array<i32>} : memref<256x36xf32, #tpu.memory_space<vmem>>, vector<256x4xf32>,
    %29 = vector.extract_strided_slice %0 {offsets = [0, 2, 1, 0], sizes = [1, 16, 16, 4], strides = [1, 1, 1, 1]} : vector<1x18x18x4xf32> to vector<1x16x16x4xf32>
    %30 = vector.shape_cast %29 : vector<1x16x16x4xf32> to vector<16x16x4xf32>
    %31 = vector.shape_cast %30 : vector<16x16x4xf32> to vector<256x4xf32>
    %c0_11 = arith.constant 0 : index
    %c28 = arith.constant 28 : index
    %32 = vector.load %arg7[%c0_11, %c28] : memref<256x36xf32, #tpu.memory_space<vmem>>, vector<256x4xf32>
    tpu.vector_store %arg7[%c0_11, %c28], %31 {strides = array<i32>} : memref<256x36xf32, #tpu.memory_space<vmem>>, vector<256x4xf32>,
    %33 = vector.extract_strided_slice %0 {offsets = [0, 2, 2, 0], sizes = [1, 16, 16, 4], strides = [1, 1, 1, 1]} : vector<1x18x18x4xf32> to vector<1x16x16x4xf32>
    %34 = vector.shape_cast %33 : vector<1x16x16x4xf32> to vector<16x16x4xf32>
    %35 = vector.shape_cast %34 : vector<16x16x4xf32> to vector<256x4xf32>
    %c0_12 = arith.constant 0 : index
    %c32 = arith.constant 32 : index
    %36 = vector.load %arg7[%c0_12, %c32] : memref<256x36xf32, #tpu.memory_space<vmem>>, vector<256x4xf32>
    tpu.vector_store %arg7[%c0_12, %c32], %35 {strides = array<i32>} : memref<256x36xf32, #tpu.memory_space<vmem>>, vector<256x4xf32>,
    %c0_13 = arith.constant 0 : index
    %c0_14 = arith.constant 0 : index
    %37 = vector.load %arg7[%c0_13, %c0_14] : memref<256x36xf32, #tpu.memory_space<vmem>>, vector<256x36xf32>
    %c0_15 = arith.constant 0 : index
    %c0_16 = arith.constant 0 : index
    %38 = vector.load %arg2[%c0_15, %c0_16] : memref<36x128xf32, #tpu.memory_space<vmem>>, vector<36x128xf32>
    %cst = arith.constant dense<0.000000e+00> : vector<256x128xf32>
    %39 = tpu.matmul %37, %38, %cst {dimension_numbers = #tpu.dot_dimension_numbers<[1], [0], [0], [1], [0, 0, 1, 1], [], []>} : vector<256x36xf32>, vector<36x128xf32>, vector<256x128xf32> -> vector<256x128xf32>
    %c0_17 = arith.constant 0 : index
    %c0_18 = arith.constant 0 : index
    %40 = vector.load %arg3[%c0_17, %c0_18] : memref<1x128xf32, #tpu.memory_space<vmem>>, vector<1x128xf32>
    %41 = vector.broadcast %40 : vector<1x128xf32> to vector<256x128xf32>
    %42 = arith.addf %39, %41 : vector<256x128xf32>
    %c0_19 = arith.constant 0 : index
    %c0_20 = arith.constant 0 : index
    %43 = vector.load %arg4[%c0_19, %c0_20] : memref<1x128xf32, #tpu.memory_space<vmem>>, vector<1x128xf32>
    %44 = vector.broadcast %43 : vector<1x128xf32> to vector<256x128xf32>
    %45 = arith.mulf %42, %44 : vector<256x128xf32>
    %c0_21 = arith.constant 0 : index
    %c0_22 = arith.constant 0 : index
    %46 = vector.load %arg5[%c0_21, %c0_22] : memref<1x128xf32, #tpu.memory_space<vmem>>, vector<1x128xf32>
    %47 = vector.broadcast %46 : vector<1x128xf32> to vector<256x128xf32>
    %48 = arith.addf %45, %47 : vector<256x128xf32>
    %cst_23 = arith.constant 0.000000e+00 : f32
    %49 = vector.broadcast %cst_23 : f32 to vector<256x128xf32>
    %50 = arith.maximumf %48, %49 : vector<256x128xf32>
    %51 = vector.shape_cast %50 : vector<256x128xf32> to vector<1x16x16x128xf32>
    %c0_24 = arith.constant 0 : index
    %c0_25 = arith.constant 0 : index
    %c0_26 = arith.constant 0 : index
    %c0_27 = arith.constant 0 : index
    %52 = vector.load %arg6[%c0_24, %c0_25, %c0_26, %c0_27] : memref<1x16x16x128xf32, #tpu.memory_space<vmem>>, vector<1x16x16x128xf32>
    tpu.vector_store %arg6[%c0_24, %c0_25, %c0_26, %c0_27], %51 {strides = array<i32>} : memref<1x16x16x128xf32, #tpu.memory_space<vmem>>, vector<1x16x16x128xf32>,
    return
  }
  func.func @transform_0(%arg0: i32) -> (i32, i32, i32, i32) {
    %c0_i32 = arith.constant 0 : i32
    %c0_i32_0 = arith.constant 0 : i32
    %c0_i32_1 = arith.constant 0 : i32
    %c0_i32_2 = arith.constant 0 : i32
    return %arg0, %c0_i32, %c0_i32_0, %c0_i32_1 : i32, i32, i32, i32
  }
  func.func @transform_1(%arg0: i32) -> (i32, i32) {
    %c0_i32 = arith.constant 0 : i32
    %c0_i32_0 = arith.constant 0 : i32
    %c0_i32_1 = arith.constant 0 : i32
    return %c0_i32, %c0_i32_0 : i32, i32
  }
  func.func @transform_2(%arg0: i32) -> (i32, i32) {
    %c0_i32 = arith.constant 0 : i32
    %c0_i32_0 = arith.constant 0 : i32
    %c0_i32_1 = arith.constant 0 : i32
    return %c0_i32, %c0_i32_0 : i32, i32
  }
  func.func @transform_3(%arg0: i32) -> (i32, i32) {
    %c0_i32 = arith.constant 0 : i32
    %c0_i32_0 = arith.constant 0 : i32
    %c0_i32_1 = arith.constant 0 : i32
    return %c0_i32, %c0_i32_0 : i32, i32
  }
  func.func @transform_4(%arg0: i32) -> (i32, i32) {
    %c0_i32 = arith.constant 0 : i32
    %c0_i32_0 = arith.constant 0 : i32
    %c0_i32_1 = arith.constant 0 : i32
    return %c0_i32, %c0_i32_0 : i32, i32
  }
  func.func @transform_5(%arg0: i32) -> (i32, i32, i32, i32) {
    %c0_i32 = arith.constant 0 : i32
    %c0_i32_0 = arith.constant 0 : i32
    %c0_i32_1 = arith.constant 0 : i32
    %c0_i32_2 = arith.constant 0 : i32
    return %arg0, %c0_i32, %c0_i32_0, %c0_i32_1 : i32, i32, i32, i32
  }
}

</mosaic_0001>

<llo_original>
// kernel: unit_forward.3
$region0: #{unit_forward.3}
  #allocation0 [shape = 'u32[]', space=smem, size = 0x4, offset = 0x4, fixed_abs, tag = 'smem constant byte address 0x4 - core index']
  #allocation1 [shape = 'u32[144,128]{1,0:T(1,128)}', space=vmem, size = 0x12000, scoped, tag = 'internal scratch']
  #allocation2 [shape = 'f32[256,36]{1,0:T(8,128)}', space=vmem, size = 0x20000, scoped, tag = 'scratch operand']
  %s0 = inlined_call_operand.vmem [shape: f32[2,18,18,4], index: 0, kind: input, shape index: {}]
  %s1 = inlined_call_operand.vmem [shape: f32[36,128], index: 1, kind: input, shape index: {}]
  %s2 = inlined_call_operand.vmem [shape: f32[1,128], index: 2, kind: input, shape index: {}]
  %s3 = inlined_call_operand.vmem [shape: f32[1,128], index: 3, kind: input, shape index: {}]
  %s4 = inlined_call_operand.vmem [shape: f32[1,128], index: 4, kind: input, shape index: {}]
  %s5 = inlined_call_operand.vmem [shape: f32[2,16,16,128], index: 5, kind: output, shape index: {}]
  %s6 = sld [smem:[#allocation0]]
  $region53: #{unit_forward.3} parent=0
    _
  %s8 = ssub.s32 1, %s6
  %s9 = scalar_select 0, %s8, %s6
  loop: start=0, step=1, limit=4
  $region2: #{unit_forward.3} parent=0 // loop_pre_header
    _
  $region3: #{unit_forward.3} parent=0 // loop_header
    %s11 = sphi 0, %s15
    %p12 = scmp.ge.s32.totalorder %s11, 4
    %s21 = sphi 0, %s23
    %s24 = sphi 0, %s21
    %s25 = sphi 0, %s24
    %s41 = sphi 0, %s25
    %s45 = sphi 0, %s45
    %s47 = sphi 0, %s45
    %s48 = sphi 0, %s47
    %s62 = sphi 0, %s48
    %s66 = sphi 0, %s66
    %s68 = sphi 0, %s66
    %s69 = sphi 0, %s68
    %s83 = sphi 0, %s69
    %s87 = sphi 0, %s87
    %s89 = sphi 0, %s87
    %s90 = sphi 0, %s89
    %s104 = sphi 0, %s90
    %s108 = sphi 0, %s108
    %s110 = sphi 0, %s108
    %s111 = sphi 0, %s110
    %s125 = sphi 0, %s111
    %s131 = sphi 0, %s133
    %s134 = sphi 0, %s131
    %s135 = sphi 0, %s134
    %s151 = sphi 0, %s135
  $region4: #{unit_forward.3} parent=0 // loop_header_branch
    %14 = sbr.rel (%p12) target = $region8
  $region5: #{unit_forward.3} parent=0 // loop_body
    %s16 = ssub.s32 %s11, 1
    %s17 = ssub.s32 %s11, 2
    %s18 = sadd.s32 %s11, 1
    %s19 = ssub.s32 %s11, %s18
    %p20 = scmp.eq.s32.totalorder %s19, 0
    %s22 = sadd.s32 %s21, 1
    %s23 = scalar_select %p20, %s21, %s22
    %p26 = pneg %p20
    %p27 = scmp.eq.s32.totalorder %s11, 1
    %p28 = por %p26, %p27
    %p29 = scmp.ne.s32.totalorder %s21, %s24
    %p30 = scmp.eq.s32.totalorder %s11, 0
    %p31 = por %p29, %p30
    %p32 = scmp.ne.s32.totalorder %s21, %s24
    %p33 = scmp.eq.s32.totalorder %s16, 1
    %p34 = por %p32, %p33
    %p35 = scmp.ne.s32.totalorder %s24, %s25
    %p36 = scmp.eq.s32.totalorder %s16, 0
    %p37 = por %p35, %p36
    %p38 = scmp.ne.s32.totalorder %s24, %s25
    %p39 = scmp.eq.s32.totalorder %s17, 1
    %p40 = por %p38, %p39
    %p42 = scmp.ne.s32.totalorder %s25, %s41
    %p43 = scmp.eq.s32.totalorder %s17, 0
    %p44 = por %p42, %p43
    %s46 = sadd.s32 %s45, 1
    %p49 = scmp.eq.s32.totalorder %s11, 1
    %p50 = scmp.ne.s32.totalorder %s45, %s47
    %p51 = scmp.eq.s32.totalorder %s11, 0
    %p52 = por %p50, %p51
    %p53 = scmp.ne.s32.totalorder %s45, %s47
    %p54 = scmp.eq.s32.totalorder %s16, 1
    %p55 = por %p53, %p54
    %p56 = scmp.ne.s32.totalorder %s47, %s48
    %p57 = scmp.eq.s32.totalorder %s16, 0
    %p58 = por %p56, %p57
    %p59 = scmp.ne.s32.totalorder %s47, %s48
    %p60 = scmp.eq.s32.totalorder %s17, 1
    %p61 = por %p59, %p60
    %p63 = scmp.ne.s32.totalorder %s48, %s62
    %p64 = scmp.eq.s32.totalorder %s17, 0
    %p65 = por %p63, %p64
    %s67 = sadd.s32 %s66, 1
    %p70 = scmp.eq.s32.totalorder %s11, 1
    %p71 = scmp.ne.s32.totalorder %s66, %s68
    %p72 = scmp.eq.s32.totalorder %s11, 0
    %p73 = por %p71, %p72
    %p74 = scmp.ne.s32.totalorder %s66, %s68
    %p75 = scmp.eq.s32.totalorder %s16, 1
    %p76 = por %p74, %p75
    %p77 = scmp.ne.s32.totalorder %s68, %s69
    %p78 = scmp.eq.s32.totalorder %s16, 0
    %p79 = por %p77, %p78
    %p80 = scmp.ne.s32.totalorder %s68, %s69
    %p81 = scmp.eq.s32.totalorder %s17, 1
    %p82 = por %p80, %p81
    %p84 = scmp.ne.s32.totalorder %s69, %s83
    %p85 = scmp.eq.s32.totalorder %s17, 0
    %p86 = por %p84, %p85
    %s88 = sadd.s32 %s87, 1
    %p91 = scmp.eq.s32.totalorder %s11, 1
    %p92 = scmp.ne.s32.totalorder %s87, %s89
    %p93 = scmp.eq.s32.totalorder %s11, 0
    %p94 = por %p92, %p93
    %p95 = scmp.ne.s32.totalorder %s87, %s89
    %p96 = scmp.eq.s32.totalorder %s16, 1
    %p97 = por %p95, %p96
    %p98 = scmp.ne.s32.totalorder %s89, %s90
    %p99 = scmp.eq.s32.totalorder %s16, 0
    %p100 = por %p98, %p99
    %p101 = scmp.ne.s32.totalorder %s89, %s90
    %p102 = scmp.eq.s32.totalorder %s17, 1
    %p103 = por %p101, %p102
    %p105 = scmp.ne.s32.totalorder %s90, %s104
    %p106 = scmp.eq.s32.totalorder %s17, 0
    %p107 = por %p105, %p106
    %s109 = sadd.s32 %s108, 1
    %p112 = scmp.eq.s32.totalorder %s11, 1
    %p113 = scmp.ne.s32.totalorder %s108, %s110
    %p114 = scmp.eq.s32.totalorder %s11, 0
    %p115 = por %p113, %p114
    %p116 = scmp.ne.s32.totalorder %s108, %s110
    %p117 = scmp.eq.s32.totalorder %s16, 1
    %p118 = por %p116, %p117
    %p119 = scmp.ne.s32.totalorder %s110, %s111
    %p120 = scmp.eq.s32.totalorder %s16, 0
    %p121 = por %p119, %p120
    %p122 = scmp.ne.s32.totalorder %s110, %s111
    %p123 = scmp.eq.s32.totalorder %s17, 1
    %p124 = por %p122, %p123
    %p126 = scmp.ne.s32.totalorder %s111, %s125
    %p127 = scmp.eq.s32.totalorder %s17, 0
    %p128 = por %p126, %p127
    %s129 = ssub.s32 %s11, %s18
    %p130 = scmp.eq.s32.totalorder %s129, 0
    %s132 = sadd.s32 %s131, 1
    %s133 = scalar_select %p130, %s131, %s132
    %p136 = pneg %p130
    %p137 = scmp.eq.s32.totalorder %s11, 1
    %p138 = por %p136, %p137
    %p139 = scmp.ne.s32.totalorder %s131, %s134
    %p140 = scmp.eq.s32.totalorder %s11, 0
    %p141 = por %p139, %p140
    %p142 = scmp.ne.s32.totalorder %s131, %s134
    %p143 = scmp.eq.s32.totalorder %s16, 1
    %p144 = por %p142, %p143
    %p145 = scmp.ne.s32.totalorder %s134, %s135
    %p146 = scmp.eq.s32.totalorder %s16, 0
    %p147 = por %p145, %p146
    %p148 = scmp.ne.s32.totalorder %s134, %s135
    %p149 = scmp.eq.s32.totalorder %s17, 1
    %p150 = por %p148, %p149
    %p152 = scmp.ne.s32.totalorder %s135, %s151
    %p153 = scmp.eq.s32.totalorder %s17, 0
    %p154 = por %p152, %p153
    %p155 = scmp.le.s32.totalorder 1, %s11
    %p156 = scmp.lt.s32.totalorder %s11, 3
    %p157 = pnand %p155, %p156
    %p158 = pneg %p157
    // Predicated region
    $region9: #{unit_forward.3} parent=5 // pred_check
      _
    $region10: #{unit_forward.3} parent=5 // pred_check_branch
      %160 = sbr.rel (%p157) target = $region12
    $region11: #{unit_forward.3} parent=5 // pred_region
      %s161 = ssub.s32 %s11, 1
      // Predicated region
      $region13: #{unit_forward.3} parent=11 // pred_check
        %p162 = pneg %p58
      $region14: #{unit_forward.3} parent=11 // pred_check_branch
        %164 = sbr.rel (%p162) target = $region16
      $region15: #{unit_forward.3} parent=11 // pred_region
        _
      $region16: #{unit_forward.3} parent=11 // pred_fallthru
        _
      // Predicated region
      $region17: #{unit_forward.3} parent=11 // pred_check
        %p165 = pneg %p79
      $region18: #{unit_forward.3} parent=11 // pred_check_branch
        %167 = sbr.rel (%p165) target = $region20
      $region19: #{unit_forward.3} parent=11 // pred_region
        _
      $region20: #{unit_forward.3} parent=11 // pred_fallthru
        _
      // Predicated region
      $region21: #{unit_forward.3} parent=11 // pred_check
        %p168 = pneg %p100
      $region22: #{unit_forward.3} parent=11 // pred_check_branch
        %170 = sbr.rel (%p168) target = $region24
      $region23: #{unit_forward.3} parent=11 // pred_region
        _
      $region24: #{unit_forward.3} parent=11 // pred_fallthru
        _
      // Predicated region
      $region25: #{unit_forward.3} parent=11 // pred_check
        %p171 = pneg %p121
      $region26: #{unit_forward.3} parent=11 // pred_check_branch
        %173 = sbr.rel (%p171) target = $region28
      $region27: #{unit_forward.3} parent=11 // pred_region
        _
      $region28: #{unit_forward.3} parent=11 // pred_fallthru
        _
    $region12: #{unit_forward.3} parent=5 // pred_fallthru
      _
    %p174 = scmp.lt.s32.totalorder %s11, 2
    // Predicated region
    $region29: #{unit_forward.3} parent=5 // pred_check
      %p175 = pneg %p174
    $region30: #{unit_forward.3} parent=5 // pred_check_branch
      %177 = sbr.rel (%p175) target = $region32
    $region31: #{unit_forward.3} parent=5 // pred_region
      // Predicated region
      $region33: #{unit_forward.3} parent=31 // pred_check
        %p178 = pneg %p31
      $region34: #{unit_forward.3} parent=31 // pred_check_branch
        %180 = sbr.rel (%p178) target = $region36
      $region35: #{unit_forward.3} parent=31 // pred_region
        %p181 = scmp.lt.s32.totalorder %s11, 1
        %s182 = scalar_select %p181, %s11, 1
        %s183 = smul.addr %s182, 54
        %s184 = smul.addr %s183, 8
        %s185 = scalar_lea.vmem %s0, %s184
      $region36: #{unit_forward.3} parent=31 // pred_fallthru
        _
    $region32: #{unit_forward.3} parent=5 // pred_fallthru
      _
    %p186 = scmp.le.s32.totalorder 1, %s11
    %p187 = scmp.lt.s32.totalorder %s11, 3
    %p188 = pnand %p186, %p187
    %p189 = pneg %p188
    // Predicated region
    $region37: #{unit_forward.3} parent=5 // pred_check
      _
    $region38: #{unit_forward.3} parent=5 // pred_check_branch
      %191 = sbr.rel (%p188) target = $region40
    $region39: #{unit_forward.3} parent=5 // pred_region
      %s192 = ssub.s32 %s11, 1
      %p193 = scmp.lt.s32.totalorder %s16, 1
      %s194 = scalar_select %p193, %s16, 1
      %s195 = smul.addr %s194, 54
      %s196 = smul.addr %s195, 8
      %s197 = scalar_lea.vmem %s0, %s196
      %p198 = pneg %p37
      %p199 = pneg %p34
      %p200 = pneg %p58
      %p201 = pneg %p55
      %p202 = pneg %p79
      %p203 = pneg %p76
      %p204 = pneg %p100
      %p205 = pneg %p97
      %p206 = pneg %p121
      %p207 = pneg %p118
      %p208 = pneg %p147
      %p209 = pneg %p144
      %p210 = scmp.lt.s32.totalorder %s16, 1
      %s211 = scalar_select %p210, %s16, 1
      %s212 = smul.addr %s211, 32
      %s213 = smul.addr %s212, 8
      %s214 = scalar_lea.vmem %s5, %s213
      %p215 = scmp.lt.s32.totalorder %s16, 1
      %s216 = scalar_select %p215, %s16, 1
      %s217 = smul.addr %s216, 54
      %s218 = smul.addr %s217, 8
      %s219 = scalar_lea.vmem %s0, %s218
      %p220 = scmp.lt.s32.totalorder %s16, 1
      %s221 = scalar_select %p220, %s16, 1
      %s222 = smul.addr %s221, 32
      %s223 = smul.addr %s222, 8
      %s224 = scalar_lea.vmem %s5, %s223
      %v225 = vld [vmem:[%s219] sm:$0xff]
      %v226 = vld [vmem:[%s219 + $0x8] sm:$0xff]
      %v227 = vld [vmem:[%s219 + $0x10] sm:$0x3]
      %v228 = vld [vmem:[%s219 + $0x18] sm:$0xff]
      %v229 = vld [vmem:[%s219 + $0x20] sm:$0xff]
      %v230 = vld [vmem:[%s219 + $0x28] sm:$0x3]
      %v231 = vld [vmem:[%s219 + $0x30] sm:$0xff]
      %v232 = vld [vmem:[%s219 + $0x38] sm:$0xff]
      %v233 = vld [vmem:[%s219 + $0x40] sm:$0x3]
      %v234 = vld [vmem:[%s219 + $0x48] sm:$0xff]
      %v235 = vld [vmem:[%s219 + $0x50] sm:$0xff]
      %v236 = vld [vmem:[%s219 + $0x58] sm:$0x3]
      %v237 = vld [vmem:[%s219 + $0x60] sm:$0xff]
      %v238 = vld [vmem:[%s219 + $0x68] sm:$0xff]
      %v239 = vld [vmem:[%s219 + $0x70] sm:$0x3]
      %v240 = vld [vmem:[%s219 + $0x78] sm:$0xff]
      %v241 = vld [vmem:[%s219 + $0x80] sm:$0xff]
      %v242 = vld [vmem:[%s219 + $0x88] sm:$0x3]
      %v243 = vld [vmem:[%s219 + $0x90] sm:$0xff]
      %v244 = vld [vmem:[%s219 + $0x98] sm:$0xff]
      %v245 = vld [vmem:[%s219 + $0xa0] sm:$0x3]
      %v246 = vld [vmem:[%s219 + $0xa8] sm:$0xff]
      %v247 = vld [vmem:[%s219 + $0xb0] sm:$0xff]
      %v248 = vld [vmem:[%s219 + $0xb8] sm:$0x3]
      %v249 = vld [vmem:[%s219 + $0xc0] sm:$0xff]
      %v250 = vld [vmem:[%s219 + $0xc8] sm:$0xff]
      %v251 = vld [vmem:[%s219 + $0xd0] sm:$0x3]
      %v252 = vld [vmem:[%s219 + $0xd8] sm:$0xff]
      %v253 = vld [vmem:[%s219 + $0xe0] sm:$0xff]
      %v254 = vld [vmem:[%s219 + $0xe8] sm:$0x3]
      %v255 = vld [vmem:[%s219 + $0xf0] sm:$0xff]
      %v256 = vld [vmem:[%s219 + $0xf8] sm:$0xff]
      %v257 = vld [vmem:[%s219 + $0x100] sm:$0x3]
      %v258 = vld [vmem:[%s219 + $0x108] sm:$0xff]
      %v259 = vld [vmem:[%s219 + $0x110] sm:$0xff]
      %v260 = vld [vmem:[%s219 + $0x118] sm:$0x3]
      %v261 = vld [vmem:[%s219 + $0x120] sm:$0xff]
      %v262 = vld [vmem:[%s219 + $0x128] sm:$0xff]
      %v263 = vld [vmem:[%s219 + $0x130] sm:$0x3]
      %v264 = vld [vmem:[%s219 + $0x138] sm:$0xff]
      %v265 = vld [vmem:[%s219 + $0x140] sm:$0xff]
      %v266 = vld [vmem:[%s219 + $0x148] sm:$0x3]
      %v267 = vld [vmem:[%s219 + $0x150] sm:$0xff]
      %v268 = vld [vmem:[%s219 + $0x158] sm:$0xff]
      %v269 = vld [vmem:[%s219 + $0x160] sm:$0x3]
      %v270 = vld [vmem:[%s219 + $0x168] sm:$0xff]
      %v271 = vld [vmem:[%s219 + $0x170] sm:$0xff]
      %v272 = vld [vmem:[%s219 + $0x178] sm:$0x3]
      %v273 = vld [vmem:[%s219 + $0x180] sm:$0xff]
      %v274 = vld [vmem:[%s219 + $0x188] sm:$0xff]
      %v275 = vld [vmem:[%s219 + $0x190] sm:$0x3]
      %v276 = vld [vmem:[%s219 + $0x198] sm:$0xff]
      %v277 = vld [vmem:[%s219 + $0x1a0] sm:$0xff]
      %v278 = vld [vmem:[%s219 + $0x1a8] sm:$0x3]
      %vm279 = vcmask 31744
      %280 = vst.msk [vmem:[#allocation2] sm:$0xff] %vm279, %v225
      %281 = vst.msk [vmem:[#allocation2 + $0x8] sm:$0xff] %vm279, %v226
      %282 = vst.msk [vmem:[#allocation2 + $0x10] sm:$0xff] %vm279, %v228
      %283 = vst.msk [vmem:[#allocation2 + $0x18] sm:$0xff] %vm279, %v229
      %284 = vst.msk [vmem:[#allocation2 + $0x20] sm:$0xff] %vm279, %v231
      %285 = vst.msk [vmem:[#allocation2 + $0x28] sm:$0xff] %vm279, %v232
      %286 = vst.msk [vmem:[#allocation2 + $0x30] sm:$0xff] %vm279, %v234
      %287 = vst.msk [vmem:[#allocation2 + $0x38] sm:$0xff] %vm279, %v235
      %288 = vst.msk [vmem:[#allocation2 + $0x40] sm:$0xff] %vm279, %v237
      %289 = vst.msk [vmem:[#allocation2 + $0x48] sm:$0xff] %vm279, %v238
      %290 = vst.msk [vmem:[#allocation2 + $0x50] sm:$0xff] %vm279, %v240
      %291 = vst.msk [vmem:[#allocation2 + $0x58] sm:$0xff] %vm279, %v241
      %292 = vst.msk [vmem:[#allocation2 + $0x60] sm:$0xff] %vm279, %v243
      %293 = vst.msk [vmem:[#allocation2 + $0x68] sm:$0xff] %vm279, %v244
      %294 = vst.msk [vmem:[#allocation2 + $0x70] sm:$0xff] %vm279, %v246
      %295 = vst.msk [vmem:[#allocation2 + $0x78] sm:$0xff] %vm279, %v247
      %296 = vst.msk [vmem:[#allocation2 + $0x80] sm:$0xff] %vm279, %v249
      %297 = vst.msk [vmem:[#allocation2 + $0x88] sm:$0xff] %vm279, %v250
      %298 = vst.msk [vmem:[#allocation2 + $0x90] sm:$0xff] %vm279, %v252
      %299 = vst.msk [vmem:[#allocation2 + $0x98] sm:$0xff] %vm279, %v253
      %300 = vst.msk [vmem:[#allocation2 + $0xa0] sm:$0xff] %vm279, %v255
      %301 = vst.msk [vmem:[#allocation2 + $0xa8] sm:$0xff] %vm279, %v256
      %302 = vst.msk [vmem:[#allocation2 + $0xb0] sm:$0xff] %vm279, %v258
      %303 = vst.msk [vmem:[#allocation2 + $0xb8] sm:$0xff] %vm279, %v259
      %304 = vst.msk [vmem:[#allocation2 + $0xc0] sm:$0xff] %vm279, %v261
      %305 = vst.msk [vmem:[#allocation2 + $0xc8] sm:$0xff] %vm279, %v262
      %306 = vst.msk [vmem:[#allocation2 + $0xd0] sm:$0xff] %vm279, %v264
      %307 = vst.msk [vmem:[#allocation2 + $0xd8] sm:$0xff] %vm279, %v265
      %308 = vst.msk [vmem:[#allocation2 + $0xe0] sm:$0xff] %vm279, %v267
      %309 = vst.msk [vmem:[#allocation2 + $0xe8] sm:$0xff] %vm279, %v268
      %310 = vst.msk [vmem:[#allocation2 + $0xf0] sm:$0xff] %vm279, %v270
      %311 = vst.msk [vmem:[#allocation2 + $0xf8] sm:$0xff] %vm279, %v271
      %vm360 = vcmask 1046528
      %v361 = vrot.slane %v225, 1
      %v362 = vrot.slane %v226, 1
      %v363 = vsel %vm360, %v361, %v362
      %v364 = vrot.slane %v227, 1
      %v365 = vsel %vm360, %v362, %v364
      %v366 = vrot.slane %v228, 1
      %v367 = vrot.slane %v229, 1
      %v368 = vsel %vm360, %v366, %v367
      %v369 = vrot.slane %v230, 1
      %v370 = vsel %vm360, %v367, %v369
      %v371 = vrot.slane %v231, 1
      %v372 = vrot.slane %v232, 1
      %v373 = vsel %vm360, %v371, %v372
      %v374 = vrot.slane %v233, 1
      %v375 = vsel %vm360, %v372, %v374
      %v376 = vrot.slane %v234, 1
      %v377 = vrot.slane %v235, 1
      %v378 = vsel %vm360, %v376, %v377
      %v379 = vrot.slane %v236, 1
      %v380 = vsel %vm360, %v377, %v379
      %v381 = vrot.slane %v237, 1
      %v382 = vrot.slane %v238, 1
      %v383 = vsel %vm360, %v381, %v382
      %v384 = vrot.slane %v239, 1
      %v385 = vsel %vm360, %v382, %v384
      %v386 = vrot.slane %v240, 1
      %v387 = vrot.slane %v241, 1
      %v388 = vsel %vm360, %v386, %v387
      %v389 = vrot.slane %v242, 1
      %v390 = vsel %vm360, %v387, %v389
      %v391 = vrot.slane %v243, 1
      %v392 = vrot.slane %v244, 1
      %v393 = vsel %vm360, %v391, %v392
      %v394 = vrot.slane %v245, 1
      %v395 = vsel %vm360, %v392, %v394
      %v396 = vrot.slane %v246, 1
      %v397 = vrot.slane %v247, 1
      %v398 = vsel %vm360, %v396, %v397
      %v399 = vrot.slane %v248, 1
      %v400 = vsel %vm360, %v397, %v399
      %v401 = vrot.slane %v249, 1
      %v402 = vrot.slane %v250, 1
      %v403 = vsel %vm360, %v401, %v402
      %v404 = vrot.slane %v251, 1
      %v405 = vsel %vm360, %v402, %v404
      %v406 = vrot.slane %v252, 1
      %v407 = vrot.slane %v253, 1
      %v408 = vsel %vm360, %v406, %v407
      %v409 = vrot.slane %v254, 1
      %v410 = vsel %vm360, %v407, %v409
      %v411 = vrot.slane %v255, 1
      %v412 = vrot.slane %v256, 1
      %v413 = vsel %vm360, %v411, %v412
      %v414 = vrot.slane %v257, 1
      %v415 = vsel %vm360, %v412, %v414
      %v416 = vrot.slane %v258, 1
      %v417 = vrot.slane %v259, 1
      %v418 = vsel %vm360, %v416, %v417
      %v419 = vrot.slane %v260, 1
      %v420 = vsel %vm360, %v417, %v419
      %v421 = vrot.slane %v261, 1
      %v422 = vrot.slane %v262, 1
      %v423 = vsel %vm360, %v421, %v422
      %v424 = vrot.slane %v263, 1
      %v425 = vsel %vm360, %v422, %v424
      %v426 = vrot.slane %v264, 1
      %v427 = vrot.slane %v265, 1
      %v428 = vsel %vm360, %v426, %v427
      %v429 = vrot.slane %v266, 1
      %v430 = vsel %vm360, %v427, %v429
      %v431 = vrot.slane %v267, 1
      %v432 = vrot.slane %v268, 1
      %v433 = vsel %vm360, %v431, %v432
      %v434 = vrot.slane %v269, 1
      %v435 = vsel %vm360, %v432, %v434
      %v436 = vrot.slane %v270, 1
      %v437 = vrot.slane %v271, 1
      %v438 = vsel %vm360, %v436, %v437
      %v439 = vrot.slane %v272, 1
      %v440 = vsel %vm360, %v437, %v439
      %441 = vrot.lane.b32.xlu0 %v363, 4
      %v442 = vpop.permute.xlu0 %441
      %443 = vrot.lane.b32.xlu0 %v365, 4
      %v444 = vpop.permute.xlu0 %443
      %445 = vrot.lane.b32.xlu0 %v368, 4
      %v446 = vpop.permute.xlu0 %445
      %447 = vrot.lane.b32.xlu0 %v370, 4
      %v448 = vpop.permute.xlu0 %447
      %449 = vrot.lane.b32.xlu0 %v373, 4
      %v450 = vpop.permute.xlu0 %449
      %451 = vrot.lane.b32.xlu0 %v375, 4
      %v452 = vpop.permute.xlu0 %451
      %453 = vrot.lane.b32.xlu0 %v378, 4
      %v454 = vpop.permute.xlu0 %453
      %455 = vrot.lane.b32.xlu0 %v380, 4
      %v456 = vpop.permute.xlu0 %455
      %457 = vrot.lane.b32.xlu0 %v383, 4
      %v458 = vpop.permute.xlu0 %457
      %459 = vrot.lane.b32.xlu0 %v385, 4
      %v460 = vpop.permute.xlu0 %459
      %461 = vrot.lane.b32.xlu0 %v388, 4
      %v462 = vpop.permute.xlu0 %461
      %463 = vrot.lane.b32.xlu0 %v390, 4
      %v464 = vpop.permute.xlu0 %463
      %465 = vrot.lane.b32.xlu0 %v393, 4
      %v466 = vpop.permute.xlu0 %465
      %467 = vrot.lane.b32.xlu0 %v395, 4
      %v468 = vpop.permute.xlu0 %467
      %469 = vrot.lane.b32.xlu0 %v398, 4
      %v470 = vpop.permute.xlu0 %469
      %471 = vrot.lane.b32.xlu0 %v400, 4
      %v472 = vpop.permute.xlu0 %471
      %473 = vrot.lane.b32.xlu0 %v403, 4
      %v474 = vpop.permute.xlu0 %473
      %475 = vrot.lane.b32.xlu0 %v405, 4
      %v476 = vpop.permute.xlu0 %475
      %477 = vrot.lane.b32.xlu0 %v408, 4
      %v478 = vpop.permute.xlu0 %477
      %479 = vrot.lane.b32.xlu0 %v410, 4
      %v480 = vpop.permute.xlu0 %479
      %481 = vrot.lane.b32.xlu0 %v413, 4
      %v482 = vpop.permute.xlu0 %481
      %483 = vrot.lane.b32.xlu0 %v415, 4
      %v484 = vpop.permute.xlu0 %483
      %485 = vrot.lane.b32.xlu0 %v418, 4
      %v486 = vpop.permute.xlu0 %485
      %487 = vrot.lane.b32.xlu0 %v420, 4
      %v488 = vpop.permute.xlu0 %487
      %489 = vrot.lane.b32.xlu0 %v423, 4
      %v490 = vpop.permute.xlu0 %489
      %491 = vrot.lane.b32.xlu0 %v425, 4
      %v492 = vpop.permute.xlu0 %491
      %493 = vrot.lane.b32.xlu0 %v428, 4
      %v494 = vpop.permute.xlu0 %493
      %495 = vrot.lane.b32.xlu0 %v430, 4
      %v496 = vpop.permute.xlu0 %495
      %497 = vrot.lane.b32.xlu0 %v433, 4
      %v498 = vpop.permute.xlu0 %497
      %499 = vrot.lane.b32.xlu0 %v435, 4
      %v500 = vpop.permute.xlu0 %499
      %501 = vrot.lane.b32.xlu0 %v438, 4
      %v502 = vpop.permute.xlu0 %501
      %503 = vrot.lane.b32.xlu0 %v440, 4
      %v504 = vpop.permute.xlu0 %503
      %vm537 = vcmask 64544
      %538 = vst.msk [vmem:[#allocation2] sm:$0xff] %vm537, %v442
      %539 = vst.msk [vmem:[#allocation2 + $0x8] sm:$0xff] %vm537, %v444
      %540 = vst.msk [vmem:[#allocation2 + $0x10] sm:$0xff] %vm537, %v446
      %541 = vst.msk [vmem:[#allocation2 + $0x18] sm:$0xff] %vm537, %v448
      %542 = vst.msk [vmem:[#allocation2 + $0x20] sm:$0xff] %vm537, %v450
      %543 = vst.msk [vmem:[#allocation2 + $0x28] sm:$0xff] %vm537, %v452
      %544 = vst.msk [vmem:[#allocation2 + $0x30] sm:$0xff] %vm537, %v454
      %545 = vst.msk [vmem:[#allocation2 + $0x38] sm:$0xff] %vm537, %v456
      %546 = vst.msk [vmem:[#allocation2 + $0x40] sm:$0xff] %vm537, %v458
      %547 = vst.msk [vmem:[#allocation2 + $0x48] sm:$0xff] %vm537, %v460
      %548 = vst.msk [vmem:[#allocation2 + $0x50] sm:$0xff] %vm537, %v462
      %549 = vst.msk [vmem:[#allocation2 + $0x58] sm:$0xff] %vm537, %v464
      %550 = vst.msk [vmem:[#allocation2 + $0x60] sm:$0xff] %vm537, %v466
      %551 = vst.msk [vmem:[#allocation2 + $0x68] sm:$0xff] %vm537, %v468
      %552 = vst.msk [vmem:[#allocation2 + $0x70] sm:$0xff] %vm537, %v470
      %553 = vst.msk [vmem:[#allocation2 + $0x78] sm:$0xff] %vm537, %v472
      %554 = vst.msk [vmem:[#allocation2 + $0x80] sm:$0xff] %vm537, %v474
      %555 = vst.msk [vmem:[#allocation2 + $0x88] sm:$0xff] %vm537, %v476
      %556 = vst.msk [vmem:[#allocation2 + $0x90] sm:$0xff] %vm537, %v478
      %557 = vst.msk [vmem:[#allocation2 + $0x98] sm:$0xff] %vm537, %v480
      %558 = vst.msk [vmem:[#allocation2 + $0xa0] sm:$0xff] %vm537, %v482
      %559 = vst.msk [vmem:[#allocation2 + $0xa8] sm:$0xff] %vm537, %v484
      %560 = vst.msk [vmem:[#allocation2 + $0xb0] sm:$0xff] %vm537, %v486
      %561 = vst.msk [vmem:[#allocation2 + $0xb8] sm:$0xff] %vm537, %v488
      %562 = vst.msk [vmem:[#allocation2 + $0xc0] sm:$0xff] %vm537, %v490
      %563 = vst.msk [vmem:[#allocation2 + $0xc8] sm:$0xff] %vm537, %v492
      %564 = vst.msk [vmem:[#allocation2 + $0xd0] sm:$0xff] %vm537, %v494
      %565 = vst.msk [vmem:[#allocation2 + $0xd8] sm:$0xff] %vm537, %v496
      %566 = vst.msk [vmem:[#allocation2 + $0xe0] sm:$0xff] %vm537, %v498
      %567 = vst.msk [vmem:[#allocation2 + $0xe8] sm:$0xff] %vm537, %v500
      %568 = vst.msk [vmem:[#allocation2 + $0xf0] sm:$0xff] %vm537, %v502
      %569 = vst.msk [vmem:[#allocation2 + $0xf8] sm:$0xff] %vm537, %v504
      %vm570 = vcmask 1045504
      %v571 = vrot.slane %v225, 2
      %v572 = vrot.slane %v226, 2
      %v573 = vsel %vm570, %v571, %v572
      %v574 = vrot.slane %v227, 2
      %v575 = vsel %vm570, %v572, %v574
      %v576 = vrot.slane %v228, 2
      %v577 = vrot.slane %v229, 2
      %v578 = vsel %vm570, %v576, %v577
      %v579 = vrot.slane %v230, 2
      %v580 = vsel %vm570, %v577, %v579
      %v581 = vrot.slane %v231, 2
      %v582 = vrot.slane %v232, 2
      %v583 = vsel %vm570, %v581, %v582
      %v584 = vrot.slane %v233, 2
      %v585 = vsel %vm570, %v582, %v584
      %v586 = vrot.slane %v234, 2
      %v587 = vrot.slane %v235, 2
      %v588 = vsel %vm570, %v586, %v587
      %v589 = vrot.slane %v236, 2
      %v590 = vsel %vm570, %v587, %v589
      %v591 = vrot.slane %v237, 2
      %v592 = vrot.slane %v238, 2
      %v593 = vsel %vm570, %v591, %v592
      %v594 = vrot.slane %v239, 2
      %v595 = vsel %vm570, %v592, %v594
      %v596 = vrot.slane %v240, 2
      %v597 = vrot.slane %v241, 2
      %v598 = vsel %vm570, %v596, %v597
      %v599 = vrot.slane %v242, 2
      %v600 = vsel %vm570, %v597, %v599
      %v601 = vrot.slane %v243, 2
      %v602 = vrot.slane %v244, 2
      %v603 = vsel %vm570, %v601, %v602
      %v604 = vrot.slane %v245, 2
      %v605 = vsel %vm570, %v602, %v604
      %v606 = vrot.slane %v246, 2
      %v607 = vrot.slane %v247, 2
      %v608 = vsel %vm570, %v606, %v607
      %v609 = vrot.slane %v248, 2
      %v610 = vsel %vm570, %v607, %v609
      %v611 = vrot.slane %v249, 2
      %v612 = vrot.slane %v250, 2
      %v613 = vsel %vm570, %v611, %v612
      %v614 = vrot.slane %v251, 2
      %v615 = vsel %vm570, %v612, %v614
      %v616 = vrot.slane %v252, 2
      %v617 = vrot.slane %v253, 2
      %v618 = vsel %vm570, %v616, %v617
      %v619 = vrot.slane %v254, 2
      %v620 = vsel %vm570, %v617, %v619
      %v621 = vrot.slane %v255, 2
      %v622 = vrot.slane %v256, 2
      %v623 = vsel %vm570, %v621, %v622
      %v624 = vrot.slane %v257, 2
      %v625 = vsel %vm570, %v622, %v624
      %v626 = vrot.slane %v258, 2
      %v627 = vrot.slane %v259, 2
      %v628 = vsel %vm570, %v626, %v627
      %v629 = vrot.slane %v260, 2
      %v630 = vsel %vm570, %v627, %v629
      %v631 = vrot.slane %v261, 2
      %v632 = vrot.slane %v262, 2
      %v633 = vsel %vm570, %v631, %v632
      %v634 = vrot.slane %v263, 2
      %v635 = vsel %vm570, %v632, %v634
      %v636 = vrot.slane %v264, 2
      %v637 = vrot.slane %v265, 2
      %v638 = vsel %vm570, %v636, %v637
      %v639 = vrot.slane %v266, 2
      %v640 = vsel %vm570, %v637, %v639
      %v641 = vrot.slane %v267, 2
      %v642 = vrot.slane %v268, 2
      %v643 = vsel %vm570, %v641, %v642
      %v644 = vrot.slane %v269, 2
      %v645 = vsel %vm570, %v642, %v644
      %v646 = vrot.slane %v270, 2
      %v647 = vrot.slane %v271, 2
      %v648 = vsel %vm570, %v646, %v647
      %v649 = vrot.slane %v272, 2
      %v650 = vsel %vm570, %v647, %v649
      %651 = vrot.lane.b32.xlu0 %v573, 8
      %v652 = vpop.permute.xlu0 %651
      %653 = vrot.lane.b32.xlu0 %v575, 8
      %v654 = vpop.permute.xlu0 %653
      %655 = vrot.lane.b32.xlu0 %v578, 8
      %v656 = vpop.permute.xlu0 %655
      %657 = vrot.lane.b32.xlu0 %v580, 8
      %v658 = vpop.permute.xlu0 %657
      %659 = vrot.lane.b32.xlu0 %v583, 8
      %v660 = vpop.permute.xlu0 %659
      %661 = vrot.lane.b32.xlu0 %v585, 8
      %v662 = vpop.permute.xlu0 %661
      %663 = vrot.lane.b32.xlu0 %v588, 8
      %v664 = vpop.permute.xlu0 %663
      %665 = vrot.lane.b32.xlu0 %v590, 8
      %v666 = vpop.permute.xlu0 %665
      %667 = vrot.lane.b32.xlu0 %v593, 8
      %v668 = vpop.permute.xlu0 %667
      %669 = vrot.lane.b32.xlu0 %v595, 8
      %v670 = vpop.permute.xlu0 %669
      %671 = vrot.lane.b32.xlu0 %v598, 8
      %v672 = vpop.permute.xlu0 %671
      %673 = vrot.lane.b32.xlu0 %v600, 8
      %v674 = vpop.permute.xlu0 %673
      %675 = vrot.lane.b32.xlu0 %v603, 8
      %v676 = vpop.permute.xlu0 %675
      %677 = vrot.lane.b32.xlu0 %v605, 8
      %v678 = vpop.permute.xlu0 %677
      %679 = vrot.lane.b32.xlu0 %v608, 8
      %v680 = vpop.permute.xlu0 %679
      %681 = vrot.lane.b32.xlu0 %v610, 8
      %v682 = vpop.permute.xlu0 %681
      %683 = vrot.lane.b32.xlu0 %v613, 8
      %v684 = vpop.permute.xlu0 %683
      %685 = vrot.lane.b32.xlu0 %v615, 8
      %v686 = vpop.permute.xlu0 %685
      %687 = vrot.lane.b32.xlu0 %v618, 8
      %v688 = vpop.permute.xlu0 %687
      %689 = vrot.lane.b32.xlu0 %v620, 8
      %v690 = vpop.permute.xlu0 %689
      %691 = vrot.lane.b32.xlu0 %v623, 8
      %v692 = vpop.permute.xlu0 %691
      %693 = vrot.lane.b32.xlu0 %v625, 8
      %v694 = vpop.permute.xlu0 %693
      %695 = vrot.lane.b32.xlu0 %v628, 8
      %v696 = vpop.permute.xlu0 %695
      %697 = vrot.lane.b32.xlu0 %v630, 8
      %v698 = vpop.permute.xlu0 %697
      %699 = vrot.lane.b32.xlu0 %v633, 8
      %v700 = vpop.permute.xlu0 %699
      %701 = vrot.lane.b32.xlu0 %v635, 8
      %v702 = vpop.permute.xlu0 %701
      %703 = vrot.lane.b32.xlu0 %v638, 8
      %v704 = vpop.permute.xlu0 %703
      %705 = vrot.lane.b32.xlu0 %v640, 8
      %v706 = vpop.permute.xlu0 %705
      %707 = vrot.lane.b32.xlu0 %v643, 8
      %v708 = vpop.permute.xlu0 %707
      %709 = vrot.lane.b32.xlu0 %v645, 8
      %v710 = vpop.permute.xlu0 %709
      %711 = vrot.lane.b32.xlu0 %v648, 8
      %v712 = vpop.permute.xlu0 %711
      %713 = vrot.lane.b32.xlu0 %v650, 8
      %v714 = vpop.permute.xlu0 %713
      %vm747 = vcmask 97344
      %748 = vst.msk [vmem:[#allocation2] sm:$0xff] %vm747, %v652
      %749 = vst.msk [vmem:[#allocation2 + $0x8] sm:$0xff] %vm747, %v654
      %750 = vst.msk [vmem:[#allocation2 + $0x10] sm:$0xff] %vm747, %v656
      %751 = vst.msk [vmem:[#allocation2 + $0x18] sm:$0xff] %vm747, %v658
      %752 = vst.msk [vmem:[#allocation2 + $0x20] sm:$0xff] %vm747, %v660
      %753 = vst.msk [vmem:[#allocation2 + $0x28] sm:$0xff] %vm747, %v662
      %754 = vst.msk [vmem:[#allocation2 + $0x30] sm:$0xff] %vm747, %v664
      %755 = vst.msk [vmem:[#allocation2 + $0x38] sm:$0xff] %vm747, %v666
      %756 = vst.msk [vmem:[#allocation2 + $0x40] sm:$0xff] %vm747, %v668
      %757 = vst.msk [vmem:[#allocation2 + $0x48] sm:$0xff] %vm747, %v670
      %758 = vst.msk [vmem:[#allocation2 + $0x50] sm:$0xff] %vm747, %v672
      %759 = vst.msk [vmem:[#allocation2 + $0x58] sm:$0xff] %vm747, %v674
      %760 = vst.msk [vmem:[#allocation2 + $0x60] sm:$0xff] %vm747, %v676
      %761 = vst.msk [vmem:[#allocation2 + $0x68] sm:$0xff] %vm747, %v678
      %762 = vst.msk [vmem:[#allocation2 + $0x70] sm:$0xff] %vm747, %v680
      %763 = vst.msk [vmem:[#allocation2 + $0x78] sm:$0xff] %vm747, %v682
      %764 = vst.msk [vmem:[#allocation2 + $0x80] sm:$0xff] %vm747, %v684
      %765 = vst.msk [vmem:[#allocation2 + $0x88] sm:$0xff] %vm747, %v686
      %766 = vst.msk [vmem:[#allocation2 + $0x90] sm:$0xff] %vm747, %v688
      %767 = vst.msk [vmem:[#allocation2 + $0x98] sm:$0xff] %vm747, %v690
      %768 = vst.msk [vmem:[#allocation2 + $0xa0] sm:$0xff] %vm747, %v692
      %769 = vst.msk [vmem:[#allocation2 + $0xa8] sm:$0xff] %vm747, %v694
      %770 = vst.msk [vmem:[#allocation2 + $0xb0] sm:$0xff] %vm747, %v696
      %771 = vst.msk [vmem:[#allocation2 + $0xb8] sm:$0xff] %vm747, %v698
      %772 = vst.msk [vmem:[#allocation2 + $0xc0] sm:$0xff] %vm747, %v700
      %773 = vst.msk [vmem:[#allocation2 + $0xc8] sm:$0xff] %vm747, %v702
      %774 = vst.msk [vmem:[#allocation2 + $0xd0] sm:$0xff] %vm747, %v704
      %775 = vst.msk [vmem:[#allocation2 + $0xd8] sm:$0xff] %vm747, %v706
      %776 = vst.msk [vmem:[#allocation2 + $0xe0] sm:$0xff] %vm747, %v708
      %777 = vst.msk [vmem:[#allocation2 + $0xe8] sm:$0xff] %vm747, %v710
      %778 = vst.msk [vmem:[#allocation2 + $0xf0] sm:$0xff] %vm747, %v712
      %779 = vst.msk [vmem:[#allocation2 + $0xf8] sm:$0xff] %vm747, %v714
      %782 = vrot.lane.b32.xlu0 %v228, 12
      %v783 = vpop.permute.xlu0 %782
      %784 = vrot.lane.b32.xlu0 %v229, 12
      %v785 = vpop.permute.xlu0 %784
      %786 = vrot.lane.b32.xlu0 %v231, 12
      %v787 = vpop.permute.xlu0 %786
      %788 = vrot.lane.b32.xlu0 %v232, 12
      %v789 = vpop.permute.xlu0 %788
      %790 = vrot.lane.b32.xlu0 %v234, 12
      %v791 = vpop.permute.xlu0 %790
      %792 = vrot.lane.b32.xlu0 %v235, 12
      %v793 = vpop.permute.xlu0 %792
      %794 = vrot.lane.b32.xlu0 %v237, 12
      %v795 = vpop.permute.xlu0 %794
      %796 = vrot.lane.b32.xlu0 %v238, 12
      %v797 = vpop.permute.xlu0 %796
      %798 = vrot.lane.b32.xlu0 %v240, 12
      %v799 = vpop.permute.xlu0 %798
      %800 = vrot.lane.b32.xlu0 %v241, 12
      %v801 = vpop.permute.xlu0 %800
      %802 = vrot.lane.b32.xlu0 %v243, 12
      %v803 = vpop.permute.xlu0 %802
      %804 = vrot.lane.b32.xlu0 %v244, 12
      %v805 = vpop.permute.xlu0 %804
      %806 = vrot.lane.b32.xlu0 %v246, 12
      %v807 = vpop.permute.xlu0 %806
      %808 = vrot.lane.b32.xlu0 %v247, 12
      %v809 = vpop.permute.xlu0 %808
      %810 = vrot.lane.b32.xlu0 %v249, 12
      %v811 = vpop.permute.xlu0 %810
      %812 = vrot.lane.b32.xlu0 %v250, 12
      %v813 = vpop.permute.xlu0 %812
      %814 = vrot.lane.b32.xlu0 %v252, 12
      %v815 = vpop.permute.xlu0 %814
      %816 = vrot.lane.b32.xlu0 %v253, 12
      %v817 = vpop.permute.xlu0 %816
      %818 = vrot.lane.b32.xlu0 %v255, 12
      %v819 = vpop.permute.xlu0 %818
      %820 = vrot.lane.b32.xlu0 %v256, 12
      %v821 = vpop.permute.xlu0 %820
      %822 = vrot.lane.b32.xlu0 %v258, 12
      %v823 = vpop.permute.xlu0 %822
      %824 = vrot.lane.b32.xlu0 %v259, 12
      %v825 = vpop.permute.xlu0 %824
      %826 = vrot.lane.b32.xlu0 %v261, 12
      %v827 = vpop.permute.xlu0 %826
      %828 = vrot.lane.b32.xlu0 %v262, 12
      %v829 = vpop.permute.xlu0 %828
      %830 = vrot.lane.b32.xlu0 %v264, 12
      %v831 = vpop.permute.xlu0 %830
      %832 = vrot.lane.b32.xlu0 %v265, 12
      %v833 = vpop.permute.xlu0 %832
      %834 = vrot.lane.b32.xlu0 %v267, 12
      %v835 = vpop.permute.xlu0 %834
      %836 = vrot.lane.b32.xlu0 %v268, 12
      %v837 = vpop.permute.xlu0 %836
      %838 = vrot.lane.b32.xlu0 %v270, 12
      %v839 = vpop.permute.xlu0 %838
      %840 = vrot.lane.b32.xlu0 %v271, 12
      %v841 = vpop.permute.xlu0 %840
      %842 = vrot.lane.b32.xlu0 %v273, 12
      %v843 = vpop.permute.xlu0 %842
      %844 = vrot.lane.b32.xlu0 %v274, 12
      %v845 = vpop.permute.xlu0 %844
      %vm878 = vcmask 130144
      %879 = vst.msk [vmem:[#allocation2] sm:$0xff] %vm878, %v783
      %880 = vst.msk [vmem:[#allocation2 + $0x8] sm:$0xff] %vm878, %v785
      %881 = vst.msk [vmem:[#allocation2 + $0x10] sm:$0xff] %vm878, %v787
      %882 = vst.msk [vmem:[#allocation2 + $0x18] sm:$0xff] %vm878, %v789
      %883 = vst.msk [vmem:[#allocation2 + $0x20] sm:$0xff] %vm878, %v791
      %884 = vst.msk [vmem:[#allocation2 + $0x28] sm:$0xff] %vm878, %v793
      %885 = vst.msk [vmem:[#allocation2 + $0x30] sm:$0xff] %vm878, %v795
      %886 = vst.msk [vmem:[#allocation2 + $0x38] sm:$0xff] %vm878, %v797
      %887 = vst.msk [vmem:[#allocation2 + $0x40] sm:$0xff] %vm878, %v799
      %888 = vst.msk [vmem:[#allocation2 + $0x48] sm:$0xff] %vm878, %v801
      %889 = vst.msk [vmem:[#allocation2 + $0x50] sm:$0xff] %vm878, %v803
      %890 = vst.msk [vmem:[#allocation2 + $0x58] sm:$0xff] %vm878, %v805
      %891 = vst.msk [vmem:[#allocation2 + $0x60] sm:$0xff] %vm878, %v807
      %892 = vst.msk [vmem:[#allocation2 + $0x68] sm:$0xff] %vm878, %v809
      %893 = vst.msk [vmem:[#allocation2 + $0x70] sm:$0xff] %vm878, %v811
      %894 = vst.msk [vmem:[#allocation2 + $0x78] sm:$0xff] %vm878, %v813
      %895 = vst.msk [vmem:[#allocation2 + $0x80] sm:$0xff] %vm878, %v815
      %896 = vst.msk [vmem:[#allocation2 + $0x88] sm:$0xff] %vm878, %v817
      %897 = vst.msk [vmem:[#allocation2 + $0x90] sm:$0xff] %vm878, %v819
      %898 = vst.msk [vmem:[#allocation2 + $0x98] sm:$0xff] %vm878, %v821
      %899 = vst.msk [vmem:[#allocation2 + $0xa0] sm:$0xff] %vm878, %v823
      %900 = vst.msk [vmem:[#allocation2 + $0xa8] sm:$0xff] %vm878, %v825
      %901 = vst.msk [vmem:[#allocation2 + $0xb0] sm:$0xff] %vm878, %v827
      %902 = vst.msk [vmem:[#allocation2 + $0xb8] sm:$0xff] %vm878, %v829
      %903 = vst.msk [vmem:[#allocation2 + $0xc0] sm:$0xff] %vm878, %v831
      %904 = vst.msk [vmem:[#allocation2 + $0xc8] sm:$0xff] %vm878, %v833
      %905 = vst.msk [vmem:[#allocation2 + $0xd0] sm:$0xff] %vm878, %v835
      %906 = vst.msk [vmem:[#allocation2 + $0xd8] sm:$0xff] %vm878, %v837
      %907 = vst.msk [vmem:[#allocation2 + $0xe0] sm:$0xff] %vm878, %v839
      %908 = vst.msk [vmem:[#allocation2 + $0xe8] sm:$0xff] %vm878, %v841
      %909 = vst.msk [vmem:[#allocation2 + $0xf0] sm:$0xff] %vm878, %v843
      %910 = vst.msk [vmem:[#allocation2 + $0xf8] sm:$0xff] %vm878, %v845
      %v912 = vrot.slane %v273, 1
      %v913 = vrot.slane %v274, 1
      %v914 = vsel %vm360, %v912, %v913
      %v915 = vrot.slane %v275, 1
      %v916 = vsel %vm360, %v913, %v915
      %917 = vrot.lane.b32.xlu0 %v368, 16
      %v918 = vpop.permute.xlu0 %917
      %919 = vrot.lane.b32.xlu0 %v370, 16
      %v920 = vpop.permute.xlu0 %919
      %921 = vrot.lane.b32.xlu0 %v373, 16
      %v922 = vpop.permute.xlu0 %921
      %923 = vrot.lane.b32.xlu0 %v375, 16
      %v924 = vpop.permute.xlu0 %923
      %925 = vrot.lane.b32.xlu0 %v378, 16
      %v926 = vpop.permute.xlu0 %925
      %927 = vrot.lane.b32.xlu0 %v380, 16
      %v928 = vpop.permute.xlu0 %927
      %929 = vrot.lane.b32.xlu0 %v383, 16
      %v930 = vpop.permute.xlu0 %929
      %931 = vrot.lane.b32.xlu0 %v385, 16
      %v932 = vpop.permute.xlu0 %931
      %933 = vrot.lane.b32.xlu0 %v388, 16
      %v934 = vpop.permute.xlu0 %933
      %935 = vrot.lane.b32.xlu0 %v390, 16
      %v936 = vpop.permute.xlu0 %935
      %937 = vrot.lane.b32.xlu0 %v393, 16
      %v938 = vpop.permute.xlu0 %937
      %939 = vrot.lane.b32.xlu0 %v395, 16
      %v940 = vpop.permute.xlu0 %939
      %941 = vrot.lane.b32.xlu0 %v398, 16
      %v942 = vpop.permute.xlu0 %941
      %943 = vrot.lane.b32.xlu0 %v400, 16
      %v944 = vpop.permute.xlu0 %943
      %945 = vrot.lane.b32.xlu0 %v403, 16
      %v946 = vpop.permute.xlu0 %945
      %947 = vrot.lane.b32.xlu0 %v405, 16
      %v948 = vpop.permute.xlu0 %947
      %949 = vrot.lane.b32.xlu0 %v408, 16
      %v950 = vpop.permute.xlu0 %949
      %951 = vrot.lane.b32.xlu0 %v410, 16
      %v952 = vpop.permute.xlu0 %951
      %953 = vrot.lane.b32.xlu0 %v413, 16
      %v954 = vpop.permute.xlu0 %953
      %955 = vrot.lane.b32.xlu0 %v415, 16
      %v956 = vpop.permute.xlu0 %955
      %957 = vrot.lane.b32.xlu0 %v418, 16
      %v958 = vpop.permute.xlu0 %957
      %959 = vrot.lane.b32.xlu0 %v420, 16
      %v960 = vpop.permute.xlu0 %959
      %961 = vrot.lane.b32.xlu0 %v423, 16
      %v962 = vpop.permute.xlu0 %961
      %963 = vrot.lane.b32.xlu0 %v425, 16
      %v964 = vpop.permute.xlu0 %963
      %965 = vrot.lane.b32.xlu0 %v428, 16
      %v966 = vpop.permute.xlu0 %965
      %967 = vrot.lane.b32.xlu0 %v430, 16
      %v968 = vpop.permute.xlu0 %967
      %969 = vrot.lane.b32.xlu0 %v433, 16
      %v970 = vpop.permute.xlu0 %969
      %971 = vrot.lane.b32.xlu0 %v435, 16
      %v972 = vpop.permute.xlu0 %971
      %973 = vrot.lane.b32.xlu0 %v438, 16
      %v974 = vpop.permute.xlu0 %973
      %975 = vrot.lane.b32.xlu0 %v440, 16
      %v976 = vpop.permute.xlu0 %975
      %977 = vrot.lane.b32.xlu0 %v914, 16
      %v978 = vpop.permute.xlu0 %977
      %979 = vrot.lane.b32.xlu0 %v916, 16
      %v980 = vpop.permute.xlu0 %979
      %vm1013 = vcmask 162944
      %1014 = vst.msk [vmem:[#allocation2] sm:$0xff] %vm1013, %v918
      %1015 = vst.msk [vmem:[#allocation2 + $0x8] sm:$0xff] %vm1013, %v920
      %1016 = vst.msk [vmem:[#allocation2 + $0x10] sm:$0xff] %vm1013, %v922
      %1017 = vst.msk [vmem:[#allocation2 + $0x18] sm:$0xff] %vm1013, %v924
      %1018 = vst.msk [vmem:[#allocation2 + $0x20] sm:$0xff] %vm1013, %v926
      %1019 = vst.msk [vmem:[#allocation2 + $0x28] sm:$0xff] %vm1013, %v928
      %1020 = vst.msk [vmem:[#allocation2 + $0x30] sm:$0xff] %vm1013, %v930
      %1021 = vst.msk [vmem:[#allocation2 + $0x38] sm:$0xff] %vm1013, %v932
      %1022 = vst.msk [vmem:[#allocation2 + $0x40] sm:$0xff] %vm1013, %v934
      %1023 = vst.msk [vmem:[#allocation2 + $0x48] sm:$0xff] %vm1013, %v936
      %1024 = vst.msk [vmem:[#allocation2 + $0x50] sm:$0xff] %vm1013, %v938
      %1025 = vst.msk [vmem:[#allocation2 + $0x58] sm:$0xff] %vm1013, %v940
      %1026 = vst.msk [vmem:[#allocation2 + $0x60] sm:$0xff] %vm1013, %v942
      %1027 = vst.msk [vmem:[#allocation2 + $0x68] sm:$0xff] %vm1013, %v944
      %1028 = vst.msk [vmem:[#allocation2 + $0x70] sm:$0xff] %vm1013, %v946
      %1029 = vst.msk [vmem:[#allocation2 + $0x78] sm:$0xff] %vm1013, %v948
      %1030 = vst.msk [vmem:[#allocation2 + $0x80] sm:$0xff] %vm1013, %v950
      %1031 = vst.msk [vmem:[#allocation2 + $0x88] sm:$0xff] %vm1013, %v952
      %1032 = vst.msk [vmem:[#allocation2 + $0x90] sm:$0xff] %vm1013, %v954
      %1033 = vst.msk [vmem:[#allocation2 + $0x98] sm:$0xff] %vm1013, %v956
      %1034 = vst.msk [vmem:[#allocation2 + $0xa0] sm:$0xff] %vm1013, %v958
      %1035 = vst.msk [vmem:[#allocation2 + $0xa8] sm:$0xff] %vm1013, %v960
      %1036 = vst.msk [vmem:[#allocation2 + $0xb0] sm:$0xff] %vm1013, %v962
      %1037 = vst.msk [vmem:[#allocation2 + $0xb8] sm:$0xff] %vm1013, %v964
      %1038 = vst.msk [vmem:[#allocation2 + $0xc0] sm:$0xff] %vm1013, %v966
      %1039 = vst.msk [vmem:[#allocation2 + $0xc8] sm:$0xff] %vm1013, %v968
      %1040 = vst.msk [vmem:[#allocation2 + $0xd0] sm:$0xff] %vm1013, %v970
      %1041 = vst.msk [vmem:[#allocation2 + $0xd8] sm:$0xff] %vm1013, %v972
      %1042 = vst.msk [vmem:[#allocation2 + $0xe0] sm:$0xff] %vm1013, %v974
      %1043 = vst.msk [vmem:[#allocation2 + $0xe8] sm:$0xff] %vm1013, %v976
      %1044 = vst.msk [vmem:[#allocation2 + $0xf0] sm:$0xff] %vm1013, %v978
      %1045 = vst.msk [vmem:[#allocation2 + $0xf8] sm:$0xff] %vm1013, %v980
      %v1046 = vrot.slane %v273, 2
      %v1047 = vrot.slane %v274, 2
      %v1048 = vsel %vm570, %v1046, %v1047
      %v1049 = vrot.slane %v275, 2
      %v1050 = vsel %vm570, %v1047, %v1049
      %1051 = vrot.lane.b32.xlu0 %v578, 20
      %v1052 = vpop.permute.xlu0 %1051
      %1053 = vrot.lane.b32.xlu0 %v580, 20
      %v1054 = vpop.permute.xlu0 %1053
      %1055 = vrot.lane.b32.xlu0 %v583, 20
      %v1056 = vpop.permute.xlu0 %1055
      %1057 = vrot.lane.b32.xlu0 %v585, 20
      %v1058 = vpop.permute.xlu0 %1057
      %1059 = vrot.lane.b32.xlu0 %v588, 20
      %v1060 = vpop.permute.xlu0 %1059
      %1061 = vrot.lane.b32.xlu0 %v590, 20
      %v1062 = vpop.permute.xlu0 %1061
      %1063 = vrot.lane.b32.xlu0 %v593, 20
      %v1064 = vpop.permute.xlu0 %1063
      %1065 = vrot.lane.b32.xlu0 %v595, 20
      %v1066 = vpop.permute.xlu0 %1065
      %1067 = vrot.lane.b32.xlu0 %v598, 20
      %v1068 = vpop.permute.xlu0 %1067
      %1069 = vrot.lane.b32.xlu0 %v600, 20
      %v1070 = vpop.permute.xlu0 %1069
      %1071 = vrot.lane.b32.xlu0 %v603, 20
      %v1072 = vpop.permute.xlu0 %1071
      %1073 = vrot.lane.b32.xlu0 %v605, 20
      %v1074 = vpop.permute.xlu0 %1073
      %1075 = vrot.lane.b32.xlu0 %v608, 20
      %v1076 = vpop.permute.xlu0 %1075
      %1077 = vrot.lane.b32.xlu0 %v610, 20
      %v1078 = vpop.permute.xlu0 %1077
      %1079 = vrot.lane.b32.xlu0 %v613, 20
      %v1080 = vpop.permute.xlu0 %1079
      %1081 = vrot.lane.b32.xlu0 %v615, 20
      %v1082 = vpop.permute.xlu0 %1081
      %1083 = vrot.lane.b32.xlu0 %v618, 20
      %v1084 = vpop.permute.xlu0 %1083
      %1085 = vrot.lane.b32.xlu0 %v620, 20
      %v1086 = vpop.permute.xlu0 %1085
      %1087 = vrot.lane.b32.xlu0 %v623, 20
      %v1088 = vpop.permute.xlu0 %1087
      %1089 = vrot.lane.b32.xlu0 %v625, 20
      %v1090 = vpop.permute.xlu0 %1089
      %1091 = vrot.lane.b32.xlu0 %v628, 20
      %v1092 = vpop.permute.xlu0 %1091
      %1093 = vrot.lane.b32.xlu0 %v630, 20
      %v1094 = vpop.permute.xlu0 %1093
      %1095 = vrot.lane.b32.xlu0 %v633, 20
      %v1096 = vpop.permute.xlu0 %1095
      %1097 = vrot.lane.b32.xlu0 %v635, 20
      %v1098 = vpop.permute.xlu0 %1097
      %1099 = vrot.lane.b32.xlu0 %v638, 20
      %v1100 = vpop.permute.xlu0 %1099
      %1101 = vrot.lane.b32.xlu0 %v640, 20
      %v1102 = vpop.permute.xlu0 %1101
      %1103 = vrot.lane.b32.xlu0 %v643, 20
      %v1104 = vpop.permute.xlu0 %1103
      %1105 = vrot.lane.b32.xlu0 %v645, 20
      %v1106 = vpop.permute.xlu0 %1105
      %1107 = vrot.lane.b32.xlu0 %v648, 20
      %v1108 = vpop.permute.xlu0 %1107
      %1109 = vrot.lane.b32.xlu0 %v650, 20
      %v1110 = vpop.permute.xlu0 %1109
      %1111 = vrot.lane.b32.xlu0 %v1048, 20
      %v1112 = vpop.permute.xlu0 %1111
      %1113 = vrot.lane.b32.xlu0 %v1050, 20
      %v1114 = vpop.permute.xlu0 %1113
      %vm1147 = vcmask 195744
      %1148 = vst.msk [vmem:[#allocation2] sm:$0xff] %vm1147, %v1052
      %1149 = vst.msk [vmem:[#allocation2 + $0x8] sm:$0xff] %vm1147, %v1054
      %1150 = vst.msk [vmem:[#allocation2 + $0x10] sm:$0xff] %vm1147, %v1056
      %1151 = vst.msk [vmem:[#allocation2 + $0x18] sm:$0xff] %vm1147, %v1058
      %1152 = vst.msk [vmem:[#allocation2 + $0x20] sm:$0xff] %vm1147, %v1060
      %1153 = vst.msk [vmem:[#allocation2 + $0x28] sm:$0xff] %vm1147, %v1062
      %1154 = vst.msk [vmem:[#allocation2 + $0x30] sm:$0xff] %vm1147, %v1064
      %1155 = vst.msk [vmem:[#allocation2 + $0x38] sm:$0xff] %vm1147, %v1066
      %1156 = vst.msk [vmem:[#allocation2 + $0x40] sm:$0xff] %vm1147, %v1068
      %1157 = vst.msk [vmem:[#allocation2 + $0x48] sm:$0xff] %vm1147, %v1070
      %1158 = vst.msk [vmem:[#allocation2 + $0x50] sm:$0xff] %vm1147, %v1072
      %1159 = vst.msk [vmem:[#allocation2 + $0x58] sm:$0xff] %vm1147, %v1074
      %1160 = vst.msk [vmem:[#allocation2 + $0x60] sm:$0xff] %vm1147, %v1076
      %1161 = vst.msk [vmem:[#allocation2 + $0x68] sm:$0xff] %vm1147, %v1078
      %1162 = vst.msk [vmem:[#allocation2 + $0x70] sm:$0xff] %vm1147, %v1080
      %1163 = vst.msk [vmem:[#allocation2 + $0x78] sm:$0xff] %vm1147, %v1082
      %1164 = vst.msk [vmem:[#allocation2 + $0x80] sm:$0xff] %vm1147, %v1084
      %1165 = vst.msk [vmem:[#allocation2 + $0x88] sm:$0xff] %vm1147, %v1086
      %1166 = vst.msk [vmem:[#allocation2 + $0x90] sm:$0xff] %vm1147, %v1088
      %1167 = vst.msk [vmem:[#allocation2 + $0x98] sm:$0xff] %vm1147, %v1090
      %1168 = vst.msk [vmem:[#allocation2 + $0xa0] sm:$0xff] %vm1147, %v1092
      %1169 = vst.msk [vmem:[#allocation2 + $0xa8] sm:$0xff] %vm1147, %v1094
      %1170 = vst.msk [vmem:[#allocation2 + $0xb0] sm:$0xff] %vm1147, %v1096
      %1171 = vst.msk [vmem:[#allocation2 + $0xb8] sm:$0xff] %vm1147, %v1098
      %1172 = vst.msk [vmem:[#allocation2 + $0xc0] sm:$0xff] %vm1147, %v1100
      %1173 = vst.msk [vmem:[#allocation2 + $0xc8] sm:$0xff] %vm1147, %v1102
      %1174 = vst.msk [vmem:[#allocation2 + $0xd0] sm:$0xff] %vm1147, %v1104
      %1175 = vst.msk [vmem:[#allocation2 + $0xd8] sm:$0xff] %vm1147, %v1106
      %1176 = vst.msk [vmem:[#allocation2 + $0xe0] sm:$0xff] %vm1147, %v1108
      %1177 = vst.msk [vmem:[#allocation2 + $0xe8] sm:$0xff] %vm1147, %v1110
      %1178 = vst.msk [vmem:[#allocation2 + $0xf0] sm:$0xff] %vm1147, %v1112
      %1179 = vst.msk [vmem:[#allocation2 + $0xf8] sm:$0xff] %vm1147, %v1114
      %1182 = vrot.lane.b32.xlu0 %v231, 24
      %v1183 = vpop.permute.xlu0 %1182
      %1184 = vrot.lane.b32.xlu0 %v232, 24
      %v1185 = vpop.permute.xlu0 %1184
      %1186 = vrot.lane.b32.xlu0 %v234, 24
      %v1187 = vpop.permute.xlu0 %1186
      %1188 = vrot.lane.b32.xlu0 %v235, 24
      %v1189 = vpop.permute.xlu0 %1188
      %1190 = vrot.lane.b32.xlu0 %v237, 24
      %v1191 = vpop.permute.xlu0 %1190
      %1192 = vrot.lane.b32.xlu0 %v238, 24
      %v1193 = vpop.permute.xlu0 %1192
      %1194 = vrot.lane.b32.xlu0 %v240, 24
      %v1195 = vpop.permute.xlu0 %1194
      %1196 = vrot.lane.b32.xlu0 %v241, 24
      %v1197 = vpop.permute.xlu0 %1196
      %1198 = vrot.lane.b32.xlu0 %v243, 24
      %v1199 = vpop.permute.xlu0 %1198
      %1200 = vrot.lane.b32.xlu0 %v244, 24
      %v1201 = vpop.permute.xlu0 %1200
      %1202 = vrot.lane.b32.xlu0 %v246, 24
      %v1203 = vpop.permute.xlu0 %1202
      %1204 = vrot.lane.b32.xlu0 %v247, 24
      %v1205 = vpop.permute.xlu0 %1204
      %1206 = vrot.lane.b32.xlu0 %v249, 24
      %v1207 = vpop.permute.xlu0 %1206
      %1208 = vrot.lane.b32.xlu0 %v250, 24
      %v1209 = vpop.permute.xlu0 %1208
      %1210 = vrot.lane.b32.xlu0 %v252, 24
      %v1211 = vpop.permute.xlu0 %1210
      %1212 = vrot.lane.b32.xlu0 %v253, 24
      %v1213 = vpop.permute.xlu0 %1212
      %1214 = vrot.lane.b32.xlu0 %v255, 24
      %v1215 = vpop.permute.xlu0 %1214
      %1216 = vrot.lane.b32.xlu0 %v256, 24
      %v1217 = vpop.permute.xlu0 %1216
      %1218 = vrot.lane.b32.xlu0 %v258, 24
      %v1219 = vpop.permute.xlu0 %1218
      %1220 = vrot.lane.b32.xlu0 %v259, 24
      %v1221 = vpop.permute.xlu0 %1220
      %1222 = vrot.lane.b32.xlu0 %v261, 24
      %v1223 = vpop.permute.xlu0 %1222
      %1224 = vrot.lane.b32.xlu0 %v262, 24
      %v1225 = vpop.permute.xlu0 %1224
      %1226 = vrot.lane.b32.xlu0 %v264, 24
      %v1227 = vpop.permute.xlu0 %1226
      %1228 = vrot.lane.b32.xlu0 %v265, 24
      %v1229 = vpop.permute.xlu0 %1228
      %1230 = vrot.lane.b32.xlu0 %v267, 24
      %v1231 = vpop.permute.xlu0 %1230
      %1232 = vrot.lane.b32.xlu0 %v268, 24
      %v1233 = vpop.permute.xlu0 %1232
      %1234 = vrot.lane.b32.xlu0 %v270, 24
      %v1235 = vpop.permute.xlu0 %1234
      %1236 = vrot.lane.b32.xlu0 %v271, 24
      %v1237 = vpop.permute.xlu0 %1236
      %1238 = vrot.lane.b32.xlu0 %v273, 24
      %v1239 = vpop.permute.xlu0 %1238
      %1240 = vrot.lane.b32.xlu0 %v274, 24
      %v1241 = vpop.permute.xlu0 %1240
      %1242 = vrot.lane.b32.xlu0 %v276, 24
      %v1243 = vpop.permute.xlu0 %1242
      %1244 = vrot.lane.b32.xlu0 %v277, 24
      %v1245 = vpop.permute.xlu0 %1244
      %vm1278 = vcmask 228544
      %1279 = vst.msk [vmem:[#allocation2] sm:$0xff] %vm1278, %v1183
      %1280 = vst.msk [vmem:[#allocation2 + $0x8] sm:$0xff] %vm1278, %v1185
      %1281 = vst.msk [vmem:[#allocation2 + $0x10] sm:$0xff] %vm1278, %v1187
      %1282 = vst.msk [vmem:[#allocation2 + $0x18] sm:$0xff] %vm1278, %v1189
      %1283 = vst.msk [vmem:[#allocation2 + $0x20] sm:$0xff] %vm1278, %v1191
      %1284 = vst.msk [vmem:[#allocation2 + $0x28] sm:$0xff] %vm1278, %v1193
      %1285 = vst.msk [vmem:[#allocation2 + $0x30] sm:$0xff] %vm1278, %v1195
      %1286 = vst.msk [vmem:[#allocation2 + $0x38] sm:$0xff] %vm1278, %v1197
      %1287 = vst.msk [vmem:[#allocation2 + $0x40] sm:$0xff] %vm1278, %v1199
      %1288 = vst.msk [vmem:[#allocation2 + $0x48] sm:$0xff] %vm1278, %v1201
      %1289 = vst.msk [vmem:[#allocation2 + $0x50] sm:$0xff] %vm1278, %v1203
      %1290 = vst.msk [vmem:[#allocation2 + $0x58] sm:$0xff] %vm1278, %v1205
      %1291 = vst.msk [vmem:[#allocation2 + $0x60] sm:$0xff] %vm1278, %v1207
      %1292 = vst.msk [vmem:[#allocation2 + $0x68] sm:$0xff] %vm1278, %v1209
      %1293 = vst.msk [vmem:[#allocation2 + $0x70] sm:$0xff] %vm1278, %v1211
      %1294 = vst.msk [vmem:[#allocation2 + $0x78] sm:$0xff] %vm1278, %v1213
      %1295 = vst.msk [vmem:[#allocation2 + $0x80] sm:$0xff] %vm1278, %v1215
      %1296 = vst.msk [vmem:[#allocation2 + $0x88] sm:$0xff] %vm1278, %v1217
      %1297 = vst.msk [vmem:[#allocation2 + $0x90] sm:$0xff] %vm1278, %v1219
      %1298 = vst.msk [vmem:[#allocation2 + $0x98] sm:$0xff] %vm1278, %v1221
      %1299 = vst.msk [vmem:[#allocation2 + $0xa0] sm:$0xff] %vm1278, %v1223
      %1300 = vst.msk [vmem:[#allocation2 + $0xa8] sm:$0xff] %vm1278, %v1225
      %1301 = vst.msk [vmem:[#allocation2 + $0xb0] sm:$0xff] %vm1278, %v1227
      %1302 = vst.msk [vmem:[#allocation2 + $0xb8] sm:$0xff] %vm1278, %v1229
      %1303 = vst.msk [vmem:[#allocation2 + $0xc0] sm:$0xff] %vm1278, %v1231
      %1304 = vst.msk [vmem:[#allocation2 + $0xc8] sm:$0xff] %vm1278, %v1233
      %1305 = vst.msk [vmem:[#allocation2 + $0xd0] sm:$0xff] %vm1278, %v1235
      %1306 = vst.msk [vmem:[#allocation2 + $0xd8] sm:$0xff] %vm1278, %v1237
      %1307 = vst.msk [vmem:[#allocation2 + $0xe0] sm:$0xff] %vm1278, %v1239
      %1308 = vst.msk [vmem:[#allocation2 + $0xe8] sm:$0xff] %vm1278, %v1241
      %1309 = vst.msk [vmem:[#allocation2 + $0xf0] sm:$0xff] %vm1278, %v1243
      %1310 = vst.msk [vmem:[#allocation2 + $0xf8] sm:$0xff] %vm1278, %v1245
      %v1312 = vrot.slane %v276, 1
      %v1313 = vrot.slane %v277, 1
      %v1314 = vsel %vm360, %v1312, %v1313
      %v1315 = vrot.slane %v278, 1
      %v1316 = vsel %vm360, %v1313, %v1315
      %1317 = vrot.lane.b32.xlu0 %v373, 28
      %v1318 = vpop.permute.xlu0 %1317
      %1319 = vrot.lane.b32.xlu0 %v375, 28
      %v1320 = vpop.permute.xlu0 %1319
      %1321 = vrot.lane.b32.xlu0 %v378, 28
      %v1322 = vpop.permute.xlu0 %1321
      %1323 = vrot.lane.b32.xlu0 %v380, 28
      %v1324 = vpop.permute.xlu0 %1323
      %1325 = vrot.lane.b32.xlu0 %v383, 28
      %v1326 = vpop.permute.xlu0 %1325
      %1327 = vrot.lane.b32.xlu0 %v385, 28
      %v1328 = vpop.permute.xlu0 %1327
      %1329 = vrot.lane.b32.xlu0 %v388, 28
      %v1330 = vpop.permute.xlu0 %1329
      %1331 = vrot.lane.b32.xlu0 %v390, 28
      %v1332 = vpop.permute.xlu0 %1331
      %1333 = vrot.lane.b32.xlu0 %v393, 28
      %v1334 = vpop.permute.xlu0 %1333
      %1335 = vrot.lane.b32.xlu0 %v395, 28
      %v1336 = vpop.permute.xlu0 %1335
      %1337 = vrot.lane.b32.xlu0 %v398, 28
      %v1338 = vpop.permute.xlu0 %1337
      %1339 = vrot.lane.b32.xlu0 %v400, 28
      %v1340 = vpop.permute.xlu0 %1339
      %1341 = vrot.lane.b32.xlu0 %v403, 28
      %v1342 = vpop.permute.xlu0 %1341
      %1343 = vrot.lane.b32.xlu0 %v405, 28
      %v1344 = vpop.permute.xlu0 %1343
      %1345 = vrot.lane.b32.xlu0 %v408, 28
      %v1346 = vpop.permute.xlu0 %1345
      %1347 = vrot.lane.b32.xlu0 %v410, 28
      %v1348 = vpop.permute.xlu0 %1347
      %1349 = vrot.lane.b32.xlu0 %v413, 28
      %v1350 = vpop.permute.xlu0 %1349
      %1351 = vrot.lane.b32.xlu0 %v415, 28
      %v1352 = vpop.permute.xlu0 %1351
      %1353 = vrot.lane.b32.xlu0 %v418, 28
      %v1354 = vpop.permute.xlu0 %1353
      %1355 = vrot.lane.b32.xlu0 %v420, 28
      %v1356 = vpop.permute.xlu0 %1355
      %1357 = vrot.lane.b32.xlu0 %v423, 28
      %v1358 = vpop.permute.xlu0 %1357
      %1359 = vrot.lane.b32.xlu0 %v425, 28
      %v1360 = vpop.permute.xlu0 %1359
      %1361 = vrot.lane.b32.xlu0 %v428, 28
      %v1362 = vpop.permute.xlu0 %1361
      %1363 = vrot.lane.b32.xlu0 %v430, 28
      %v1364 = vpop.permute.xlu0 %1363
      %1365 = vrot.lane.b32.xlu0 %v433, 28
      %v1366 = vpop.permute.xlu0 %1365
      %1367 = vrot.lane.b32.xlu0 %v435, 28
      %v1368 = vpop.permute.xlu0 %1367
      %1369 = vrot.lane.b32.xlu0 %v438, 28
      %v1370 = vpop.permute.xlu0 %1369
      %1371 = vrot.lane.b32.xlu0 %v440, 28
      %v1372 = vpop.permute.xlu0 %1371
      %1373 = vrot.lane.b32.xlu0 %v914, 28
      %v1374 = vpop.permute.xlu0 %1373
      %1375 = vrot.lane.b32.xlu0 %v916, 28
      %v1376 = vpop.permute.xlu0 %1375
      %1377 = vrot.lane.b32.xlu0 %v1314, 28
      %v1378 = vpop.permute.xlu0 %1377
      %1379 = vrot.lane.b32.xlu0 %v1316, 28
      %v1380 = vpop.permute.xlu0 %1379
      %vm1413 = vcmask 261344
      %1414 = vst.msk [vmem:[#allocation2] sm:$0xff] %vm1413, %v1318
      %1415 = vst.msk [vmem:[#allocation2 + $0x8] sm:$0xff] %vm1413, %v1320
      %1416 = vst.msk [vmem:[#allocation2 + $0x10] sm:$0xff] %vm1413, %v1322
      %1417 = vst.msk [vmem:[#allocation2 + $0x18] sm:$0xff] %vm1413, %v1324
      %1418 = vst.msk [vmem:[#allocation2 + $0x20] sm:$0xff] %vm1413, %v1326
      %1419 = vst.msk [vmem:[#allocation2 + $0x28] sm:$0xff] %vm1413, %v1328
      %1420 = vst.msk [vmem:[#allocation2 + $0x30] sm:$0xff] %vm1413, %v1330
      %1421 = vst.msk [vmem:[#allocation2 + $0x38] sm:$0xff] %vm1413, %v1332
      %1422 = vst.msk [vmem:[#allocation2 + $0x40] sm:$0xff] %vm1413, %v1334
      %1423 = vst.msk [vmem:[#allocation2 + $0x48] sm:$0xff] %vm1413, %v1336
      %1424 = vst.msk [vmem:[#allocation2 + $0x50] sm:$0xff] %vm1413, %v1338
      %1425 = vst.msk [vmem:[#allocation2 + $0x58] sm:$0xff] %vm1413, %v1340
      %1426 = vst.msk [vmem:[#allocation2 + $0x60] sm:$0xff] %vm1413, %v1342
      %1427 = vst.msk [vmem:[#allocation2 + $0x68] sm:$0xff] %vm1413, %v1344
      %1428 = vst.msk [vmem:[#allocation2 + $0x70] sm:$0xff] %vm1413, %v1346
      %1429 = vst.msk [vmem:[#allocation2 + $0x78] sm:$0xff] %vm1413, %v1348
      %1430 = vst.msk [vmem:[#allocation2 + $0x80] sm:$0xff] %vm1413, %v1350
      %1431 = vst.msk [vmem:[#allocation2 + $0x88] sm:$0xff] %vm1413, %v1352
      %1432 = vst.msk [vmem:[#allocation2 + $0x90] sm:$0xff] %vm1413, %v1354
      %1433 = vst.msk [vmem:[#allocation2 + $0x98] sm:$0xff] %vm1413, %v1356
      %1434 = vst.msk [vmem:[#allocation2 + $0xa0] sm:$0xff] %vm1413, %v1358
      %1435 = vst.msk [vmem:[#allocation2 + $0xa8] sm:$0xff] %vm1413, %v1360
      %1436 = vst.msk [vmem:[#allocation2 + $0xb0] sm:$0xff] %vm1413, %v1362
      %1437 = vst.msk [vmem:[#allocation2 + $0xb8] sm:$0xff] %vm1413, %v1364
      %1438 = vst.msk [vmem:[#allocation2 + $0xc0] sm:$0xff] %vm1413, %v1366
      %1439 = vst.msk [vmem:[#allocation2 + $0xc8] sm:$0xff] %vm1413, %v1368
      %1440 = vst.msk [vmem:[#allocation2 + $0xd0] sm:$0xff] %vm1413, %v1370
      %1441 = vst.msk [vmem:[#allocation2 + $0xd8] sm:$0xff] %vm1413, %v1372
      %1442 = vst.msk [vmem:[#allocation2 + $0xe0] sm:$0xff] %vm1413, %v1374
      %1443 = vst.msk [vmem:[#allocation2 + $0xe8] sm:$0xff] %vm1413, %v1376
      %1444 = vst.msk [vmem:[#allocation2 + $0xf0] sm:$0xff] %vm1413, %v1378
      %1445 = vst.msk [vmem:[#allocation2 + $0xf8] sm:$0xff] %vm1413, %v1380
      %v1446 = vrot.slane %v276, 2
      %v1447 = vrot.slane %v277, 2
      %v1448 = vsel %vm570, %v1446, %v1447
      %v1449 = vrot.slane %v278, 2
      %v1450 = vsel %vm570, %v1447, %v1449
      %1451 = vrot.lane.b32.xlu0 %v583, 32
      %v1452 = vpop.permute.xlu0 %1451
      %1453 = vrot.lane.b32.xlu0 %v585, 32
      %v1454 = vpop.permute.xlu0 %1453
      %1455 = vrot.lane.b32.xlu0 %v588, 32
      %v1456 = vpop.permute.xlu0 %1455
      %1457 = vrot.lane.b32.xlu0 %v590, 32
      %v1458 = vpop.permute.xlu0 %1457
      %1459 = vrot.lane.b32.xlu0 %v593, 32
      %v1460 = vpop.permute.xlu0 %1459
      %1461 = vrot.lane.b32.xlu0 %v595, 32
      %v1462 = vpop.permute.xlu0 %1461
      %1463 = vrot.lane.b32.xlu0 %v598, 32
      %v1464 = vpop.permute.xlu0 %1463
      %1465 = vrot.lane.b32.xlu0 %v600, 32
      %v1466 = vpop.permute.xlu0 %1465
      %1467 = vrot.lane.b32.xlu0 %v603, 32
      %v1468 = vpop.permute.xlu0 %1467
      %1469 = vrot.lane.b32.xlu0 %v605, 32
      %v1470 = vpop.permute.xlu0 %1469
      %1471 = vrot.lane.b32.xlu0 %v608, 32
      %v1472 = vpop.permute.xlu0 %1471
      %1473 = vrot.lane.b32.xlu0 %v610, 32
      %v1474 = vpop.permute.xlu0 %1473
      %1475 = vrot.lane.b32.xlu0 %v613, 32
      %v1476 = vpop.permute.xlu0 %1475
      %1477 = vrot.lane.b32.xlu0 %v615, 32
      %v1478 = vpop.permute.xlu0 %1477
      %1479 = vrot.lane.b32.xlu0 %v618, 32
      %v1480 = vpop.permute.xlu0 %1479
      %1481 = vrot.lane.b32.xlu0 %v620, 32
      %v1482 = vpop.permute.xlu0 %1481
      %1483 = vrot.lane.b32.xlu0 %v623, 32
      %v1484 = vpop.permute.xlu0 %1483
      %1485 = vrot.lane.b32.xlu0 %v625, 32
      %v1486 = vpop.permute.xlu0 %1485
      %1487 = vrot.lane.b32.xlu0 %v628, 32
      %v1488 = vpop.permute.xlu0 %1487
      %1489 = vrot.lane.b32.xlu0 %v630, 32
      %v1490 = vpop.permute.xlu0 %1489
      %1491 = vrot.lane.b32.xlu0 %v633, 32
      %v1492 = vpop.permute.xlu0 %1491
      %1493 = vrot.lane.b32.xlu0 %v635, 32
      %v1494 = vpop.permute.xlu0 %1493
      %1495 = vrot.lane.b32.xlu0 %v638, 32
      %v1496 = vpop.permute.xlu0 %1495
      %1497 = vrot.lane.b32.xlu0 %v640, 32
      %v1498 = vpop.permute.xlu0 %1497
      %1499 = vrot.lane.b32.xlu0 %v643, 32
      %v1500 = vpop.permute.xlu0 %1499
      %1501 = vrot.lane.b32.xlu0 %v645, 32
      %v1502 = vpop.permute.xlu0 %1501
      %1503 = vrot.lane.b32.xlu0 %v648, 32
      %v1504 = vpop.permute.xlu0 %1503
      %1505 = vrot.lane.b32.xlu0 %v650, 32
      %v1506 = vpop.permute.xlu0 %1505
      %1507 = vrot.lane.b32.xlu0 %v1048, 32
      %v1508 = vpop.permute.xlu0 %1507
      %1509 = vrot.lane.b32.xlu0 %v1050, 32
      %v1510 = vpop.permute.xlu0 %1509
      %1511 = vrot.lane.b32.xlu0 %v1448, 32
      %v1512 = vpop.permute.xlu0 %1511
      %1513 = vrot.lane.b32.xlu0 %v1450, 32
      %v1514 = vpop.permute.xlu0 %1513
      %vm1547 = vcmask 294144
      %1548 = vst.msk [vmem:[#allocation2] sm:$0xff] %vm1547, %v1452
      %1549 = vst.msk [vmem:[#allocation2 + $0x8] sm:$0xff] %vm1547, %v1454
      %1550 = vst.msk [vmem:[#allocation2 + $0x10] sm:$0xff] %vm1547, %v1456
      %1551 = vst.msk [vmem:[#allocation2 + $0x18] sm:$0xff] %vm1547, %v1458
      %1552 = vst.msk [vmem:[#allocation2 + $0x20] sm:$0xff] %vm1547, %v1460
      %1553 = vst.msk [vmem:[#allocation2 + $0x28] sm:$0xff] %vm1547, %v1462
      %1554 = vst.msk [vmem:[#allocation2 + $0x30] sm:$0xff] %vm1547, %v1464
      %1555 = vst.msk [vmem:[#allocation2 + $0x38] sm:$0xff] %vm1547, %v1466
      %1556 = vst.msk [vmem:[#allocation2 + $0x40] sm:$0xff] %vm1547, %v1468
      %1557 = vst.msk [vmem:[#allocation2 + $0x48] sm:$0xff] %vm1547, %v1470
      %1558 = vst.msk [vmem:[#allocation2 + $0x50] sm:$0xff] %vm1547, %v1472
      %1559 = vst.msk [vmem:[#allocation2 + $0x58] sm:$0xff] %vm1547, %v1474
      %1560 = vst.msk [vmem:[#allocation2 + $0x60] sm:$0xff] %vm1547, %v1476
      %1561 = vst.msk [vmem:[#allocation2 + $0x68] sm:$0xff] %vm1547, %v1478
      %1562 = vst.msk [vmem:[#allocation2 + $0x70] sm:$0xff] %vm1547, %v1480
      %1563 = vst.msk [vmem:[#allocation2 + $0x78] sm:$0xff] %vm1547, %v1482
      %1564 = vst.msk [vmem:[#allocation2 + $0x80] sm:$0xff] %vm1547, %v1484
      %1565 = vst.msk [vmem:[#allocation2 + $0x88] sm:$0xff] %vm1547, %v1486
      %1566 = vst.msk [vmem:[#allocation2 + $0x90] sm:$0xff] %vm1547, %v1488
      %1567 = vst.msk [vmem:[#allocation2 + $0x98] sm:$0xff] %vm1547, %v1490
      %1568 = vst.msk [vmem:[#allocation2 + $0xa0] sm:$0xff] %vm1547, %v1492
      %1569 = vst.msk [vmem:[#allocation2 + $0xa8] sm:$0xff] %vm1547, %v1494
      %1570 = vst.msk [vmem:[#allocation2 + $0xb0] sm:$0xff] %vm1547, %v1496
      %1571 = vst.msk [vmem:[#allocation2 + $0xb8] sm:$0xff] %vm1547, %v1498
      %1572 = vst.msk [vmem:[#allocation2 + $0xc0] sm:$0xff] %vm1547, %v1500
      %1573 = vst.msk [vmem:[#allocation2 + $0xc8] sm:$0xff] %vm1547, %v1502
      %1574 = vst.msk [vmem:[#allocation2 + $0xd0] sm:$0xff] %vm1547, %v1504
      %1575 = vst.msk [vmem:[#allocation2 + $0xd8] sm:$0xff] %vm1547, %v1506
      %1576 = vst.msk [vmem:[#allocation2 + $0xe0] sm:$0xff] %vm1547, %v1508
      %1577 = vst.msk [vmem:[#allocation2 + $0xe8] sm:$0xff] %vm1547, %v1510
      %1578 = vst.msk [vmem:[#allocation2 + $0xf0] sm:$0xff] %vm1547, %v1512
      %1579 = vst.msk [vmem:[#allocation2 + $0xf8] sm:$0xff] %vm1547, %v1514
      %v1580 = vld [vmem:[#allocation2] sm:$0xff]
      %v1581 = vld [vmem:[#allocation2 + $0x8] sm:$0xff]
      %v1582 = vld [vmem:[#allocation2 + $0x10] sm:$0xff]
      %v1583 = vld [vmem:[#allocation2 + $0x18] sm:$0xff]
      %v1584 = vld [vmem:[#allocation2 + $0x20] sm:$0xff]
      %v1585 = vld [vmem:[#allocation2 + $0x28] sm:$0xff]
      %v1586 = vld [vmem:[#allocation2 + $0x30] sm:$0xff]
      %v1587 = vld [vmem:[#allocation2 + $0x38] sm:$0xff]
      %v1588 = vld [vmem:[#allocation2 + $0x40] sm:$0xff]
      %v1589 = vld [vmem:[#allocation2 + $0x48] sm:$0xff]
      %v1590 = vld [vmem:[#allocation2 + $0x50] sm:$0xff]
      %v1591 = vld [vmem:[#allocation2 + $0x58] sm:$0xff]
      %v1592 = vld [vmem:[#allocation2 + $0x60] sm:$0xff]
      %v1593 = vld [vmem:[#allocation2 + $0x68] sm:$0xff]
      %v1594 = vld [vmem:[#allocation2 + $0x70] sm:$0xff]
      %v1595 = vld [vmem:[#allocation2 + $0x78] sm:$0xff]
      %v1596 = vld [vmem:[#allocation2 + $0x80] sm:$0xff]
      %v1597 = vld [vmem:[#allocation2 + $0x88] sm:$0xff]
      %v1598 = vld [vmem:[#allocation2 + $0x90] sm:$0xff]
      %v1599 = vld [vmem:[#allocation2 + $0x98] sm:$0xff]
      %v1600 = vld [vmem:[#allocation2 + $0xa0] sm:$0xff]
      %v1601 = vld [vmem:[#allocation2 + $0xa8] sm:$0xff]
      %v1602 = vld [vmem:[#allocation2 + $0xb0] sm:$0xff]
      %v1603 = vld [vmem:[#allocation2 + $0xb8] sm:$0xff]
      %v1604 = vld [vmem:[#allocation2 + $0xc0] sm:$0xff]
      %v1605 = vld [vmem:[#allocation2 + $0xc8] sm:$0xff]
      %v1606 = vld [vmem:[#allocation2 + $0xd0] sm:$0xff]
      %v1607 = vld [vmem:[#allocation2 + $0xd8] sm:$0xff]
      %v1608 = vld [vmem:[#allocation2 + $0xe0] sm:$0xff]
      %v1609 = vld [vmem:[#allocation2 + $0xe8] sm:$0xff]
      %v1610 = vld [vmem:[#allocation2 + $0xf0] sm:$0xff]
      %v1611 = vld [vmem:[#allocation2 + $0xf8] sm:$0xff]
      %v1612 = vld [vmem:[%s1] sm:$0xff]
      %v1613 = vld [vmem:[%s1 + $0x8] sm:$0xff]
      %v1614 = vld [vmem:[%s1 + $0x10] sm:$0xff]
      %v1615 = vld [vmem:[%s1 + $0x18] sm:$0xff]
      %v1616 = vld [vmem:[%s1 + $0x20] sm:$0xf]
      %v1617 = vld [vmem:[%s2] sm:$0x1]
      %v1619 = vlaneseq
      %v1620 = vshrl.u32 %v1619, 7
      %v1621 = vsub.s32 0, %v1620
      %v1622 = vrot.slane %v1617, %v1621
      %vm1624 = vcmask 293888
      %v1626 = vsel %vm1624, %v1580, 0
      %v1629 = vsel %vm1624, %v1581, 0
      %v1632 = vsel %vm1624, %v1582, 0
      %v1635 = vsel %vm1624, %v1583, 0
      %v1638 = vsel %vm1624, %v1584, 0
      %v1641 = vsel %vm1624, %v1585, 0
      %v1644 = vsel %vm1624, %v1586, 0
      %v1647 = vsel %vm1624, %v1587, 0
      %v1650 = vsel %vm1624, %v1588, 0
      %v1653 = vsel %vm1624, %v1589, 0
      %v1656 = vsel %vm1624, %v1590, 0
      %v1659 = vsel %vm1624, %v1591, 0
      %v1662 = vsel %vm1624, %v1592, 0
      %v1665 = vsel %vm1624, %v1593, 0
      %v1668 = vsel %vm1624, %v1594, 0
      %v1671 = vsel %vm1624, %v1595, 0
      %v1674 = vsel %vm1624, %v1596, 0
      %v1677 = vsel %vm1624, %v1597, 0
      %v1680 = vsel %vm1624, %v1598, 0
      %v1683 = vsel %vm1624, %v1599, 0
      %v1686 = vsel %vm1624, %v1600, 0
      %v1689 = vsel %vm1624, %v1601, 0
      %v1692 = vsel %vm1624, %v1602, 0
      %v1695 = vsel %vm1624, %v1603, 0
      %v1698 = vsel %vm1624, %v1604, 0
      %v1701 = vsel %vm1624, %v1605, 0
      %v1704 = vsel %vm1624, %v1606, 0
      %v1707 = vsel %vm1624, %v1607, 0
      %v1710 = vsel %vm1624, %v1608, 0
      %v1713 = vsel %vm1624, %v1609, 0
      %v1716 = vsel %vm1624, %v1610, 0
      %v1719 = vsel %vm1624, %v1611, 0
      %vm1721 = vcmask 1043456
      %v1723 = vsel %vm1721, %v1616, 0
      %1725 = vmatprep.subr.mxu0 0.0
      %1726 = vmatpush1.msra.mxu0 0.0
      %1727 = vmatprep.subr.mxu0 0.0
      %1728 = vmatpush1.msra.mxu0 0.0
      %1729 = vmatprep.subr.mxu0 0.0
      %1730 = vmatpush1.msra.mxu0 0.0
      %1731 = vmatprep.subr.mxu0 0.0
      %1732 = vmatpush1.msra.mxu0 0.0
      %1733 = vmatprep.subr.mxu0 0.0
      %1734 = vmatpush1.msra.mxu0 0.0
      %1735 = vmatprep.subr.mxu0 0.0
      %1736 = vmatpush1.msra.mxu0 0.0
      %1737 = vmatprep.subr.mxu0 0.0
      %1738 = vmatpush1.msra.mxu0 0.0
      %1739 = vmatprep.subr.mxu0 0.0
      %1740 = vmatpush1.msra.mxu0 0.0
      %1741 = vmatprep.subr.mxu0 0.0
      %1742 = vmatpush1.msra.mxu0 0.0
      %1743 = vmatprep.subr.mxu0 0.0
      %1744 = vmatpush1.msra.mxu0 0.0
      %1745 = vmatprep.subr.mxu0 0.0
      %1746 = vmatpush1.msra.mxu0 0.0
      %1747 = vmatprep.subr.mxu0 0.0
      %1748 = vmatpush1.msra.mxu0 %v1723
      %1749 = vmatprep.subr.mxu0 0.0
      %1750 = vmatpush1.msra.mxu0 %v1615
      %1751 = vmatprep.subr.mxu0 0.0
      %1752 = vmatpush1.msra.mxu0 %v1614
      %1753 = vmatprep.subr.mxu0 0.0
      %1754 = vmatpush1.msra.mxu0 %v1613
      %1755 = vmatprep.subr.mxu0 0.0
      %1756 = vmatpush1.msra.mxu0 %v1612
      %1757 = vmatprep.subr.mxu0 0.0
      %1758 = vmatpush2.msra.mxu0 0.0
      %1759 = vmatprep.subr.mxu0 0.0
      %1760 = vmatpush2.msra.mxu0 0.0
      %1761 = vmatprep.subr.mxu0 0.0
      %1762 = vmatpush2.msra.mxu0 0.0
      %1763 = vmatprep.subr.mxu0 0.0
      %1764 = vmatpush2.msra.mxu0 0.0
      %1765 = vmatprep.subr.mxu0 0.0
      %1766 = vmatpush2.msra.mxu0 0.0
      %1767 = vmatprep.subr.mxu0 0.0
      %1768 = vmatpush2.msra.mxu0 0.0
      %1769 = vmatprep.subr.mxu0 0.0
      %1770 = vmatpush2.msra.mxu0 0.0
      %1771 = vmatprep.subr.mxu0 0.0
      %1772 = vmatpush2.msra.mxu0 0.0
      %1773 = vmatprep.subr.mxu0 0.0
      %1774 = vmatpush2.msra.mxu0 0.0
      %1775 = vmatprep.subr.mxu0 0.0
      %1776 = vmatpush2.msra.mxu0 0.0
      %1777 = vmatprep.subr.mxu0 0.0
      %1778 = vmatpush2.msra.mxu0 0.0
      %1779 = vmatprep.subr.mxu0 0.0
      %1780 = vmatpush2.msra.mxu0 0.0
      %1781 = vmatprep.subr.mxu0 0.0
      %1782 = vmatpush2.msra.mxu0 0.0
      %1783 = vmatprep.subr.mxu0 0.0
      %1784 = vmatpush2.msra.mxu0 0.0
      %1785 = vmatprep.subr.mxu0 0.0
      %1786 = vmatpush2.msra.mxu0 0.0
      %1787 = vmatprep.subr.mxu0 0.0
      %1788 = vmatpush2.msra.mxu0 0.0
      %1789 = vmatprep.mubr.f32.mxu0 0.0
      %1790 = vmatmul.mubr.f32.gmra.mxu0 %v1626
      %v1791 = vpop.f32.mrf.mxu0
      %v1792 = vadd.f32 %v1622, %v1791
      %v1793 = vpop.f32.mrf.mxu0
      %1794 = vmatprep.mubr.f32.mxu0 0.0
      %1795 = vmatmul.mubr.f32.gmra.mxu0 %v1629
      %v1796 = vpop.f32.mrf.mxu0
      %v1797 = vadd.f32 %v1622, %v1796
      %v1798 = vpop.f32.mrf.mxu0
      %1799 = vmatprep.mubr.f32.mxu0 0.0
      %1800 = vmatmul.mubr.f32.gmra.mxu0 %v1632
      %v1801 = vpop.f32.mrf.mxu0
      %v1802 = vadd.f32 %v1622, %v1801
      %v1803 = vpop.f32.mrf.mxu0
      %1804 = vmatprep.mubr.f32.mxu0 0.0
      %1805 = vmatmul.mubr.f32.gmra.mxu0 %v1635
      %v1806 = vpop.f32.mrf.mxu0
      %v1807 = vadd.f32 %v1622, %v1806
      %v1808 = vpop.f32.mrf.mxu0
      %1809 = vmatprep.mubr.f32.mxu0 0.0
      %1810 = vmatmul.mubr.f32.gmra.mxu0 %v1638
      %v1811 = vpop.f32.mrf.mxu0
      %v1812 = vadd.f32 %v1622, %v1811
      %v1813 = vpop.f32.mrf.mxu0
      %1814 = vmatprep.mubr.f32.mxu0 0.0
      %1815 = vmatmul.mubr.f32.gmra.mxu0 %v1641
      %v1816 = vpop.f32.mrf.mxu0
      %v1817 = vadd.f32 %v1622, %v1816
      %v1818 = vpop.f32.mrf.mxu0
      %1819 = vmatprep.mubr.f32.mxu0 0.0
      %1820 = vmatmul.mubr.f32.gmra.mxu0 %v1644
      %v1821 = vpop.f32.mrf.mxu0
      %v1822 = vadd.f32 %v1622, %v1821
      %v1823 = vpop.f32.mrf.mxu0
      %1824 = vmatprep.mubr.f32.mxu0 0.0
      %1825 = vmatmul.mubr.f32.gmra.mxu0 %v1647
      %v1826 = vpop.f32.mrf.mxu0
      %v1827 = vadd.f32 %v1622, %v1826
      %v1828 = vpop.f32.mrf.mxu0
      %1829 = vmatprep.mubr.f32.mxu0 0.0
      %1830 = vmatmul.mubr.f32.gmra.mxu0 %v1650
      %v1831 = vpop.f32.mrf.mxu0
      %v1832 = vadd.f32 %v1622, %v1831
      %v1833 = vpop.f32.mrf.mxu0
      %1834 = vmatprep.mubr.f32.mxu0 0.0
      %1835 = vmatmul.mubr.f32.gmra.mxu0 %v1653
      %v1836 = vpop.f32.mrf.mxu0
      %v1837 = vadd.f32 %v1622, %v1836
      %v1838 = vpop.f32.mrf.mxu0
      %1839 = vmatprep.mubr.f32.mxu0 0.0
      %1840 = vmatmul.mubr.f32.gmra.mxu0 %v1656
      %v1841 = vpop.f32.mrf.mxu0
      %v1842 = vadd.f32 %v1622, %v1841
      %v1843 = vpop.f32.mrf.mxu0
      %1844 = vmatprep.mubr.f32.mxu0 0.0
      %1845 = vmatmul.mubr.f32.gmra.mxu0 %v1659
      %v1846 = vpop.f32.mrf.mxu0
      %v1847 = vadd.f32 %v1622, %v1846
      %v1848 = vpop.f32.mrf.mxu0
      %1849 = vmatprep.mubr.f32.mxu0 0.0
      %1850 = vmatmul.mubr.f32.gmra.mxu0 %v1662
      %v1851 = vpop.f32.mrf.mxu0
      %v1852 = vadd.f32 %v1622, %v1851
      %v1853 = vpop.f32.mrf.mxu0
      %1854 = vmatprep.mubr.f32.mxu0 0.0
      %1855 = vmatmul.mubr.f32.gmra.mxu0 %v1665
      %v1856 = vpop.f32.mrf.mxu0
      %v1857 = vadd.f32 %v1622, %v1856
      %v1858 = vpop.f32.mrf.mxu0
      %1859 = vmatprep.mubr.f32.mxu0 0.0
      %1860 = vmatmul.mubr.f32.gmra.mxu0 %v1668
      %v1861 = vpop.f32.mrf.mxu0
      %v1862 = vadd.f32 %v1622, %v1861
      %v1863 = vpop.f32.mrf.mxu0
      %1864 = vmatprep.mubr.f32.mxu0 0.0
      %1865 = vmatmul.mubr.f32.gmra.mxu0 %v1671
      %v1866 = vpop.f32.mrf.mxu0
      %v1867 = vadd.f32 %v1622, %v1866
      %v1868 = vpop.f32.mrf.mxu0
      %1869 = vmatprep.mubr.f32.mxu0 0.0
      %1870 = vmatmul.mubr.f32.gmra.mxu0 %v1674
      %v1871 = vpop.f32.mrf.mxu0
      %v1872 = vadd.f32 %v1622, %v1871
      %v1873 = vpop.f32.mrf.mxu0
      %1874 = vmatprep.mubr.f32.mxu0 0.0
      %1875 = vmatmul.mubr.f32.gmra.mxu0 %v1677
      %v1876 = vpop.f32.mrf.mxu0
      %v1877 = vadd.f32 %v1622, %v1876
      %v1878 = vpop.f32.mrf.mxu0
      %1879 = vmatprep.mubr.f32.mxu0 0.0
      %1880 = vmatmul.mubr.f32.gmra.mxu0 %v1680
      %v1881 = vpop.f32.mrf.mxu0
      %v1882 = vadd.f32 %v1622, %v1881
      %v1883 = vpop.f32.mrf.mxu0
      %1884 = vmatprep.mubr.f32.mxu0 0.0
      %1885 = vmatmul.mubr.f32.gmra.mxu0 %v1683
      %v1886 = vpop.f32.mrf.mxu0
      %v1887 = vadd.f32 %v1622, %v1886
      %v1888 = vpop.f32.mrf.mxu0
      %1889 = vmatprep.mubr.f32.mxu0 0.0
      %1890 = vmatmul.mubr.f32.gmra.mxu0 %v1686
      %v1891 = vpop.f32.mrf.mxu0
      %v1892 = vadd.f32 %v1622, %v1891
      %v1893 = vpop.f32.mrf.mxu0
      %1894 = vmatprep.mubr.f32.mxu0 0.0
      %1895 = vmatmul.mubr.f32.gmra.mxu0 %v1689
      %v1896 = vpop.f32.mrf.mxu0
      %v1897 = vadd.f32 %v1622, %v1896
      %v1898 = vpop.f32.mrf.mxu0
      %1899 = vmatprep.mubr.f32.mxu0 0.0
      %1900 = vmatmul.mubr.f32.gmra.mxu0 %v1692
      %v1901 = vpop.f32.mrf.mxu0
      %v1902 = vadd.f32 %v1622, %v1901
      %v1903 = vpop.f32.mrf.mxu0
      %1904 = vmatprep.mubr.f32.mxu0 0.0
      %1905 = vmatmul.mubr.f32.gmra.mxu0 %v1695
      %v1906 = vpop.f32.mrf.mxu0
      %v1907 = vadd.f32 %v1622, %v1906
      %v1908 = vpop.f32.mrf.mxu0
      %1909 = vmatprep.mubr.f32.mxu0 0.0
      %1910 = vmatmul.mubr.f32.gmra.mxu0 %v1698
      %v1911 = vpop.f32.mrf.mxu0
      %v1912 = vadd.f32 %v1622, %v1911
      %v1913 = vpop.f32.mrf.mxu0
      %1914 = vmatprep.mubr.f32.mxu0 0.0
      %1915 = vmatmul.mubr.f32.gmra.mxu0 %v1701
      %v1916 = vpop.f32.mrf.mxu0
      %v1917 = vadd.f32 %v1622, %v1916
      %v1918 = vpop.f32.mrf.mxu0
      %1919 = vmatprep.mubr.f32.mxu0 0.0
      %1920 = vmatmul.mubr.f32.gmra.mxu0 %v1704
      %v1921 = vpop.f32.mrf.mxu0
      %v1922 = vadd.f32 %v1622, %v1921
      %v1923 = vpop.f32.mrf.mxu0
      %1924 = vmatprep.mubr.f32.mxu0 0.0
      %1925 = vmatmul.mubr.f32.gmra.mxu0 %v1707
      %v1926 = vpop.f32.mrf.mxu0
      %v1927 = vadd.f32 %v1622, %v1926
      %v1928 = vpop.f32.mrf.mxu0
      %1929 = vmatprep.mubr.f32.mxu0 0.0
      %1930 = vmatmul.mubr.f32.gmra.mxu0 %v1710
      %v1931 = vpop.f32.mrf.mxu0
      %v1932 = vadd.f32 %v1622, %v1931
      %v1933 = vpop.f32.mrf.mxu0
      %1934 = vmatprep.mubr.f32.mxu0 0.0
      %1935 = vmatmul.mubr.f32.gmra.mxu0 %v1713
      %v1936 = vpop.f32.mrf.mxu0
      %v1937 = vadd.f32 %v1622, %v1936
      %v1938 = vpop.f32.mrf.mxu0
      %1939 = vmatprep.mubr.f32.mxu0 0.0
      %1940 = vmatmul.mubr.f32.gmra.mxu0 %v1716
      %v1941 = vpop.f32.mrf.mxu0
      %v1942 = vadd.f32 %v1622, %v1941
      %v1943 = vpop.f32.mrf.mxu0
      %1944 = vmatprep.mubr.f32.mxu0 0.0
      %1945 = vmatmul.mubr.f32.gmra.mxu0 %v1719
      %v1946 = vpop.f32.mrf.mxu0
      %v1947 = vadd.f32 %v1622, %v1946
      %v1948 = vpop.f32.mrf.mxu0
      %1949 = vdwg.mxu0
      %v1950 = vld [vmem:[%s3] sm:$0x1]
      %v1952 = vlaneseq
      %v1953 = vshrl.u32 %v1952, 7
      %v1954 = vsub.s32 0, %v1953
      %v1955 = vrot.slane %v1950, %v1954
      %v1957 = vmul.f32 %v1792, %v1955
      %v1958 = vmul.f32 %v1797, %v1955
      %v1959 = vmul.f32 %v1802, %v1955
      %v1960 = vmul.f32 %v1807, %v1955
      %v1961 = vmul.f32 %v1812, %v1955
      %v1962 = vmul.f32 %v1817, %v1955
      %v1963 = vmul.f32 %v1822, %v1955
      %v1964 = vmul.f32 %v1827, %v1955
      %v1965 = vmul.f32 %v1832, %v1955
      %v1966 = vmul.f32 %v1837, %v1955
      %v1967 = vmul.f32 %v1842, %v1955
      %v1968 = vmul.f32 %v1847, %v1955
      %v1969 = vmul.f32 %v1852, %v1955
      %v1970 = vmul.f32 %v1857, %v1955
      %v1971 = vmul.f32 %v1862, %v1955
      %v1972 = vmul.f32 %v1867, %v1955
      %v1973 = vmul.f32 %v1872, %v1955
      %v1974 = vmul.f32 %v1877, %v1955
      %v1975 = vmul.f32 %v1882, %v1955
      %v1976 = vmul.f32 %v1887, %v1955
      %v1977 = vmul.f32 %v1892, %v1955
      %v1978 = vmul.f32 %v1897, %v1955
      %v1979 = vmul.f32 %v1902, %v1955
      %v1980 = vmul.f32 %v1907, %v1955
      %v1981 = vmul.f32 %v1912, %v1955
      %v1982 = vmul.f32 %v1917, %v1955
      %v1983 = vmul.f32 %v1922, %v1955
      %v1984 = vmul.f32 %v1927, %v1955
      %v1985 = vmul.f32 %v1932, %v1955
      %v1986 = vmul.f32 %v1937, %v1955
      %v1987 = vmul.f32 %v1942, %v1955
      %v1988 = vmul.f32 %v1947, %v1955
      %v1989 = vld [vmem:[%s4] sm:$0x1]
      %v1991 = vlaneseq
      %v1992 = vshrl.u32 %v1991, 7
      %v1993 = vsub.s32 0, %v1992
      %v1994 = vrot.slane %v1989, %v1993
      %v1996 = vadd.f32 %v1957, %v1994
      %v1997 = vadd.f32 %v1958, %v1994
      %v1998 = vadd.f32 %v1959, %v1994
      %v1999 = vadd.f32 %v1960, %v1994
      %v2000 = vadd.f32 %v1961, %v1994
      %v2001 = vadd.f32 %v1962, %v1994
      %v2002 = vadd.f32 %v1963, %v1994
      %v2003 = vadd.f32 %v1964, %v1994
      %v2004 = vadd.f32 %v1965, %v1994
      %v2005 = vadd.f32 %v1966, %v1994
      %v2006 = vadd.f32 %v1967, %v1994
      %v2007 = vadd.f32 %v1968, %v1994
      %v2008 = vadd.f32 %v1969, %v1994
      %v2009 = vadd.f32 %v1970, %v1994
      %v2010 = vadd.f32 %v1971, %v1994
      %v2011 = vadd.f32 %v1972, %v1994
      %v2012 = vadd.f32 %v1973, %v1994
      %v2013 = vadd.f32 %v1974, %v1994
      %v2014 = vadd.f32 %v1975, %v1994
      %v2015 = vadd.f32 %v1976, %v1994
      %v2016 = vadd.f32 %v1977, %v1994
      %v2017 = vadd.f32 %v1978, %v1994
      %v2018 = vadd.f32 %v1979, %v1994
      %v2019 = vadd.f32 %v1980, %v1994
      %v2020 = vadd.f32 %v1981, %v1994
      %v2021 = vadd.f32 %v1982, %v1994
      %v2022 = vadd.f32 %v1983, %v1994
      %v2023 = vadd.f32 %v1984, %v1994
      %v2024 = vadd.f32 %v1985, %v1994
      %v2025 = vadd.f32 %v1986, %v1994
      %v2026 = vadd.f32 %v1987, %v1994
      %v2027 = vadd.f32 %v1988, %v1994
      %v2028 = vmax.f32 %v1996, 0.0
      %v2029 = vmax.f32 %v1997, 0.0
      %v2030 = vmax.f32 %v1998, 0.0
      %v2031 = vmax.f32 %v1999, 0.0
      %v2032 = vmax.f32 %v2000, 0.0
      %v2033 = vmax.f32 %v2001, 0.0
      %v2034 = vmax.f32 %v2002, 0.0
      %v2035 = vmax.f32 %v2003, 0.0
      %v2036 = vmax.f32 %v2004, 0.0
      %v2037 = vmax.f32 %v2005, 0.0
      %v2038 = vmax.f32 %v2006, 0.0
      %v2039 = vmax.f32 %v2007, 0.0
      %v2040 = vmax.f32 %v2008, 0.0
      %v2041 = vmax.f32 %v2009, 0.0
      %v2042 = vmax.f32 %v2010, 0.0
      %v2043 = vmax.f32 %v2011, 0.0
      %v2044 = vmax.f32 %v2012, 0.0
      %v2045 = vmax.f32 %v2013, 0.0
      %v2046 = vmax.f32 %v2014, 0.0
      %v2047 = vmax.f32 %v2015, 0.0
      %v2048 = vmax.f32 %v2016, 0.0
      %v2049 = vmax.f32 %v2017, 0.0
      %v2050 = vmax.f32 %v2018, 0.0
      %v2051 = vmax.f32 %v2019, 0.0
      %v2052 = vmax.f32 %v2020, 0.0
      %v2053 = vmax.f32 %v2021, 0.0
      %v2054 = vmax.f32 %v2022, 0.0
      %v2055 = vmax.f32 %v2023, 0.0
      %v2056 = vmax.f32 %v2024, 0.0
      %v2057 = vmax.f32 %v2025, 0.0
      %v2058 = vmax.f32 %v2026, 0.0
      %v2059 = vmax.f32 %v2027, 0.0
      %2060 = vst [vmem:[%s224] sm:$0xff] %v2028
      %2061 = vst [vmem:[%s224 + $0x8] sm:$0xff] %v2029
      %2062 = vst [vmem:[%s224 + $0x10] sm:$0xff] %v2030
      %2063 = vst [vmem:[%s224 + $0x18] sm:$0xff] %v2031
      %2064 = vst [vmem:[%s224 + $0x20] sm:$0xff] %v2032
      %2065 = vst [vmem:[%s224 + $0x28] sm:$0xff] %v2033
      %2066 = vst [vmem:[%s224 + $0x30] sm:$0xff] %v2034
      %2067 = vst [vmem:[%s224 + $0x38] sm:$0xff] %v2035
      %2068 = vst [vmem:[%s224 + $0x40] sm:$0xff] %v2036
      %2069 = vst [vmem:[%s224 + $0x48] sm:$0xff] %v2037
      %2070 = vst [vmem:[%s224 + $0x50] sm:$0xff] %v2038
      %2071 = vst [vmem:[%s224 + $0x58] sm:$0xff] %v2039
      %2072 = vst [vmem:[%s224 + $0x60] sm:$0xff] %v2040
      %2073 = vst [vmem:[%s224 + $0x68] sm:$0xff] %v2041
      %2074 = vst [vmem:[%s224 + $0x70] sm:$0xff] %v2042
      %2075 = vst [vmem:[%s224 + $0x78] sm:$0xff] %v2043
      %2076 = vst [vmem:[%s224 + $0x80] sm:$0xff] %v2044
      %2077 = vst [vmem:[%s224 + $0x88] sm:$0xff] %v2045
      %2078 = vst [vmem:[%s224 + $0x90] sm:$0xff] %v2046
      %2079 = vst [vmem:[%s224 + $0x98] sm:$0xff] %v2047
      %2080 = vst [vmem:[%s224 + $0xa0] sm:$0xff] %v2048
      %2081 = vst [vmem:[%s224 + $0xa8] sm:$0xff] %v2049
      %2082 = vst [vmem:[%s224 + $0xb0] sm:$0xff] %v2050
      %2083 = vst [vmem:[%s224 + $0xb8] sm:$0xff] %v2051
      %2084 = vst [vmem:[%s224 + $0xc0] sm:$0xff] %v2052
      %2085 = vst [vmem:[%s224 + $0xc8] sm:$0xff] %v2053
      %2086 = vst [vmem:[%s224 + $0xd0] sm:$0xff] %v2054
      %2087 = vst [vmem:[%s224 + $0xd8] sm:$0xff] %v2055
      %2088 = vst [vmem:[%s224 + $0xe0] sm:$0xff] %v2056
      %2089 = vst [vmem:[%s224 + $0xe8] sm:$0xff] %v2057
      %2090 = vst [vmem:[%s224 + $0xf0] sm:$0xff] %v2058
      %2091 = vst [vmem:[%s224 + $0xf8] sm:$0xff] %v2059
      %p2092 = scmp.lt.s32.totalorder %s16, 1
      %s2093 = scalar_select %p2092, %s16, 1
      %s2094 = smul.addr %s2093, 32
      %s2095 = smul.addr %s2094, 8
      %s2096 = scalar_lea.vmem %s5, %s2095
      // Predicated region
      $region41: #{unit_forward.3} parent=39 // pred_check
        %p2097 = pneg %p144
      $region42: #{unit_forward.3} parent=39 // pred_check_branch
        %2099 = sbr.rel (%p2097) target = $region44
      $region43: #{unit_forward.3} parent=39 // pred_region
        _
      $region44: #{unit_forward.3} parent=39 // pred_fallthru
        _
    $region40: #{unit_forward.3} parent=5 // pred_fallthru
      _
    %p2100 = scmp.le.s32.totalorder 2, %s11
    // Predicated region
    $region45: #{unit_forward.3} parent=5 // pred_check
      %p2101 = pneg %p2100
    $region46: #{unit_forward.3} parent=5 // pred_check_branch
      %2103 = sbr.rel (%p2101) target = $region48
    $region47: #{unit_forward.3} parent=5 // pred_region
      %s2104 = ssub.s32 %s11, 2
      // Predicated region
      $region49: #{unit_forward.3} parent=47 // pred_check
        %p2105 = pneg %p150
      $region50: #{unit_forward.3} parent=47 // pred_check_branch
        %2107 = sbr.rel (%p2105) target = $region52
      $region51: #{unit_forward.3} parent=47 // pred_region
        %p2108 = scmp.lt.s32.totalorder %s17, 1
        %s2109 = scalar_select %p2108, %s17, 1
        %s2110 = smul.addr %s2109, 32
        %s2111 = smul.addr %s2110, 8
        %s2112 = scalar_lea.vmem %s5, %s2111
      $region52: #{unit_forward.3} parent=47 // pred_fallthru
        _
    $region48: #{unit_forward.3} parent=5 // pred_fallthru
      _
  $region6: #{unit_forward.3} parent=0 // loop_footer
    %s15 = sadd.s32 1, %s11
  $region7: #{unit_forward.3} parent=0 // loop_footer_branch
    %10 = sbr.rel target = $region3
  $region8: #{unit_forward.3} parent=0 // loop_exit
    _

// kernel: unit_forward.2
$region0: #{unit_forward.2}
  #allocation0 [shape = 'u32[]', space=smem, size = 0x4, offset = 0x4, fixed_abs, tag = 'smem constant byte address 0x4 - core index']
  #allocation1 [shape = 'u32[144,128]{1,0:T(1,128)}', space=vmem, size = 0x12000, scoped, tag = 'internal scratch']
  #allocation2 [shape = 'f32[256,36]{1,0:T(8,128)}', space=vmem, size = 0x20000, scoped, tag = 'scratch operand']
  %s0 = inlined_call_operand.vmem [shape: f32[2,18,18,4], index: 0, kind: input, shape index: {}]
  %s1 = inlined_call_operand.vmem [shape: f32[36,128], index: 1, kind: input, shape index: {}]
  %s2 = inlined_call_operand.vmem [shape: f32[1,128], index: 2, kind: input, shape index: {}]
  %s3 = inlined_call_operand.vmem [shape: f32[2,2,128], index: 3, kind: output, shape index: {}]
  %s4 = sld [smem:[#allocation0]]
  $region45: #{unit_forward.2} parent=0
    _
  %s6 = ssub.s32 1, %s4
  %s7 = scalar_select 0, %s6, %s4
  loop: start=0, step=1, limit=4
  $region2: #{unit_forward.2} parent=0 // loop_pre_header
    _
  $region3: #{unit_forward.2} parent=0 // loop_header
    %s9 = sphi 0, %s13
    %p10 = scmp.ge.s32.totalorder %s9, 4
    %s19 = sphi 0, %s21
    %s22 = sphi 0, %s19
    %s23 = sphi 0, %s22
    %s39 = sphi 0, %s23
    %s43 = sphi 0, %s43
    %s45 = sphi 0, %s43
    %s46 = sphi 0, %s45
    %s60 = sphi 0, %s46
    %s64 = sphi 0, %s64
    %s66 = sphi 0, %s64
    %s67 = sphi 0, %s66
    %s81 = sphi 0, %s67
    %s87 = sphi 0, %s89
    %s90 = sphi 0, %s87
    %s91 = sphi 0, %s90
    %s107 = sphi 0, %s91
  $region4: #{unit_forward.2} parent=0 // loop_header_branch
    %12 = sbr.rel (%p10) target = $region8
  $region5: #{unit_forward.2} parent=0 // loop_body
    %s14 = ssub.s32 %s9, 1
    %s15 = ssub.s32 %s9, 2
    %s16 = sadd.s32 %s9, 1
    %s17 = ssub.s32 %s9, %s16
    %p18 = scmp.eq.s32.totalorder %s17, 0
    %s20 = sadd.s32 %s19, 1
    %s21 = scalar_select %p18, %s19, %s20
    %p24 = pneg %p18
    %p25 = scmp.eq.s32.totalorder %s9, 1
    %p26 = por %p24, %p25
    %p27 = scmp.ne.s32.totalorder %s19, %s22
    %p28 = scmp.eq.s32.totalorder %s9, 0
    %p29 = por %p27, %p28
    %p30 = scmp.ne.s32.totalorder %s19, %s22
    %p31 = scmp.eq.s32.totalorder %s14, 1
    %p32 = por %p30, %p31
    %p33 = scmp.ne.s32.totalorder %s22, %s23
    %p34 = scmp.eq.s32.totalorder %s14, 0
    %p35 = por %p33, %p34
    %p36 = scmp.ne.s32.totalorder %s22, %s23
    %p37 = scmp.eq.s32.totalorder %s15, 1
    %p38 = por %p36, %p37
    %p40 = scmp.ne.s32.totalorder %s23, %s39
    %p41 = scmp.eq.s32.totalorder %s15, 0
    %p42 = por %p40, %p41
    %s44 = sadd.s32 %s43, 1
    %p47 = scmp.eq.s32.totalorder %s9, 1
    %p48 = scmp.ne.s32.totalorder %s43, %s45
    %p49 = scmp.eq.s32.totalorder %s9, 0
    %p50 = por %p48, %p49
    %p51 = scmp.ne.s32.totalorder %s43, %s45
    %p52 = scmp.eq.s32.totalorder %s14, 1
    %p53 = por %p51, %p52
    %p54 = scmp.ne.s32.totalorder %s45, %s46
    %p55 = scmp.eq.s32.totalorder %s14, 0
    %p56 = por %p54, %p55
    %p57 = scmp.ne.s32.totalorder %s45, %s46
    %p58 = scmp.eq.s32.totalorder %s15, 1
    %p59 = por %p57, %p58
    %p61 = scmp.ne.s32.totalorder %s46, %s60
    %p62 = scmp.eq.s32.totalorder %s15, 0
    %p63 = por %p61, %p62
    %s65 = sadd.s32 %s64, 1
    %p68 = scmp.eq.s32.totalorder %s9, 1
    %p69 = scmp.ne.s32.totalorder %s64, %s66
    %p70 = scmp.eq.s32.totalorder %s9, 0
    %p71 = por %p69, %p70
    %p72 = scmp.ne.s32.totalorder %s64, %s66
    %p73 = scmp.eq.s32.totalorder %s14, 1
    %p74 = por %p72, %p73
    %p75 = scmp.ne.s32.totalorder %s66, %s67
    %p76 = scmp.eq.s32.totalorder %s14, 0
    %p77 = por %p75, %p76
    %p78 = scmp.ne.s32.totalorder %s66, %s67
    %p79 = scmp.eq.s32.totalorder %s15, 1
    %p80 = por %p78, %p79
    %p82 = scmp.ne.s32.totalorder %s67, %s81
    %p83 = scmp.eq.s32.totalorder %s15, 0
    %p84 = por %p82, %p83
    %s85 = ssub.s32 %s9, %s16
    %p86 = scmp.eq.s32.totalorder %s85, 0
    %s88 = sadd.s32 %s87, 1
    %s89 = scalar_select %p86, %s87, %s88
    %p92 = pneg %p86
    %p93 = scmp.eq.s32.totalorder %s9, 1
    %p94 = por %p92, %p93
    %p95 = scmp.ne.s32.totalorder %s87, %s90
    %p96 = scmp.eq.s32.totalorder %s9, 0
    %p97 = por %p95, %p96
    %p98 = scmp.ne.s32.totalorder %s87, %s90
    %p99 = scmp.eq.s32.totalorder %s14, 1
    %p100 = por %p98, %p99
    %p101 = scmp.ne.s32.totalorder %s90, %s91
    %p102 = scmp.eq.s32.totalorder %s14, 0
    %p103 = por %p101, %p102
    %p104 = scmp.ne.s32.totalorder %s90, %s91
    %p105 = scmp.eq.s32.totalorder %s15, 1
    %p106 = por %p104, %p105
    %p108 = scmp.ne.s32.totalorder %s91, %s107
    %p109 = scmp.eq.s32.totalorder %s15, 0
    %p110 = por %p108, %p109
    %p111 = scmp.le.s32.totalorder 1, %s9
    %p112 = scmp.lt.s32.totalorder %s9, 3
    %p113 = pnand %p111, %p112
    %p114 = pneg %p113
    // Predicated region
    $region9: #{unit_forward.2} parent=5 // pred_check
      _
    $region10: #{unit_forward.2} parent=5 // pred_check_branch
      %116 = sbr.rel (%p113) target = $region12
    $region11: #{unit_forward.2} parent=5 // pred_region
      %s117 = ssub.s32 %s9, 1
      // Predicated region
      $region13: #{unit_forward.2} parent=11 // pred_check
        %p118 = pneg %p56
      $region14: #{unit_forward.2} parent=11 // pred_check_branch
        %120 = sbr.rel (%p118) target = $region16
      $region15: #{unit_forward.2} parent=11 // pred_region
        _
      $region16: #{unit_forward.2} parent=11 // pred_fallthru
        _
      // Predicated region
      $region17: #{unit_forward.2} parent=11 // pred_check
        %p121 = pneg %p77
      $region18: #{unit_forward.2} parent=11 // pred_check_branch
        %123 = sbr.rel (%p121) target = $region20
      $region19: #{unit_forward.2} parent=11 // pred_region
        _
      $region20: #{unit_forward.2} parent=11 // pred_fallthru
        _
    $region12: #{unit_forward.2} parent=5 // pred_fallthru
      _
    %p124 = scmp.lt.s32.totalorder %s9, 2
    // Predicated region
    $region21: #{unit_forward.2} parent=5 // pred_check
      %p125 = pneg %p124
    $region22: #{unit_forward.2} parent=5 // pred_check_branch
      %127 = sbr.rel (%p125) target = $region24
    $region23: #{unit_forward.2} parent=5 // pred_region
      // Predicated region
      $region25: #{unit_forward.2} parent=23 // pred_check
        %p128 = pneg %p29
      $region26: #{unit_forward.2} parent=23 // pred_check_branch
        %130 = sbr.rel (%p128) target = $region28
      $region27: #{unit_forward.2} parent=23 // pred_region
        %p131 = scmp.lt.s32.totalorder %s9, 1
        %s132 = scalar_select %p131, %s9, 1
        %s133 = smul.addr %s132, 54
        %s134 = smul.addr %s133, 8
        %s135 = scalar_lea.vmem %s0, %s134
      $region28: #{unit_forward.2} parent=23 // pred_fallthru
        _
    $region24: #{unit_forward.2} parent=5 // pred_fallthru
      _
    %p136 = scmp.le.s32.totalorder 1, %s9
    %p137 = scmp.lt.s32.totalorder %s9, 3
    %p138 = pnand %p136, %p137
    %p139 = pneg %p138
    // Predicated region
    $region29: #{unit_forward.2} parent=5 // pred_check
      _
    $region30: #{unit_forward.2} parent=5 // pred_check_branch
      %141 = sbr.rel (%p138) target = $region32
    $region31: #{unit_forward.2} parent=5 // pred_region
      %s142 = ssub.s32 %s9, 1
      %p143 = scmp.lt.s32.totalorder %s14, 1
      %s144 = scalar_select %p143, %s14, 1
      %s145 = smul.addr %s144, 54
      %s146 = smul.addr %s145, 8
      %s147 = scalar_lea.vmem %s0, %s146
      %p148 = pneg %p35
      %p149 = pneg %p32
      %p150 = pneg %p56
      %p151 = pneg %p53
      %p152 = pneg %p77
      %p153 = pneg %p74
      %p154 = pneg %p103
      %p155 = pneg %p100
      %p156 = scmp.lt.s32.totalorder %s14, 1
      %s157 = scalar_select %p156, %s14, 1
      %s158 = smul.addr %s157, 2
      %s159 = scalar_lea.vmem %s3, %s158
      %p160 = scmp.lt.s32.totalorder %s14, 1
      %s161 = scalar_select %p160, %s14, 1
      %s162 = smul.addr %s161, 54
      %s163 = smul.addr %s162, 8
      %s164 = scalar_lea.vmem %s0, %s163
      %p165 = scmp.lt.s32.totalorder %s14, 1
      %s166 = scalar_select %p165, %s14, 1
      %s167 = smul.addr %s166, 2
      %s168 = scalar_lea.vmem %s3, %s167
      %v169 = vld [vmem:[%s164] sm:$0xff]
      %v170 = vld [vmem:[%s164 + $0x8] sm:$0xff]
      %v171 = vld [vmem:[%s164 + $0x10] sm:$0x3]
      %v172 = vld [vmem:[%s164 + $0x18] sm:$0xff]
      %v173 = vld [vmem:[%s164 + $0x20] sm:$0xff]
      %v174 = vld [vmem:[%s164 + $0x28] sm:$0x3]
      %v175 = vld [vmem:[%s164 + $0x30] sm:$0xff]
      %v176 = vld [vmem:[%s164 + $0x38] sm:$0xff]
      %v177 = vld [vmem:[%s164 + $0x40] sm:$0x3]
      %v178 = vld [vmem:[%s164 + $0x48] sm:$0xff]
      %v179 = vld [vmem:[%s164 + $0x50] sm:$0xff]
      %v180 = vld [vmem:[%s164 + $0x58] sm:$0x3]
      %v181 = vld [vmem:[%s164 + $0x60] sm:$0xff]
      %v182 = vld [vmem:[%s164 + $0x68] sm:$0xff]
      %v183 = vld [vmem:[%s164 + $0x70] sm:$0x3]
      %v184 = vld [vmem:[%s164 + $0x78] sm:$0xff]
      %v185 = vld [vmem:[%s164 + $0x80] sm:$0xff]
      %v186 = vld [vmem:[%s164 + $0x88] sm:$0x3]
      %v187 = vld [vmem:[%s164 + $0x90] sm:$0xff]
      %v188 = vld [vmem:[%s164 + $0x98] sm:$0xff]
      %v189 = vld [vmem:[%s164 + $0xa0] sm:$0x3]
      %v190 = vld [vmem:[%s164 + $0xa8] sm:$0xff]
      %v191 = vld [vmem:[%s164 + $0xb0] sm:$0xff]
      %v192 = vld [vmem:[%s164 + $0xb8] sm:$0x3]
      %v193 = vld [vmem:[%s164 + $0xc0] sm:$0xff]
      %v194 = vld [vmem:[%s164 + $0xc8] sm:$0xff]
      %v195 = vld [vmem:[%s164 + $0xd0] sm:$0x3]
      %v196 = vld [vmem:[%s164 + $0xd8] sm:$0xff]
      %v197 = vld [vmem:[%s164 + $0xe0] sm:$0xff]
      %v198 = vld [vmem:[%s164 + $0xe8] sm:$0x3]
      %v199 = vld [vmem:[%s164 + $0xf0] sm:$0xff]
      %v200 = vld [vmem:[%s164 + $0xf8] sm:$0xff]
      %v201 = vld [vmem:[%s164 + $0x100] sm:$0x3]
      %v202 = vld [vmem:[%s164 + $0x108] sm:$0xff]
      %v203 = vld [vmem:[%s164 + $0x110] sm:$0xff]
      %v204 = vld [vmem:[%s164 + $0x118] sm:$0x3]
      %v205 = vld [vmem:[%s164 + $0x120] sm:$0xff]
      %v206 = vld [vmem:[%s164 + $0x128] sm:$0xff]
      %v207 = vld [vmem:[%s164 + $0x130] sm:$0x3]
      %v208 = vld [vmem:[%s164 + $0x138] sm:$0xff]
      %v209 = vld [vmem:[%s164 + $0x140] sm:$0xff]
      %v210 = vld [vmem:[%s164 + $0x148] sm:$0x3]
      %v211 = vld [vmem:[%s164 + $0x150] sm:$0xff]
      %v212 = vld [vmem:[%s164 + $0x158] sm:$0xff]
      %v213 = vld [vmem:[%s164 + $0x160] sm:$0x3]
      %v214 = vld [vmem:[%s164 + $0x168] sm:$0xff]
      %v215 = vld [vmem:[%s164 + $0x170] sm:$0xff]
      %v216 = vld [vmem:[%s164 + $0x178] sm:$0x3]
      %v217 = vld [vmem:[%s164 + $0x180] sm:$0xff]
      %v218 = vld [vmem:[%s164 + $0x188] sm:$0xff]
      %v219 = vld [vmem:[%s164 + $0x190] sm:$0x3]
      %v220 = vld [vmem:[%s164 + $0x198] sm:$0xff]
      %v221 = vld [vmem:[%s164 + $0x1a0] sm:$0xff]
      %v222 = vld [vmem:[%s164 + $0x1a8] sm:$0x3]
      %vm223 = vcmask 31744
      %224 = vst.msk [vmem:[#allocation2] sm:$0xff] %vm223, %v169
      %225 = vst.msk [vmem:[#allocation2 + $0x8] sm:$0xff] %vm223, %v170
      %226 = vst.msk [vmem:[#allocation2 + $0x10] sm:$0xff] %vm223, %v172
      %227 = vst.msk [vmem:[#allocation2 + $0x18] sm:$0xff] %vm223, %v173
      %228 = vst.msk [vmem:[#allocation2 + $0x20] sm:$0xff] %vm223, %v175
      %229 = vst.msk [vmem:[#allocation2 + $0x28] sm:$0xff] %vm223, %v176
      %230 = vst.msk [vmem:[#allocation2 + $0x30] sm:$0xff] %vm223, %v178
      %231 = vst.msk [vmem:[#allocation2 + $0x38] sm:$0xff] %vm223, %v179
      %232 = vst.msk [vmem:[#allocation2 + $0x40] sm:$0xff] %vm223, %v181
      %233 = vst.msk [vmem:[#allocation2 + $0x48] sm:$0xff] %vm223, %v182
      %234 = vst.msk [vmem:[#allocation2 + $0x50] sm:$0xff] %vm223, %v184
      %235 = vst.msk [vmem:[#allocation2 + $0x58] sm:$0xff] %vm223, %v185
      %236 = vst.msk [vmem:[#allocation2 + $0x60] sm:$0xff] %vm223, %v187
      %237 = vst.msk [vmem:[#allocation2 + $0x68] sm:$0xff] %vm223, %v188
      %238 = vst.msk [vmem:[#allocation2 + $0x70] sm:$0xff] %vm223, %v190
      %239 = vst.msk [vmem:[#allocation2 + $0x78] sm:$0xff] %vm223, %v191
      %240 = vst.msk [vmem:[#allocation2 + $0x80] sm:$0xff] %vm223, %v193
      %241 = vst.msk [vmem:[#allocation2 + $0x88] sm:$0xff] %vm223, %v194
      %242 = vst.msk [vmem:[#allocation2 + $0x90] sm:$0xff] %vm223, %v196
      %243 = vst.msk [vmem:[#allocation2 + $0x98] sm:$0xff] %vm223, %v197
      %244 = vst.msk [vmem:[#allocation2 + $0xa0] sm:$0xff] %vm223, %v199
      %245 = vst.msk [vmem:[#allocation2 + $0xa8] sm:$0xff] %vm223, %v200
      %246 = vst.msk [vmem:[#allocation2 + $0xb0] sm:$0xff] %vm223, %v202
      %247 = vst.msk [vmem:[#allocation2 + $0xb8] sm:$0xff] %vm223, %v203
      %248 = vst.msk [vmem:[#allocation2 + $0xc0] sm:$0xff] %vm223, %v205
      %249 = vst.msk [vmem:[#allocation2 + $0xc8] sm:$0xff] %vm223, %v206
      %250 = vst.msk [vmem:[#allocation2 + $0xd0] sm:$0xff] %vm223, %v208
      %251 = vst.msk [vmem:[#allocation2 + $0xd8] sm:$0xff] %vm223, %v209
      %252 = vst.msk [vmem:[#allocation2 + $0xe0] sm:$0xff] %vm223, %v211
      %253 = vst.msk [vmem:[#allocation2 + $0xe8] sm:$0xff] %vm223, %v212
      %254 = vst.msk [vmem:[#allocation2 + $0xf0] sm:$0xff] %vm223, %v214
      %255 = vst.msk [vmem:[#allocation2 + $0xf8] sm:$0xff] %vm223, %v215
      %vm304 = vcmask 1046528
      %v305 = vrot.slane %v169, 1
      %v306 = vrot.slane %v170, 1
      %v307 = vsel %vm304, %v305, %v306
      %v308 = vrot.slane %v171, 1
      %v309 = vsel %vm304, %v306, %v308
      %v310 = vrot.slane %v172, 1
      %v311 = vrot.slane %v173, 1
      %v312 = vsel %vm304, %v310, %v311
      %v313 = vrot.slane %v174, 1
      %v314 = vsel %vm304, %v311, %v313
      %v315 = vrot.slane %v175, 1
      %v316 = vrot.slane %v176, 1
      %v317 = vsel %vm304, %v315, %v316
      %v318 = vrot.slane %v177, 1
      %v319 = vsel %vm304, %v316, %v318
      %v320 = vrot.slane %v178, 1
      %v321 = vrot.slane %v179, 1
      %v322 = vsel %vm304, %v320, %v321
      %v323 = vrot.slane %v180, 1
      %v324 = vsel %vm304, %v321, %v323
      %v325 = vrot.slane %v181, 1
      %v326 = vrot.slane %v182, 1
      %v327 = vsel %vm304, %v325, %v326
      %v328 = vrot.slane %v183, 1
      %v329 = vsel %vm304, %v326, %v328
      %v330 = vrot.slane %v184, 1
      %v331 = vrot.slane %v185, 1
      %v332 = vsel %vm304, %v330, %v331
      %v333 = vrot.slane %v186, 1
      %v334 = vsel %vm304, %v331, %v333
      %v335 = vrot.slane %v187, 1
      %v336 = vrot.slane %v188, 1
      %v337 = vsel %vm304, %v335, %v336
      %v338 = vrot.slane %v189, 1
      %v339 = vsel %vm304, %v336, %v338
      %v340 = vrot.slane %v190, 1
      %v341 = vrot.slane %v191, 1
      %v342 = vsel %vm304, %v340, %v341
      %v343 = vrot.slane %v192, 1
      %v344 = vsel %vm304, %v341, %v343
      %v345 = vrot.slane %v193, 1
      %v346 = vrot.slane %v194, 1
      %v347 = vsel %vm304, %v345, %v346
      %v348 = vrot.slane %v195, 1
      %v349 = vsel %vm304, %v346, %v348
      %v350 = vrot.slane %v196, 1
      %v351 = vrot.slane %v197, 1
      %v352 = vsel %vm304, %v350, %v351
      %v353 = vrot.slane %v198, 1
      %v354 = vsel %vm304, %v351, %v353
      %v355 = vrot.slane %v199, 1
      %v356 = vrot.slane %v200, 1
      %v357 = vsel %vm304, %v355, %v356
      %v358 = vrot.slane %v201, 1
      %v359 = vsel %vm304, %v356, %v358
      %v360 = vrot.slane %v202, 1
      %v361 = vrot.slane %v203, 1
      %v362 = vsel %vm304, %v360, %v361
      %v363 = vrot.slane %v204, 1
      %v364 = vsel %vm304, %v361, %v363
      %v365 = vrot.slane %v205, 1
      %v366 = vrot.slane %v206, 1
      %v367 = vsel %vm304, %v365, %v366
      %v368 = vrot.slane %v207, 1
      %v369 = vsel %vm304, %v366, %v368
      %v370 = vrot.slane %v208, 1
      %v371 = vrot.slane %v209, 1
      %v372 = vsel %vm304, %v370, %v371
      %v373 = vrot.slane %v210, 1
      %v374 = vsel %vm304, %v371, %v373
      %v375 = vrot.slane %v211, 1
      %v376 = vrot.slane %v212, 1
      %v377 = vsel %vm304, %v375, %v376
      %v378 = vrot.slane %v213, 1
      %v379 = vsel %vm304, %v376, %v378
      %v380 = vrot.slane %v214, 1
      %v381 = vrot.slane %v215, 1
      %v382 = vsel %vm304, %v380, %v381
      %v383 = vrot.slane %v216, 1
      %v384 = vsel %vm304, %v381, %v383
      %385 = vrot.lane.b32.xlu0 %v307, 4
      %v386 = vpop.permute.xlu0 %385
      %387 = vrot.lane.b32.xlu0 %v309, 4
      %v388 = vpop.permute.xlu0 %387
      %389 = vrot.lane.b32.xlu0 %v312, 4
      %v390 = vpop.permute.xlu0 %389
      %391 = vrot.lane.b32.xlu0 %v314, 4
      %v392 = vpop.permute.xlu0 %391
      %393 = vrot.lane.b32.xlu0 %v317, 4
      %v394 = vpop.permute.xlu0 %393
      %395 = vrot.lane.b32.xlu0 %v319, 4
      %v396 = vpop.permute.xlu0 %395
      %397 = vrot.lane.b32.xlu0 %v322, 4
      %v398 = vpop.permute.xlu0 %397
      %399 = vrot.lane.b32.xlu0 %v324, 4
      %v400 = vpop.permute.xlu0 %399
      %401 = vrot.lane.b32.xlu0 %v327, 4
      %v402 = vpop.permute.xlu0 %401
      %403 = vrot.lane.b32.xlu0 %v329, 4
      %v404 = vpop.permute.xlu0 %403
      %405 = vrot.lane.b32.xlu0 %v332, 4
      %v406 = vpop.permute.xlu0 %405
      %407 = vrot.lane.b32.xlu0 %v334, 4
      %v408 = vpop.permute.xlu0 %407
      %409 = vrot.lane.b32.xlu0 %v337, 4
      %v410 = vpop.permute.xlu0 %409
      %411 = vrot.lane.b32.xlu0 %v339, 4
      %v412 = vpop.permute.xlu0 %411
      %413 = vrot.lane.b32.xlu0 %v342, 4
      %v414 = vpop.permute.xlu0 %413
      %415 = vrot.lane.b32.xlu0 %v344, 4
      %v416 = vpop.permute.xlu0 %415
      %417 = vrot.lane.b32.xlu0 %v347, 4
      %v418 = vpop.permute.xlu0 %417
      %419 = vrot.lane.b32.xlu0 %v349, 4
      %v420 = vpop.permute.xlu0 %419
      %421 = vrot.lane.b32.xlu0 %v352, 4
      %v422 = vpop.permute.xlu0 %421
      %423 = vrot.lane.b32.xlu0 %v354, 4
      %v424 = vpop.permute.xlu0 %423
      %425 = vrot.lane.b32.xlu0 %v357, 4
      %v426 = vpop.permute.xlu0 %425
      %427 = vrot.lane.b32.xlu0 %v359, 4
      %v428 = vpop.permute.xlu0 %427
      %429 = vrot.lane.b32.xlu0 %v362, 4
      %v430 = vpop.permute.xlu0 %429
      %431 = vrot.lane.b32.xlu0 %v364, 4
      %v432 = vpop.permute.xlu0 %431
      %433 = vrot.lane.b32.xlu0 %v367, 4
      %v434 = vpop.permute.xlu0 %433
      %435 = vrot.lane.b32.xlu0 %v369, 4
      %v436 = vpop.permute.xlu0 %435
      %437 = vrot.lane.b32.xlu0 %v372, 4
      %v438 = vpop.permute.xlu0 %437
      %439 = vrot.lane.b32.xlu0 %v374, 4
      %v440 = vpop.permute.xlu0 %439
      %441 = vrot.lane.b32.xlu0 %v377, 4
      %v442 = vpop.permute.xlu0 %441
      %443 = vrot.lane.b32.xlu0 %v379, 4
      %v444 = vpop.permute.xlu0 %443
      %445 = vrot.lane.b32.xlu0 %v382, 4
      %v446 = vpop.permute.xlu0 %445
      %447 = vrot.lane.b32.xlu0 %v384, 4
      %v448 = vpop.permute.xlu0 %447
      %vm481 = vcmask 64544
      %482 = vst.msk [vmem:[#allocation2] sm:$0xff] %vm481, %v386
      %483 = vst.msk [vmem:[#allocation2 + $0x8] sm:$0xff] %vm481, %v388
      %484 = vst.msk [vmem:[#allocation2 + $0x10] sm:$0xff] %vm481, %v390
      %485 = vst.msk [vmem:[#allocation2 + $0x18] sm:$0xff] %vm481, %v392
      %486 = vst.msk [vmem:[#allocation2 + $0x20] sm:$0xff] %vm481, %v394
      %487 = vst.msk [vmem:[#allocation2 + $0x28] sm:$0xff] %vm481, %v396
      %488 = vst.msk [vmem:[#allocation2 + $0x30] sm:$0xff] %vm481, %v398
      %489 = vst.msk [vmem:[#allocation2 + $0x38] sm:$0xff] %vm481, %v400
      %490 = vst.msk [vmem:[#allocation2 + $0x40] sm:$0xff] %vm481, %v402
      %491 = vst.msk [vmem:[#allocation2 + $0x48] sm:$0xff] %vm481, %v404
      %492 = vst.msk [vmem:[#allocation2 + $0x50] sm:$0xff] %vm481, %v406
      %493 = vst.msk [vmem:[#allocation2 + $0x58] sm:$0xff] %vm481, %v408
      %494 = vst.msk [vmem:[#allocation2 + $0x60] sm:$0xff] %vm481, %v410
      %495 = vst.msk [vmem:[#allocation2 + $0x68] sm:$0xff] %vm481, %v412
      %496 = vst.msk [vmem:[#allocation2 + $0x70] sm:$0xff] %vm481, %v414
      %497 = vst.msk [vmem:[#allocation2 + $0x78] sm:$0xff] %vm481, %v416
      %498 = vst.msk [vmem:[#allocation2 + $0x80] sm:$0xff] %vm481, %v418
      %499 = vst.msk [vmem:[#allocation2 + $0x88] sm:$0xff] %vm481, %v420
      %500 = vst.msk [vmem:[#allocation2 + $0x90] sm:$0xff] %vm481, %v422
      %501 = vst.msk [vmem:[#allocation2 + $0x98] sm:$0xff] %vm481, %v424
      %502 = vst.msk [vmem:[#allocation2 + $0xa0] sm:$0xff] %vm481, %v426
      %503 = vst.msk [vmem:[#allocation2 + $0xa8] sm:$0xff] %vm481, %v428
      %504 = vst.msk [vmem:[#allocation2 + $0xb0] sm:$0xff] %vm481, %v430
      %505 = vst.msk [vmem:[#allocation2 + $0xb8] sm:$0xff] %vm481, %v432
      %506 = vst.msk [vmem:[#allocation2 + $0xc0] sm:$0xff] %vm481, %v434
      %507 = vst.msk [vmem:[#allocation2 + $0xc8] sm:$0xff] %vm481, %v436
      %508 = vst.msk [vmem:[#allocation2 + $0xd0] sm:$0xff] %vm481, %v438
      %509 = vst.msk [vmem:[#allocation2 + $0xd8] sm:$0xff] %vm481, %v440
      %510 = vst.msk [vmem:[#allocation2 + $0xe0] sm:$0xff] %vm481, %v442
      %511 = vst.msk [vmem:[#allocation2 + $0xe8] sm:$0xff] %vm481, %v444
      %512 = vst.msk [vmem:[#allocation2 + $0xf0] sm:$0xff] %vm481, %v446
      %513 = vst.msk [vmem:[#allocation2 + $0xf8] sm:$0xff] %vm481, %v448
      %vm514 = vcmask 1045504
      %v515 = vrot.slane %v169, 2
      %v516 = vrot.slane %v170, 2
      %v517 = vsel %vm514, %v515, %v516
      %v518 = vrot.slane %v171, 2
      %v519 = vsel %vm514, %v516, %v518
      %v520 = vrot.slane %v172, 2
      %v521 = vrot.slane %v173, 2
      %v522 = vsel %vm514, %v520, %v521
      %v523 = vrot.slane %v174, 2
      %v524 = vsel %vm514, %v521, %v523
      %v525 = vrot.slane %v175, 2
      %v526 = vrot.slane %v176, 2
      %v527 = vsel %vm514, %v525, %v526
      %v528 = vrot.slane %v177, 2
      %v529 = vsel %vm514, %v526, %v528
      %v530 = vrot.slane %v178, 2
      %v531 = vrot.slane %v179, 2
      %v532 = vsel %vm514, %v530, %v531
      %v533 = vrot.slane %v180, 2
      %v534 = vsel %vm514, %v531, %v533
      %v535 = vrot.slane %v181, 2
      %v536 = vrot.slane %v182, 2
      %v537 = vsel %vm514, %v535, %v536
      %v538 = vrot.slane %v183, 2
      %v539 = vsel %vm514, %v536, %v538
      %v540 = vrot.slane %v184, 2
      %v541 = vrot.slane %v185, 2
      %v542 = vsel %vm514, %v540, %v541
      %v543 = vrot.slane %v186, 2
      %v544 = vsel %vm514, %v541, %v543
      %v545 = vrot.slane %v187, 2
      %v546 = vrot.slane %v188, 2
      %v547 = vsel %vm514, %v545, %v546
      %v548 = vrot.slane %v189, 2
      %v549 = vsel %vm514, %v546, %v548
      %v550 = vrot.slane %v190, 2
      %v551 = vrot.slane %v191, 2
      %v552 = vsel %vm514, %v550, %v551
      %v553 = vrot.slane %v192, 2
      %v554 = vsel %vm514, %v551, %v553
      %v555 = vrot.slane %v193, 2
      %v556 = vrot.slane %v194, 2
      %v557 = vsel %vm514, %v555, %v556
      %v558 = vrot.slane %v195, 2
      %v559 = vsel %vm514, %v556, %v558
      %v560 = vrot.slane %v196, 2
      %v561 = vrot.slane %v197, 2
      %v562 = vsel %vm514, %v560, %v561
      %v563 = vrot.slane %v198, 2
      %v564 = vsel %vm514, %v561, %v563
      %v565 = vrot.slane %v199, 2
      %v566 = vrot.slane %v200, 2
      %v567 = vsel %vm514, %v565, %v566
      %v568 = vrot.slane %v201, 2
      %v569 = vsel %vm514, %v566, %v568
      %v570 = vrot.slane %v202, 2
      %v571 = vrot.slane %v203, 2
      %v572 = vsel %vm514, %v570, %v571
      %v573 = vrot.slane %v204, 2
      %v574 = vsel %vm514, %v571, %v573
      %v575 = vrot.slane %v205, 2
      %v576 = vrot.slane %v206, 2
      %v577 = vsel %vm514, %v575, %v576
      %v578 = vrot.slane %v207, 2
      %v579 = vsel %vm514, %v576, %v578
      %v580 = vrot.slane %v208, 2
      %v581 = vrot.slane %v209, 2
      %v582 = vsel %vm514, %v580, %v581
      %v583 = vrot.slane %v210, 2
      %v584 = vsel %vm514, %v581, %v583
      %v585 = vrot.slane %v211, 2
      %v586 = vrot.slane %v212, 2
      %v587 = vsel %vm514, %v585, %v586
      %v588 = vrot.slane %v213, 2
      %v589 = vsel %vm514, %v586, %v588
      %v590 = vrot.slane %v214, 2
      %v591 = vrot.slane %v215, 2
      %v592 = vsel %vm514, %v590, %v591
      %v593 = vrot.slane %v216, 2
      %v594 = vsel %vm514, %v591, %v593
      %595 = vrot.lane.b32.xlu0 %v517, 8
      %v596 = vpop.permute.xlu0 %595
      %597 = vrot.lane.b32.xlu0 %v519, 8
      %v598 = vpop.permute.xlu0 %597
      %599 = vrot.lane.b32.xlu0 %v522, 8
      %v600 = vpop.permute.xlu0 %599
      %601 = vrot.lane.b32.xlu0 %v524, 8
      %v602 = vpop.permute.xlu0 %601
      %603 = vrot.lane.b32.xlu0 %v527, 8
      %v604 = vpop.permute.xlu0 %603
      %605 = vrot.lane.b32.xlu0 %v529, 8
      %v606 = vpop.permute.xlu0 %605
      %607 = vrot.lane.b32.xlu0 %v532, 8
      %v608 = vpop.permute.xlu0 %607
      %609 = vrot.lane.b32.xlu0 %v534, 8
      %v610 = vpop.permute.xlu0 %609
      %611 = vrot.lane.b32.xlu0 %v537, 8
      %v612 = vpop.permute.xlu0 %611
      %613 = vrot.lane.b32.xlu0 %v539, 8
      %v614 = vpop.permute.xlu0 %613
      %615 = vrot.lane.b32.xlu0 %v542, 8
      %v616 = vpop.permute.xlu0 %615
      %617 = vrot.lane.b32.xlu0 %v544, 8
      %v618 = vpop.permute.xlu0 %617
      %619 = vrot.lane.b32.xlu0 %v547, 8
      %v620 = vpop.permute.xlu0 %619
      %621 = vrot.lane.b32.xlu0 %v549, 8
      %v622 = vpop.permute.xlu0 %621
      %623 = vrot.lane.b32.xlu0 %v552, 8
      %v624 = vpop.permute.xlu0 %623
      %625 = vrot.lane.b32.xlu0 %v554, 8
      %v626 = vpop.permute.xlu0 %625
      %627 = vrot.lane.b32.xlu0 %v557, 8
      %v628 = vpop.permute.xlu0 %627
      %629 = vrot.lane.b32.xlu0 %v559, 8
      %v630 = vpop.permute.xlu0 %629
      %631 = vrot.lane.b32.xlu0 %v562, 8
      %v632 = vpop.permute.xlu0 %631
      %633 = vrot.lane.b32.xlu0 %v564, 8
      %v634 = vpop.permute.xlu0 %633
      %635 = vrot.lane.b32.xlu0 %v567, 8
      %v636 = vpop.permute.xlu0 %635
      %637 = vrot.lane.b32.xlu0 %v569, 8
      %v638 = vpop.permute.xlu0 %637
      %639 = vrot.lane.b32.xlu0 %v572, 8
      %v640 = vpop.permute.xlu0 %639
      %641 = vrot.lane.b32.xlu0 %v574, 8
      %v642 = vpop.permute.xlu0 %641
      %643 = vrot.lane.b32.xlu0 %v577, 8
      %v644 = vpop.permute.xlu0 %643
      %645 = vrot.lane.b32.xlu0 %v579, 8
      %v646 = vpop.permute.xlu0 %645
      %647 = vrot.lane.b32.xlu0 %v582, 8
      %v648 = vpop.permute.xlu0 %647
      %649 = vrot.lane.b32.xlu0 %v584, 8
      %v650 = vpop.permute.xlu0 %649
      %651 = vrot.lane.b32.xlu0 %v587, 8
      %v652 = vpop.permute.xlu0 %651
      %653 = vrot.lane.b32.xlu0 %v589, 8
      %v654 = vpop.permute.xlu0 %653
      %655 = vrot.lane.b32.xlu0 %v592, 8
      %v656 = vpop.permute.xlu0 %655
      %657 = vrot.lane.b32.xlu0 %v594, 8
      %v658 = vpop.permute.xlu0 %657
      %vm691 = vcmask 97344
      %692 = vst.msk [vmem:[#allocation2] sm:$0xff] %vm691, %v596
      %693 = vst.msk [vmem:[#allocation2 + $0x8] sm:$0xff] %vm691, %v598
      %694 = vst.msk [vmem:[#allocation2 + $0x10] sm:$0xff] %vm691, %v600
      %695 = vst.msk [vmem:[#allocation2 + $0x18] sm:$0xff] %vm691, %v602
      %696 = vst.msk [vmem:[#allocation2 + $0x20] sm:$0xff] %vm691, %v604
      %697 = vst.msk [vmem:[#allocation2 + $0x28] sm:$0xff] %vm691, %v606
      %698 = vst.msk [vmem:[#allocation2 + $0x30] sm:$0xff] %vm691, %v608
      %699 = vst.msk [vmem:[#allocation2 + $0x38] sm:$0xff] %vm691, %v610
      %700 = vst.msk [vmem:[#allocation2 + $0x40] sm:$0xff] %vm691, %v612
      %701 = vst.msk [vmem:[#allocation2 + $0x48] sm:$0xff] %vm691, %v614
      %702 = vst.msk [vmem:[#allocation2 + $0x50] sm:$0xff] %vm691, %v616
      %703 = vst.msk [vmem:[#allocation2 + $0x58] sm:$0xff] %vm691, %v618
      %704 = vst.msk [vmem:[#allocation2 + $0x60] sm:$0xff] %vm691, %v620
      %705 = vst.msk [vmem:[#allocation2 + $0x68] sm:$0xff] %vm691, %v622
      %706 = vst.msk [vmem:[#allocation2 + $0x70] sm:$0xff] %vm691, %v624
      %707 = vst.msk [vmem:[#allocation2 + $0x78] sm:$0xff] %vm691, %v626
      %708 = vst.msk [vmem:[#allocation2 + $0x80] sm:$0xff] %vm691, %v628
      %709 = vst.msk [vmem:[#allocation2 + $0x88] sm:$0xff] %vm691, %v630
      %710 = vst.msk [vmem:[#allocation2 + $0x90] sm:$0xff] %vm691, %v632
      %711 = vst.msk [vmem:[#allocation2 + $0x98] sm:$0xff] %vm691, %v634
      %712 = vst.msk [vmem:[#allocation2 + $0xa0] sm:$0xff] %vm691, %v636
      %713 = vst.msk [vmem:[#allocation2 + $0xa8] sm:$0xff] %vm691, %v638
      %714 = vst.msk [vmem:[#allocation2 + $0xb0] sm:$0xff] %vm691, %v640
      %715 = vst.msk [vmem:[#allocation2 + $0xb8] sm:$0xff] %vm691, %v642
      %716 = vst.msk [vmem:[#allocation2 + $0xc0] sm:$0xff] %vm691, %v644
      %717 = vst.msk [vmem:[#allocation2 + $0xc8] sm:$0xff] %vm691, %v646
      %718 = vst.msk [vmem:[#allocation2 + $0xd0] sm:$0xff] %vm691, %v648
      %719 = vst.msk [vmem:[#allocation2 + $0xd8] sm:$0xff] %vm691, %v650
      %720 = vst.msk [vmem:[#allocation2 + $0xe0] sm:$0xff] %vm691, %v652
      %721 = vst.msk [vmem:[#allocation2 + $0xe8] sm:$0xff] %vm691, %v654
      %722 = vst.msk [vmem:[#allocation2 + $0xf0] sm:$0xff] %vm691, %v656
      %723 = vst.msk [vmem:[#allocation2 + $0xf8] sm:$0xff] %vm691, %v658
      %726 = vrot.lane.b32.xlu0 %v172, 12
      %v727 = vpop.permute.xlu0 %726
      %728 = vrot.lane.b32.xlu0 %v173, 12
      %v729 = vpop.permute.xlu0 %728
      %730 = vrot.lane.b32.xlu0 %v175, 12
      %v731 = vpop.permute.xlu0 %730
      %732 = vrot.lane.b32.xlu0 %v176, 12
      %v733 = vpop.permute.xlu0 %732
      %734 = vrot.lane.b32.xlu0 %v178, 12
      %v735 = vpop.permute.xlu0 %734
      %736 = vrot.lane.b32.xlu0 %v179, 12
      %v737 = vpop.permute.xlu0 %736
      %738 = vrot.lane.b32.xlu0 %v181, 12
      %v739 = vpop.permute.xlu0 %738
      %740 = vrot.lane.b32.xlu0 %v182, 12
      %v741 = vpop.permute.xlu0 %740
      %742 = vrot.lane.b32.xlu0 %v184, 12
      %v743 = vpop.permute.xlu0 %742
      %744 = vrot.lane.b32.xlu0 %v185, 12
      %v745 = vpop.permute.xlu0 %744
      %746 = vrot.lane.b32.xlu0 %v187, 12
      %v747 = vpop.permute.xlu0 %746
      %748 = vrot.lane.b32.xlu0 %v188, 12
      %v749 = vpop.permute.xlu0 %748
      %750 = vrot.lane.b32.xlu0 %v190, 12
      %v751 = vpop.permute.xlu0 %750
      %752 = vrot.lane.b32.xlu0 %v191, 12
      %v753 = vpop.permute.xlu0 %752
      %754 = vrot.lane.b32.xlu0 %v193, 12
      %v755 = vpop.permute.xlu0 %754
      %756 = vrot.lane.b32.xlu0 %v194, 12
      %v757 = vpop.permute.xlu0 %756
      %758 = vrot.lane.b32.xlu0 %v196, 12
      %v759 = vpop.permute.xlu0 %758
      %760 = vrot.lane.b32.xlu0 %v197, 12
      %v761 = vpop.permute.xlu0 %760
      %762 = vrot.lane.b32.xlu0 %v199, 12
      %v763 = vpop.permute.xlu0 %762
      %764 = vrot.lane.b32.xlu0 %v200, 12
      %v765 = vpop.permute.xlu0 %764
      %766 = vrot.lane.b32.xlu0 %v202, 12
      %v767 = vpop.permute.xlu0 %766
      %768 = vrot.lane.b32.xlu0 %v203, 12
      %v769 = vpop.permute.xlu0 %768
      %770 = vrot.lane.b32.xlu0 %v205, 12
      %v771 = vpop.permute.xlu0 %770
      %772 = vrot.lane.b32.xlu0 %v206, 12
      %v773 = vpop.permute.xlu0 %772
      %774 = vrot.lane.b32.xlu0 %v208, 12
      %v775 = vpop.permute.xlu0 %774
      %776 = vrot.lane.b32.xlu0 %v209, 12
      %v777 = vpop.permute.xlu0 %776
      %778 = vrot.lane.b32.xlu0 %v211, 12
      %v779 = vpop.permute.xlu0 %778
      %780 = vrot.lane.b32.xlu0 %v212, 12
      %v781 = vpop.permute.xlu0 %780
      %782 = vrot.lane.b32.xlu0 %v214, 12
      %v783 = vpop.permute.xlu0 %782
      %784 = vrot.lane.b32.xlu0 %v215, 12
      %v785 = vpop.permute.xlu0 %784
      %786 = vrot.lane.b32.xlu0 %v217, 12
      %v787 = vpop.permute.xlu0 %786
      %788 = vrot.lane.b32.xlu0 %v218, 12
      %v789 = vpop.permute.xlu0 %788
      %vm822 = vcmask 130144
      %823 = vst.msk [vmem:[#allocation2] sm:$0xff] %vm822, %v727
      %824 = vst.msk [vmem:[#allocation2 + $0x8] sm:$0xff] %vm822, %v729
      %825 = vst.msk [vmem:[#allocation2 + $0x10] sm:$0xff] %vm822, %v731
      %826 = vst.msk [vmem:[#allocation2 + $0x18] sm:$0xff] %vm822, %v733
      %827 = vst.msk [vmem:[#allocation2 + $0x20] sm:$0xff] %vm822, %v735
      %828 = vst.msk [vmem:[#allocation2 + $0x28] sm:$0xff] %vm822, %v737
      %829 = vst.msk [vmem:[#allocation2 + $0x30] sm:$0xff] %vm822, %v739
      %830 = vst.msk [vmem:[#allocation2 + $0x38] sm:$0xff] %vm822, %v741
      %831 = vst.msk [vmem:[#allocation2 + $0x40] sm:$0xff] %vm822, %v743
      %832 = vst.msk [vmem:[#allocation2 + $0x48] sm:$0xff] %vm822, %v745
      %833 = vst.msk [vmem:[#allocation2 + $0x50] sm:$0xff] %vm822, %v747
      %834 = vst.msk [vmem:[#allocation2 + $0x58] sm:$0xff] %vm822, %v749
      %835 = vst.msk [vmem:[#allocation2 + $0x60] sm:$0xff] %vm822, %v751
      %836 = vst.msk [vmem:[#allocation2 + $0x68] sm:$0xff] %vm822, %v753
      %837 = vst.msk [vmem:[#allocation2 + $0x70] sm:$0xff] %vm822, %v755
      %838 = vst.msk [vmem:[#allocation2 + $0x78] sm:$0xff] %vm822, %v757
      %839 = vst.msk [vmem:[#allocation2 + $0x80] sm:$0xff] %vm822, %v759
      %840 = vst.msk [vmem:[#allocation2 + $0x88] sm:$0xff] %vm822, %v761
      %841 = vst.msk [vmem:[#allocation2 + $0x90] sm:$0xff] %vm822, %v763
      %842 = vst.msk [vmem:[#allocation2 + $0x98] sm:$0xff] %vm822, %v765
      %843 = vst.msk [vmem:[#allocation2 + $0xa0] sm:$0xff] %vm822, %v767
      %844 = vst.msk [vmem:[#allocation2 + $0xa8] sm:$0xff] %vm822, %v769
      %845 = vst.msk [vmem:[#allocation2 + $0xb0] sm:$0xff] %vm822, %v771
      %846 = vst.msk [vmem:[#allocation2 + $0xb8] sm:$0xff] %vm822, %v773
      %847 = vst.msk [vmem:[#allocation2 + $0xc0] sm:$0xff] %vm822, %v775
      %848 = vst.msk [vmem:[#allocation2 + $0xc8] sm:$0xff] %vm822, %v777
      %849 = vst.msk [vmem:[#allocation2 + $0xd0] sm:$0xff] %vm822, %v779
      %850 = vst.msk [vmem:[#allocation2 + $0xd8] sm:$0xff] %vm822, %v781
      %851 = vst.msk [vmem:[#allocation2 + $0xe0] sm:$0xff] %vm822, %v783
      %852 = vst.msk [vmem:[#allocation2 + $0xe8] sm:$0xff] %vm822, %v785
      %853 = vst.msk [vmem:[#allocation2 + $0xf0] sm:$0xff] %vm822, %v787
      %854 = vst.msk [vmem:[#allocation2 + $0xf8] sm:$0xff] %vm822, %v789
      %v856 = vrot.slane %v217, 1
      %v857 = vrot.slane %v218, 1
      %v858 = vsel %vm304, %v856, %v857
      %v859 = vrot.slane %v219, 1
      %v860 = vsel %vm304, %v857, %v859
      %861 = vrot.lane.b32.xlu0 %v312, 16
      %v862 = vpop.permute.xlu0 %861
      %863 = vrot.lane.b32.xlu0 %v314, 16
      %v864 = vpop.permute.xlu0 %863
      %865 = vrot.lane.b32.xlu0 %v317, 16
      %v866 = vpop.permute.xlu0 %865
      %867 = vrot.lane.b32.xlu0 %v319, 16
      %v868 = vpop.permute.xlu0 %867
      %869 = vrot.lane.b32.xlu0 %v322, 16
      %v870 = vpop.permute.xlu0 %869
      %871 = vrot.lane.b32.xlu0 %v324, 16
      %v872 = vpop.permute.xlu0 %871
      %873 = vrot.lane.b32.xlu0 %v327, 16
      %v874 = vpop.permute.xlu0 %873
      %875 = vrot.lane.b32.xlu0 %v329, 16
      %v876 = vpop.permute.xlu0 %875
      %877 = vrot.lane.b32.xlu0 %v332, 16
      %v878 = vpop.permute.xlu0 %877
      %879 = vrot.lane.b32.xlu0 %v334, 16
      %v880 = vpop.permute.xlu0 %879
      %881 = vrot.lane.b32.xlu0 %v337, 16
      %v882 = vpop.permute.xlu0 %881
      %883 = vrot.lane.b32.xlu0 %v339, 16
      %v884 = vpop.permute.xlu0 %883
      %885 = vrot.lane.b32.xlu0 %v342, 16
      %v886 = vpop.permute.xlu0 %885
      %887 = vrot.lane.b32.xlu0 %v344, 16
      %v888 = vpop.permute.xlu0 %887
      %889 = vrot.lane.b32.xlu0 %v347, 16
      %v890 = vpop.permute.xlu0 %889
      %891 = vrot.lane.b32.xlu0 %v349, 16
      %v892 = vpop.permute.xlu0 %891
      %893 = vrot.lane.b32.xlu0 %v352, 16
      %v894 = vpop.permute.xlu0 %893
      %895 = vrot.lane.b32.xlu0 %v354, 16
      %v896 = vpop.permute.xlu0 %895
      %897 = vrot.lane.b32.xlu0 %v357, 16
      %v898 = vpop.permute.xlu0 %897
      %899 = vrot.lane.b32.xlu0 %v359, 16
      %v900 = vpop.permute.xlu0 %899
      %901 = vrot.lane.b32.xlu0 %v362, 16
      %v902 = vpop.permute.xlu0 %901
      %903 = vrot.lane.b32.xlu0 %v364, 16
      %v904 = vpop.permute.xlu0 %903
      %905 = vrot.lane.b32.xlu0 %v367, 16
      %v906 = vpop.permute.xlu0 %905
      %907 = vrot.lane.b32.xlu0 %v369, 16
      %v908 = vpop.permute.xlu0 %907
      %909 = vrot.lane.b32.xlu0 %v372, 16
      %v910 = vpop.permute.xlu0 %909
      %911 = vrot.lane.b32.xlu0 %v374, 16
      %v912 = vpop.permute.xlu0 %911
      %913 = vrot.lane.b32.xlu0 %v377, 16
      %v914 = vpop.permute.xlu0 %913
      %915 = vrot.lane.b32.xlu0 %v379, 16
      %v916 = vpop.permute.xlu0 %915
      %917 = vrot.lane.b32.xlu0 %v382, 16
      %v918 = vpop.permute.xlu0 %917
      %919 = vrot.lane.b32.xlu0 %v384, 16
      %v920 = vpop.permute.xlu0 %919
      %921 = vrot.lane.b32.xlu0 %v858, 16
      %v922 = vpop.permute.xlu0 %921
      %923 = vrot.lane.b32.xlu0 %v860, 16
      %v924 = vpop.permute.xlu0 %923
      %vm957 = vcmask 162944
      %958 = vst.msk [vmem:[#allocation2] sm:$0xff] %vm957, %v862
      %959 = vst.msk [vmem:[#allocation2 + $0x8] sm:$0xff] %vm957, %v864
      %960 = vst.msk [vmem:[#allocation2 + $0x10] sm:$0xff] %vm957, %v866
      %961 = vst.msk [vmem:[#allocation2 + $0x18] sm:$0xff] %vm957, %v868
      %962 = vst.msk [vmem:[#allocation2 + $0x20] sm:$0xff] %vm957, %v870
      %963 = vst.msk [vmem:[#allocation2 + $0x28] sm:$0xff] %vm957, %v872
      %964 = vst.msk [vmem:[#allocation2 + $0x30] sm:$0xff] %vm957, %v874
      %965 = vst.msk [vmem:[#allocation2 + $0x38] sm:$0xff] %vm957, %v876
      %966 = vst.msk [vmem:[#allocation2 + $0x40] sm:$0xff] %vm957, %v878
      %967 = vst.msk [vmem:[#allocation2 + $0x48] sm:$0xff] %vm957, %v880
      %968 = vst.msk [vmem:[#allocation2 + $0x50] sm:$0xff] %vm957, %v882
      %969 = vst.msk [vmem:[#allocation2 + $0x58] sm:$0xff] %vm957, %v884
      %970 = vst.msk [vmem:[#allocation2 + $0x60] sm:$0xff] %vm957, %v886
      %971 = vst.msk [vmem:[#allocation2 + $0x68] sm:$0xff] %vm957, %v888
      %972 = vst.msk [vmem:[#allocation2 + $0x70] sm:$0xff] %vm957, %v890
      %973 = vst.msk [vmem:[#allocation2 + $0x78] sm:$0xff] %vm957, %v892
      %974 = vst.msk [vmem:[#allocation2 + $0x80] sm:$0xff] %vm957, %v894
      %975 = vst.msk [vmem:[#allocation2 + $0x88] sm:$0xff] %vm957, %v896
      %976 = vst.msk [vmem:[#allocation2 + $0x90] sm:$0xff] %vm957, %v898
      %977 = vst.msk [vmem:[#allocation2 + $0x98] sm:$0xff] %vm957, %v900
      %978 = vst.msk [vmem:[#allocation2 + $0xa0] sm:$0xff] %vm957, %v902
      %979 = vst.msk [vmem:[#allocation2 + $0xa8] sm:$0xff] %vm957, %v904
      %980 = vst.msk [vmem:[#allocation2 + $0xb0] sm:$0xff] %vm957, %v906
      %981 = vst.msk [vmem:[#allocation2 + $0xb8] sm:$0xff] %vm957, %v908
      %982 = vst.msk [vmem:[#allocation2 + $0xc0] sm:$0xff] %vm957, %v910
      %983 = vst.msk [vmem:[#allocation2 + $0xc8] sm:$0xff] %vm957, %v912
      %984 = vst.msk [vmem:[#allocation2 + $0xd0] sm:$0xff] %vm957, %v914
      %985 = vst.msk [vmem:[#allocation2 + $0xd8] sm:$0xff] %vm957, %v916
      %986 = vst.msk [vmem:[#allocation2 + $0xe0] sm:$0xff] %vm957, %v918
      %987 = vst.msk [vmem:[#allocation2 + $0xe8] sm:$0xff] %vm957, %v920
      %988 = vst.msk [vmem:[#allocation2 + $0xf0] sm:$0xff] %vm957, %v922
      %989 = vst.msk [vmem:[#allocation2 + $0xf8] sm:$0xff] %vm957, %v924
      %v990 = vrot.slane %v217, 2
      %v991 = vrot.slane %v218, 2
      %v992 = vsel %vm514, %v990, %v991
      %v993 = vrot.slane %v219, 2
      %v994 = vsel %vm514, %v991, %v993
      %995 = vrot.lane.b32.xlu0 %v522, 20
      %v996 = vpop.permute.xlu0 %995
      %997 = vrot.lane.b32.xlu0 %v524, 20
      %v998 = vpop.permute.xlu0 %997
      %999 = vrot.lane.b32.xlu0 %v527, 20
      %v1000 = vpop.permute.xlu0 %999
      %1001 = vrot.lane.b32.xlu0 %v529, 20
      %v1002 = vpop.permute.xlu0 %1001
      %1003 = vrot.lane.b32.xlu0 %v532, 20
      %v1004 = vpop.permute.xlu0 %1003
      %1005 = vrot.lane.b32.xlu0 %v534, 20
      %v1006 = vpop.permute.xlu0 %1005
      %1007 = vrot.lane.b32.xlu0 %v537, 20
      %v1008 = vpop.permute.xlu0 %1007
      %1009 = vrot.lane.b32.xlu0 %v539, 20
      %v1010 = vpop.permute.xlu0 %1009
      %1011 = vrot.lane.b32.xlu0 %v542, 20
      %v1012 = vpop.permute.xlu0 %1011
      %1013 = vrot.lane.b32.xlu0 %v544, 20
      %v1014 = vpop.permute.xlu0 %1013
      %1015 = vrot.lane.b32.xlu0 %v547, 20
      %v1016 = vpop.permute.xlu0 %1015
      %1017 = vrot.lane.b32.xlu0 %v549, 20
      %v1018 = vpop.permute.xlu0 %1017
      %1019 = vrot.lane.b32.xlu0 %v552, 20
      %v1020 = vpop.permute.xlu0 %1019
      %1021 = vrot.lane.b32.xlu0 %v554, 20
      %v1022 = vpop.permute.xlu0 %1021
      %1023 = vrot.lane.b32.xlu0 %v557, 20
      %v1024 = vpop.permute.xlu0 %1023
      %1025 = vrot.lane.b32.xlu0 %v559, 20
      %v1026 = vpop.permute.xlu0 %1025
      %1027 = vrot.lane.b32.xlu0 %v562, 20
      %v1028 = vpop.permute.xlu0 %1027
      %1029 = vrot.lane.b32.xlu0 %v564, 20
      %v1030 = vpop.permute.xlu0 %1029
      %1031 = vrot.lane.b32.xlu0 %v567, 20
      %v1032 = vpop.permute.xlu0 %1031
      %1033 = vrot.lane.b32.xlu0 %v569, 20
      %v1034 = vpop.permute.xlu0 %1033
      %1035 = vrot.lane.b32.xlu0 %v572, 20
      %v1036 = vpop.permute.xlu0 %1035
      %1037 = vrot.lane.b32.xlu0 %v574, 20
      %v1038 = vpop.permute.xlu0 %1037
      %1039 = vrot.lane.b32.xlu0 %v577, 20
      %v1040 = vpop.permute.xlu0 %1039
      %1041 = vrot.lane.b32.xlu0 %v579, 20
      %v1042 = vpop.permute.xlu0 %1041
      %1043 = vrot.lane.b32.xlu0 %v582, 20
      %v1044 = vpop.permute.xlu0 %1043
      %1045 = vrot.lane.b32.xlu0 %v584, 20
      %v1046 = vpop.permute.xlu0 %1045
      %1047 = vrot.lane.b32.xlu0 %v587, 20
      %v1048 = vpop.permute.xlu0 %1047
      %1049 = vrot.lane.b32.xlu0 %v589, 20
      %v1050 = vpop.permute.xlu0 %1049
      %1051 = vrot.lane.b32.xlu0 %v592, 20
      %v1052 = vpop.permute.xlu0 %1051
      %1053 = vrot.lane.b32.xlu0 %v594, 20
      %v1054 = vpop.permute.xlu0 %1053
      %1055 = vrot.lane.b32.xlu0 %v992, 20
      %v1056 = vpop.permute.xlu0 %1055
      %1057 = vrot.lane.b32.xlu0 %v994, 20
      %v1058 = vpop.permute.xlu0 %1057
      %vm1091 = vcmask 195744
      %1092 = vst.msk [vmem:[#allocation2] sm:$0xff] %vm1091, %v996
      %1093 = vst.msk [vmem:[#allocation2 + $0x8] sm:$0xff] %vm1091, %v998
      %1094 = vst.msk [vmem:[#allocation2 + $0x10] sm:$0xff] %vm1091, %v1000
      %1095 = vst.msk [vmem:[#allocation2 + $0x18] sm:$0xff] %vm1091, %v1002
      %1096 = vst.msk [vmem:[#allocation2 + $0x20] sm:$0xff] %vm1091, %v1004
      %1097 = vst.msk [vmem:[#allocation2 + $0x28] sm:$0xff] %vm1091, %v1006
      %1098 = vst.msk [vmem:[#allocation2 + $0x30] sm:$0xff] %vm1091, %v1008
      %1099 = vst.msk [vmem:[#allocation2 + $0x38] sm:$0xff] %vm1091, %v1010
      %1100 = vst.msk [vmem:[#allocation2 + $0x40] sm:$0xff] %vm1091, %v1012
      %1101 = vst.msk [vmem:[#allocation2 + $0x48] sm:$0xff] %vm1091, %v1014
      %1102 = vst.msk [vmem:[#allocation2 + $0x50] sm:$0xff] %vm1091, %v1016
      %1103 = vst.msk [vmem:[#allocation2 + $0x58] sm:$0xff] %vm1091, %v1018
      %1104 = vst.msk [vmem:[#allocation2 + $0x60] sm:$0xff] %vm1091, %v1020
      %1105 = vst.msk [vmem:[#allocation2 + $0x68] sm:$0xff] %vm1091, %v1022
      %1106 = vst.msk [vmem:[#allocation2 + $0x70] sm:$0xff] %vm1091, %v1024
      %1107 = vst.msk [vmem:[#allocation2 + $0x78] sm:$0xff] %vm1091, %v1026
      %1108 = vst.msk [vmem:[#allocation2 + $0x80] sm:$0xff] %vm1091, %v1028
      %1109 = vst.msk [vmem:[#allocation2 + $0x88] sm:$0xff] %vm1091, %v1030
      %1110 = vst.msk [vmem:[#allocation2 + $0x90] sm:$0xff] %vm1091, %v1032
      %1111 = vst.msk [vmem:[#allocation2 + $0x98] sm:$0xff] %vm1091, %v1034
      %1112 = vst.msk [vmem:[#allocation2 + $0xa0] sm:$0xff] %vm1091, %v1036
      %1113 = vst.msk [vmem:[#allocation2 + $0xa8] sm:$0xff] %vm1091, %v1038
      %1114 = vst.msk [vmem:[#allocation2 + $0xb0] sm:$0xff] %vm1091, %v1040
      %1115 = vst.msk [vmem:[#allocation2 + $0xb8] sm:$0xff] %vm1091, %v1042
      %1116 = vst.msk [vmem:[#allocation2 + $0xc0] sm:$0xff] %vm1091, %v1044
      %1117 = vst.msk [vmem:[#allocation2 + $0xc8] sm:$0xff] %vm1091, %v1046
      %1118 = vst.msk [vmem:[#allocation2 + $0xd0] sm:$0xff] %vm1091, %v1048
      %1119 = vst.msk [vmem:[#allocation2 + $0xd8] sm:$0xff] %vm1091, %v1050
      %1120 = vst.msk [vmem:[#allocation2 + $0xe0] sm:$0xff] %vm1091, %v1052
      %1121 = vst.msk [vmem:[#allocation2 + $0xe8] sm:$0xff] %vm1091, %v1054
      %1122 = vst.msk [vmem:[#allocation2 + $0xf0] sm:$0xff] %vm1091, %v1056
      %1123 = vst.msk [vmem:[#allocation2 + $0xf8] sm:$0xff] %vm1091, %v1058
      %1126 = vrot.lane.b32.xlu0 %v175, 24
      %v1127 = vpop.permute.xlu0 %1126
      %1128 = vrot.lane.b32.xlu0 %v176, 24
      %v1129 = vpop.permute.xlu0 %1128
      %1130 = vrot.lane.b32.xlu0 %v178, 24
      %v1131 = vpop.permute.xlu0 %1130
      %1132 = vrot.lane.b32.xlu0 %v179, 24
      %v1133 = vpop.permute.xlu0 %1132
      %1134 = vrot.lane.b32.xlu0 %v181, 24
      %v1135 = vpop.permute.xlu0 %1134
      %1136 = vrot.lane.b32.xlu0 %v182, 24
      %v1137 = vpop.permute.xlu0 %1136
      %1138 = vrot.lane.b32.xlu0 %v184, 24
      %v1139 = vpop.permute.xlu0 %1138
      %1140 = vrot.lane.b32.xlu0 %v185, 24
      %v1141 = vpop.permute.xlu0 %1140
      %1142 = vrot.lane.b32.xlu0 %v187, 24
      %v1143 = vpop.permute.xlu0 %1142
      %1144 = vrot.lane.b32.xlu0 %v188, 24
      %v1145 = vpop.permute.xlu0 %1144
      %1146 = vrot.lane.b32.xlu0 %v190, 24
      %v1147 = vpop.permute.xlu0 %1146
      %1148 = vrot.lane.b32.xlu0 %v191, 24
      %v1149 = vpop.permute.xlu0 %1148
      %1150 = vrot.lane.b32.xlu0 %v193, 24
      %v1151 = vpop.permute.xlu0 %1150
      %1152 = vrot.lane.b32.xlu0 %v194, 24
      %v1153 = vpop.permute.xlu0 %1152
      %1154 = vrot.lane.b32.xlu0 %v196, 24
      %v1155 = vpop.permute.xlu0 %1154
      %1156 = vrot.lane.b32.xlu0 %v197, 24
      %v1157 = vpop.permute.xlu0 %1156
      %1158 = vrot.lane.b32.xlu0 %v199, 24
      %v1159 = vpop.permute.xlu0 %1158
      %1160 = vrot.lane.b32.xlu0 %v200, 24
      %v1161 = vpop.permute.xlu0 %1160
      %1162 = vrot.lane.b32.xlu0 %v202, 24
      %v1163 = vpop.permute.xlu0 %1162
      %1164 = vrot.lane.b32.xlu0 %v203, 24
      %v1165 = vpop.permute.xlu0 %1164
      %1166 = vrot.lane.b32.xlu0 %v205, 24
      %v1167 = vpop.permute.xlu0 %1166
      %1168 = vrot.lane.b32.xlu0 %v206, 24
      %v1169 = vpop.permute.xlu0 %1168
      %1170 = vrot.lane.b32.xlu0 %v208, 24
      %v1171 = vpop.permute.xlu0 %1170
      %1172 = vrot.lane.b32.xlu0 %v209, 24
      %v1173 = vpop.permute.xlu0 %1172
      %1174 = vrot.lane.b32.xlu0 %v211, 24
      %v1175 = vpop.permute.xlu0 %1174
      %1176 = vrot.lane.b32.xlu0 %v212, 24
      %v1177 = vpop.permute.xlu0 %1176
      %1178 = vrot.lane.b32.xlu0 %v214, 24
      %v1179 = vpop.permute.xlu0 %1178
      %1180 = vrot.lane.b32.xlu0 %v215, 24
      %v1181 = vpop.permute.xlu0 %1180
      %1182 = vrot.lane.b32.xlu0 %v217, 24
      %v1183 = vpop.permute.xlu0 %1182
      %1184 = vrot.lane.b32.xlu0 %v218, 24
      %v1185 = vpop.permute.xlu0 %1184
      %1186 = vrot.lane.b32.xlu0 %v220, 24
      %v1187 = vpop.permute.xlu0 %1186
      %1188 = vrot.lane.b32.xlu0 %v221, 24
      %v1189 = vpop.permute.xlu0 %1188
      %vm1222 = vcmask 228544
      %1223 = vst.msk [vmem:[#allocation2] sm:$0xff] %vm1222, %v1127
      %1224 = vst.msk [vmem:[#allocation2 + $0x8] sm:$0xff] %vm1222, %v1129
      %1225 = vst.msk [vmem:[#allocation2 + $0x10] sm:$0xff] %vm1222, %v1131
      %1226 = vst.msk [vmem:[#allocation2 + $0x18] sm:$0xff] %vm1222, %v1133
      %1227 = vst.msk [vmem:[#allocation2 + $0x20] sm:$0xff] %vm1222, %v1135
      %1228 = vst.msk [vmem:[#allocation2 + $0x28] sm:$0xff] %vm1222, %v1137
      %1229 = vst.msk [vmem:[#allocation2 + $0x30] sm:$0xff] %vm1222, %v1139
      %1230 = vst.msk [vmem:[#allocation2 + $0x38] sm:$0xff] %vm1222, %v1141
      %1231 = vst.msk [vmem:[#allocation2 + $0x40] sm:$0xff] %vm1222, %v1143
      %1232 = vst.msk [vmem:[#allocation2 + $0x48] sm:$0xff] %vm1222, %v1145
      %1233 = vst.msk [vmem:[#allocation2 + $0x50] sm:$0xff] %vm1222, %v1147
      %1234 = vst.msk [vmem:[#allocation2 + $0x58] sm:$0xff] %vm1222, %v1149
      %1235 = vst.msk [vmem:[#allocation2 + $0x60] sm:$0xff] %vm1222, %v1151
      %1236 = vst.msk [vmem:[#allocation2 + $0x68] sm:$0xff] %vm1222, %v1153
      %1237 = vst.msk [vmem:[#allocation2 + $0x70] sm:$0xff] %vm1222, %v1155
      %1238 = vst.msk [vmem:[#allocation2 + $0x78] sm:$0xff] %vm1222, %v1157
      %1239 = vst.msk [vmem:[#allocation2 + $0x80] sm:$0xff] %vm1222, %v1159
      %1240 = vst.msk [vmem:[#allocation2 + $0x88] sm:$0xff] %vm1222, %v1161
      %1241 = vst.msk [vmem:[#allocation2 + $0x90] sm:$0xff] %vm1222, %v1163
      %1242 = vst.msk [vmem:[#allocation2 + $0x98] sm:$0xff] %vm1222, %v1165
      %1243 = vst.msk [vmem:[#allocation2 + $0xa0] sm:$0xff] %vm1222, %v1167
      %1244 = vst.msk [vmem:[#allocation2 + $0xa8] sm:$0xff] %vm1222, %v1169
      %1245 = vst.msk [vmem:[#allocation2 + $0xb0] sm:$0xff] %vm1222, %v1171
      %1246 = vst.msk [vmem:[#allocation2 + $0xb8] sm:$0xff] %vm1222, %v1173
      %1247 = vst.msk [vmem:[#allocation2 + $0xc0] sm:$0xff] %vm1222, %v1175
      %1248 = vst.msk [vmem:[#allocation2 + $0xc8] sm:$0xff] %vm1222, %v1177
      %1249 = vst.msk [vmem:[#allocation2 + $0xd0] sm:$0xff] %vm1222, %v1179
      %1250 = vst.msk [vmem:[#allocation2 + $0xd8] sm:$0xff] %vm1222, %v1181
      %1251 = vst.msk [vmem:[#allocation2 + $0xe0] sm:$0xff] %vm1222, %v1183
      %1252 = vst.msk [vmem:[#allocation2 + $0xe8] sm:$0xff] %vm1222, %v1185
      %1253 = vst.msk [vmem:[#allocation2 + $0xf0] sm:$0xff] %vm1222, %v1187
      %1254 = vst.msk [vmem:[#allocation2 + $0xf8] sm:$0xff] %vm1222, %v1189
      %v1256 = vrot.slane %v220, 1
      %v1257 = vrot.slane %v221, 1
      %v1258 = vsel %vm304, %v1256, %v1257
      %v1259 = vrot.slane %v222, 1
      %v1260 = vsel %vm304, %v1257, %v1259
      %1261 = vrot.lane.b32.xlu0 %v317, 28
      %v1262 = vpop.permute.xlu0 %1261
      %1263 = vrot.lane.b32.xlu0 %v319, 28
      %v1264 = vpop.permute.xlu0 %1263
      %1265 = vrot.lane.b32.xlu0 %v322, 28
      %v1266 = vpop.permute.xlu0 %1265
      %1267 = vrot.lane.b32.xlu0 %v324, 28
      %v1268 = vpop.permute.xlu0 %1267
      %1269 = vrot.lane.b32.xlu0 %v327, 28
      %v1270 = vpop.permute.xlu0 %1269
      %1271 = vrot.lane.b32.xlu0 %v329, 28
      %v1272 = vpop.permute.xlu0 %1271
      %1273 = vrot.lane.b32.xlu0 %v332, 28
      %v1274 = vpop.permute.xlu0 %1273
      %1275 = vrot.lane.b32.xlu0 %v334, 28
      %v1276 = vpop.permute.xlu0 %1275
      %1277 = vrot.lane.b32.xlu0 %v337, 28
      %v1278 = vpop.permute.xlu0 %1277
      %1279 = vrot.lane.b32.xlu0 %v339, 28
      %v1280 = vpop.permute.xlu0 %1279
      %1281 = vrot.lane.b32.xlu0 %v342, 28
      %v1282 = vpop.permute.xlu0 %1281
      %1283 = vrot.lane.b32.xlu0 %v344, 28
      %v1284 = vpop.permute.xlu0 %1283
      %1285 = vrot.lane.b32.xlu0 %v347, 28
      %v1286 = vpop.permute.xlu0 %1285
      %1287 = vrot.lane.b32.xlu0 %v349, 28
      %v1288 = vpop.permute.xlu0 %1287
      %1289 = vrot.lane.b32.xlu0 %v352, 28
      %v1290 = vpop.permute.xlu0 %1289
      %1291 = vrot.lane.b32.xlu0 %v354, 28
      %v1292 = vpop.permute.xlu0 %1291
      %1293 = vrot.lane.b32.xlu0 %v357, 28
      %v1294 = vpop.permute.xlu0 %1293
      %1295 = vrot.lane.b32.xlu0 %v359, 28
      %v1296 = vpop.permute.xlu0 %1295
      %1297 = vrot.lane.b32.xlu0 %v362, 28
      %v1298 = vpop.permute.xlu0 %1297
      %1299 = vrot.lane.b32.xlu0 %v364, 28
      %v1300 = vpop.permute.xlu0 %1299
      %1301 = vrot.lane.b32.xlu0 %v367, 28
      %v1302 = vpop.permute.xlu0 %1301
      %1303 = vrot.lane.b32.xlu0 %v369, 28
      %v1304 = vpop.permute.xlu0 %1303
      %1305 = vrot.lane.b32.xlu0 %v372, 28
      %v1306 = vpop.permute.xlu0 %1305
      %1307 = vrot.lane.b32.xlu0 %v374, 28
      %v1308 = vpop.permute.xlu0 %1307
      %1309 = vrot.lane.b32.xlu0 %v377, 28
      %v1310 = vpop.permute.xlu0 %1309
      %1311 = vrot.lane.b32.xlu0 %v379, 28
      %v1312 = vpop.permute.xlu0 %1311
      %1313 = vrot.lane.b32.xlu0 %v382, 28
      %v1314 = vpop.permute.xlu0 %1313
      %1315 = vrot.lane.b32.xlu0 %v384, 28
      %v1316 = vpop.permute.xlu0 %1315
      %1317 = vrot.lane.b32.xlu0 %v858, 28
      %v1318 = vpop.permute.xlu0 %1317
      %1319 = vrot.lane.b32.xlu0 %v860, 28
      %v1320 = vpop.permute.xlu0 %1319
      %1321 = vrot.lane.b32.xlu0 %v1258, 28
      %v1322 = vpop.permute.xlu0 %1321
      %1323 = vrot.lane.b32.xlu0 %v1260, 28
      %v1324 = vpop.permute.xlu0 %1323
      %vm1357 = vcmask 261344
      %1358 = vst.msk [vmem:[#allocation2] sm:$0xff] %vm1357, %v1262
      %1359 = vst.msk [vmem:[#allocation2 + $0x8] sm:$0xff] %vm1357, %v1264
      %1360 = vst.msk [vmem:[#allocation2 + $0x10] sm:$0xff] %vm1357, %v1266
      %1361 = vst.msk [vmem:[#allocation2 + $0x18] sm:$0xff] %vm1357, %v1268
      %1362 = vst.msk [vmem:[#allocation2 + $0x20] sm:$0xff] %vm1357, %v1270
      %1363 = vst.msk [vmem:[#allocation2 + $0x28] sm:$0xff] %vm1357, %v1272
      %1364 = vst.msk [vmem:[#allocation2 + $0x30] sm:$0xff] %vm1357, %v1274
      %1365 = vst.msk [vmem:[#allocation2 + $0x38] sm:$0xff] %vm1357, %v1276
      %1366 = vst.msk [vmem:[#allocation2 + $0x40] sm:$0xff] %vm1357, %v1278
      %1367 = vst.msk [vmem:[#allocation2 + $0x48] sm:$0xff] %vm1357, %v1280
      %1368 = vst.msk [vmem:[#allocation2 + $0x50] sm:$0xff] %vm1357, %v1282
      %1369 = vst.msk [vmem:[#allocation2 + $0x58] sm:$0xff] %vm1357, %v1284
      %1370 = vst.msk [vmem:[#allocation2 + $0x60] sm:$0xff] %vm1357, %v1286
      %1371 = vst.msk [vmem:[#allocation2 + $0x68] sm:$0xff] %vm1357, %v1288
      %1372 = vst.msk [vmem:[#allocation2 + $0x70] sm:$0xff] %vm1357, %v1290
      %1373 = vst.msk [vmem:[#allocation2 + $0x78] sm:$0xff] %vm1357, %v1292
      %1374 = vst.msk [vmem:[#allocation2 + $0x80] sm:$0xff] %vm1357, %v1294
      %1375 = vst.msk [vmem:[#allocation2 + $0x88] sm:$0xff] %vm1357, %v1296
      %1376 = vst.msk [vmem:[#allocation2 + $0x90] sm:$0xff] %vm1357, %v1298
      %1377 = vst.msk [vmem:[#allocation2 + $0x98] sm:$0xff] %vm1357, %v1300
      %1378 = vst.msk [vmem:[#allocation2 + $0xa0] sm:$0xff] %vm1357, %v1302
      %1379 = vst.msk [vmem:[#allocation2 + $0xa8] sm:$0xff] %vm1357, %v1304
      %1380 = vst.msk [vmem:[#allocation2 + $0xb0] sm:$0xff] %vm1357, %v1306
      %1381 = vst.msk [vmem:[#allocation2 + $0xb8] sm:$0xff] %vm1357, %v1308
      %1382 = vst.msk [vmem:[#allocation2 + $0xc0] sm:$0xff] %vm1357, %v1310
      %1383 = vst.msk [vmem:[#allocation2 + $0xc8] sm:$0xff] %vm1357, %v1312
      %1384 = vst.msk [vmem:[#allocation2 + $0xd0] sm:$0xff] %vm1357, %v1314
      %1385 = vst.msk [vmem:[#allocation2 + $0xd8] sm:$0xff] %vm1357, %v1316
      %1386 = vst.msk [vmem:[#allocation2 + $0xe0] sm:$0xff] %vm1357, %v1318
      %1387 = vst.msk [vmem:[#allocation2 + $0xe8] sm:$0xff] %vm1357, %v1320
      %1388 = vst.msk [vmem:[#allocation2 + $0xf0] sm:$0xff] %vm1357, %v1322
      %1389 = vst.msk [vmem:[#allocation2 + $0xf8] sm:$0xff] %vm1357, %v1324
      %v1390 = vrot.slane %v220, 2
      %v1391 = vrot.slane %v221, 2
      %v1392 = vsel %vm514, %v1390, %v1391
      %v1393 = vrot.slane %v222, 2
      %v1394 = vsel %vm514, %v1391, %v1393
      %1395 = vrot.lane.b32.xlu0 %v527, 32
      %v1396 = vpop.permute.xlu0 %1395
      %1397 = vrot.lane.b32.xlu0 %v529, 32
      %v1398 = vpop.permute.xlu0 %1397
      %1399 = vrot.lane.b32.xlu0 %v532, 32
      %v1400 = vpop.permute.xlu0 %1399
      %1401 = vrot.lane.b32.xlu0 %v534, 32
      %v1402 = vpop.permute.xlu0 %1401
      %1403 = vrot.lane.b32.xlu0 %v537, 32
      %v1404 = vpop.permute.xlu0 %1403
      %1405 = vrot.lane.b32.xlu0 %v539, 32
      %v1406 = vpop.permute.xlu0 %1405
      %1407 = vrot.lane.b32.xlu0 %v542, 32
      %v1408 = vpop.permute.xlu0 %1407
      %1409 = vrot.lane.b32.xlu0 %v544, 32
      %v1410 = vpop.permute.xlu0 %1409
      %1411 = vrot.lane.b32.xlu0 %v547, 32
      %v1412 = vpop.permute.xlu0 %1411
      %1413 = vrot.lane.b32.xlu0 %v549, 32
      %v1414 = vpop.permute.xlu0 %1413
      %1415 = vrot.lane.b32.xlu0 %v552, 32
      %v1416 = vpop.permute.xlu0 %1415
      %1417 = vrot.lane.b32.xlu0 %v554, 32
      %v1418 = vpop.permute.xlu0 %1417
      %1419 = vrot.lane.b32.xlu0 %v557, 32
      %v1420 = vpop.permute.xlu0 %1419
      %1421 = vrot.lane.b32.xlu0 %v559, 32
      %v1422 = vpop.permute.xlu0 %1421
      %1423 = vrot.lane.b32.xlu0 %v562, 32
      %v1424 = vpop.permute.xlu0 %1423
      %1425 = vrot.lane.b32.xlu0 %v564, 32
      %v1426 = vpop.permute.xlu0 %1425
      %1427 = vrot.lane.b32.xlu0 %v567, 32
      %v1428 = vpop.permute.xlu0 %1427
      %1429 = vrot.lane.b32.xlu0 %v569, 32
      %v1430 = vpop.permute.xlu0 %1429
      %1431 = vrot.lane.b32.xlu0 %v572, 32
      %v1432 = vpop.permute.xlu0 %1431
      %1433 = vrot.lane.b32.xlu0 %v574, 32
      %v1434 = vpop.permute.xlu0 %1433
      %1435 = vrot.lane.b32.xlu0 %v577, 32
      %v1436 = vpop.permute.xlu0 %1435
      %1437 = vrot.lane.b32.xlu0 %v579, 32
      %v1438 = vpop.permute.xlu0 %1437
      %1439 = vrot.lane.b32.xlu0 %v582, 32
      %v1440 = vpop.permute.xlu0 %1439
      %1441 = vrot.lane.b32.xlu0 %v584, 32
      %v1442 = vpop.permute.xlu0 %1441
      %1443 = vrot.lane.b32.xlu0 %v587, 32
      %v1444 = vpop.permute.xlu0 %1443
      %1445 = vrot.lane.b32.xlu0 %v589, 32
      %v1446 = vpop.permute.xlu0 %1445
      %1447 = vrot.lane.b32.xlu0 %v592, 32
      %v1448 = vpop.permute.xlu0 %1447
      %1449 = vrot.lane.b32.xlu0 %v594, 32
      %v1450 = vpop.permute.xlu0 %1449
      %1451 = vrot.lane.b32.xlu0 %v992, 32
      %v1452 = vpop.permute.xlu0 %1451
      %1453 = vrot.lane.b32.xlu0 %v994, 32
      %v1454 = vpop.permute.xlu0 %1453
      %1455 = vrot.lane.b32.xlu0 %v1392, 32
      %v1456 = vpop.permute.xlu0 %1455
      %1457 = vrot.lane.b32.xlu0 %v1394, 32
      %v1458 = vpop.permute.xlu0 %1457
      %vm1491 = vcmask 294144
      %1492 = vst.msk [vmem:[#allocation2] sm:$0xff] %vm1491, %v1396
      %1493 = vst.msk [vmem:[#allocation2 + $0x8] sm:$0xff] %vm1491, %v1398
      %1494 = vst.msk [vmem:[#allocation2 + $0x10] sm:$0xff] %vm1491, %v1400
      %1495 = vst.msk [vmem:[#allocation2 + $0x18] sm:$0xff] %vm1491, %v1402
      %1496 = vst.msk [vmem:[#allocation2 + $0x20] sm:$0xff] %vm1491, %v1404
      %1497 = vst.msk [vmem:[#allocation2 + $0x28] sm:$0xff] %vm1491, %v1406
      %1498 = vst.msk [vmem:[#allocation2 + $0x30] sm:$0xff] %vm1491, %v1408
      %1499 = vst.msk [vmem:[#allocation2 + $0x38] sm:$0xff] %vm1491, %v1410
      %1500 = vst.msk [vmem:[#allocation2 + $0x40] sm:$0xff] %vm1491, %v1412
      %1501 = vst.msk [vmem:[#allocation2 + $0x48] sm:$0xff] %vm1491, %v1414
      %1502 = vst.msk [vmem:[#allocation2 + $0x50] sm:$0xff] %vm1491, %v1416
      %1503 = vst.msk [vmem:[#allocation2 + $0x58] sm:$0xff] %vm1491, %v1418
      %1504 = vst.msk [vmem:[#allocation2 + $0x60] sm:$0xff] %vm1491, %v1420
      %1505 = vst.msk [vmem:[#allocation2 + $0x68] sm:$0xff] %vm1491, %v1422
      %1506 = vst.msk [vmem:[#allocation2 + $0x70] sm:$0xff] %vm1491, %v1424
      %1507 = vst.msk [vmem:[#allocation2 + $0x78] sm:$0xff] %vm1491, %v1426
      %1508 = vst.msk [vmem:[#allocation2 + $0x80] sm:$0xff] %vm1491, %v1428
      %1509 = vst.msk [vmem:[#allocation2 + $0x88] sm:$0xff] %vm1491, %v1430
      %1510 = vst.msk [vmem:[#allocation2 + $0x90] sm:$0xff] %vm1491, %v1432
      %1511 = vst.msk [vmem:[#allocation2 + $0x98] sm:$0xff] %vm1491, %v1434
      %1512 = vst.msk [vmem:[#allocation2 + $0xa0] sm:$0xff] %vm1491, %v1436
      %1513 = vst.msk [vmem:[#allocation2 + $0xa8] sm:$0xff] %vm1491, %v1438
      %1514 = vst.msk [vmem:[#allocation2 + $0xb0] sm:$0xff] %vm1491, %v1440
      %1515 = vst.msk [vmem:[#allocation2 + $0xb8] sm:$0xff] %vm1491, %v1442
      %1516 = vst.msk [vmem:[#allocation2 + $0xc0] sm:$0xff] %vm1491, %v1444
      %1517 = vst.msk [vmem:[#allocation2 + $0xc8] sm:$0xff] %vm1491, %v1446
      %1518 = vst.msk [vmem:[#allocation2 + $0xd0] sm:$0xff] %vm1491, %v1448
      %1519 = vst.msk [vmem:[#allocation2 + $0xd8] sm:$0xff] %vm1491, %v1450
      %1520 = vst.msk [vmem:[#allocation2 + $0xe0] sm:$0xff] %vm1491, %v1452
      %1521 = vst.msk [vmem:[#allocation2 + $0xe8] sm:$0xff] %vm1491, %v1454
      %1522 = vst.msk [vmem:[#allocation2 + $0xf0] sm:$0xff] %vm1491, %v1456
      %1523 = vst.msk [vmem:[#allocation2 + $0xf8] sm:$0xff] %vm1491, %v1458
      %v1524 = vld [vmem:[#allocation2] sm:$0xff]
      %v1525 = vld [vmem:[#allocation2 + $0x8] sm:$0xff]
      %v1526 = vld [vmem:[#allocation2 + $0x10] sm:$0xff]
      %v1527 = vld [vmem:[#allocation2 + $0x18] sm:$0xff]
      %v1528 = vld [vmem:[#allocation2 + $0x20] sm:$0xff]
      %v1529 = vld [vmem:[#allocation2 + $0x28] sm:$0xff]
      %v1530 = vld [vmem:[#allocation2 + $0x30] sm:$0xff]
      %v1531 = vld [vmem:[#allocation2 + $0x38] sm:$0xff]
      %v1532 = vld [vmem:[#allocation2 + $0x40] sm:$0xff]
      %v1533 = vld [vmem:[#allocation2 + $0x48] sm:$0xff]
      %v1534 = vld [vmem:[#allocation2 + $0x50] sm:$0xff]
      %v1535 = vld [vmem:[#allocation2 + $0x58] sm:$0xff]
      %v1536 = vld [vmem:[#allocation2 + $0x60] sm:$0xff]
      %v1537 = vld [vmem:[#allocation2 + $0x68] sm:$0xff]
      %v1538 = vld [vmem:[#allocation2 + $0x70] sm:$0xff]
      %v1539 = vld [vmem:[#allocation2 + $0x78] sm:$0xff]
      %v1540 = vld [vmem:[#allocation2 + $0x80] sm:$0xff]
      %v1541 = vld [vmem:[#allocation2 + $0x88] sm:$0xff]
      %v1542 = vld [vmem:[#allocation2 + $0x90] sm:$0xff]
      %v1543 = vld [vmem:[#allocation2 + $0x98] sm:$0xff]
      %v1544 = vld [vmem:[#allocation2 + $0xa0] sm:$0xff]
      %v1545 = vld [vmem:[#allocation2 + $0xa8] sm:$0xff]
      %v1546 = vld [vmem:[#allocation2 + $0xb0] sm:$0xff]
      %v1547 = vld [vmem:[#allocation2 + $0xb8] sm:$0xff]
      %v1548 = vld [vmem:[#allocation2 + $0xc0] sm:$0xff]
      %v1549 = vld [vmem:[#allocation2 + $0xc8] sm:$0xff]
      %v1550 = vld [vmem:[#allocation2 + $0xd0] sm:$0xff]
      %v1551 = vld [vmem:[#allocation2 + $0xd8] sm:$0xff]
      %v1552 = vld [vmem:[#allocation2 + $0xe0] sm:$0xff]
      %v1553 = vld [vmem:[#allocation2 + $0xe8] sm:$0xff]
      %v1554 = vld [vmem:[#allocation2 + $0xf0] sm:$0xff]
      %v1555 = vld [vmem:[#allocation2 + $0xf8] sm:$0xff]
      %v1556 = vld [vmem:[%s1] sm:$0xff]
      %v1557 = vld [vmem:[%s1 + $0x8] sm:$0xff]
      %v1558 = vld [vmem:[%s1 + $0x10] sm:$0xff]
      %v1559 = vld [vmem:[%s1 + $0x18] sm:$0xff]
      %v1560 = vld [vmem:[%s1 + $0x20] sm:$0xf]
      %v1561 = vld [vmem:[%s2] sm:$0x1]
      %v1563 = vlaneseq
      %v1564 = vshrl.u32 %v1563, 7
      %v1565 = vsub.s32 0, %v1564
      %v1566 = vrot.slane %v1561, %v1565
      %vm1568 = vcmask 293888
      %v1570 = vsel %vm1568, %v1524, 0
      %v1573 = vsel %vm1568, %v1525, 0
      %v1576 = vsel %vm1568, %v1526, 0
      %v1579 = vsel %vm1568, %v1527, 0
      %v1582 = vsel %vm1568, %v1528, 0
      %v1585 = vsel %vm1568, %v1529, 0
      %v1588 = vsel %vm1568, %v1530, 0
      %v1591 = vsel %vm1568, %v1531, 0
      %v1594 = vsel %vm1568, %v1532, 0
      %v1597 = vsel %vm1568, %v1533, 0
      %v1600 = vsel %vm1568, %v1534, 0
      %v1603 = vsel %vm1568, %v1535, 0
      %v1606 = vsel %vm1568, %v1536, 0
      %v1609 = vsel %vm1568, %v1537, 0
      %v1612 = vsel %vm1568, %v1538, 0
      %v1615 = vsel %vm1568, %v1539, 0
      %v1618 = vsel %vm1568, %v1540, 0
      %v1621 = vsel %vm1568, %v1541, 0
      %v1624 = vsel %vm1568, %v1542, 0
      %v1627 = vsel %vm1568, %v1543, 0
      %v1630 = vsel %vm1568, %v1544, 0
      %v1633 = vsel %vm1568, %v1545, 0
      %v1636 = vsel %vm1568, %v1546, 0
      %v1639 = vsel %vm1568, %v1547, 0
      %v1642 = vsel %vm1568, %v1548, 0
      %v1645 = vsel %vm1568, %v1549, 0
      %v1648 = vsel %vm1568, %v1550, 0
      %v1651 = vsel %vm1568, %v1551, 0
      %v1654 = vsel %vm1568, %v1552, 0
      %v1657 = vsel %vm1568, %v1553, 0
      %v1660 = vsel %vm1568, %v1554, 0
      %v1663 = vsel %vm1568, %v1555, 0
      %vm1665 = vcmask 1043456
      %v1667 = vsel %vm1665, %v1560, 0
      %1669 = vmatprep.subr.mxu0 0.0
      %1670 = vmatpush1.msra.mxu0 0.0
      %1671 = vmatprep.subr.mxu0 0.0
      %1672 = vmatpush1.msra.mxu0 0.0
      %1673 = vmatprep.subr.mxu0 0.0
      %1674 = vmatpush1.msra.mxu0 0.0
      %1675 = vmatprep.subr.mxu0 0.0
      %1676 = vmatpush1.msra.mxu0 0.0
      %1677 = vmatprep.subr.mxu0 0.0
      %1678 = vmatpush1.msra.mxu0 0.0
      %1679 = vmatprep.subr.mxu0 0.0
      %1680 = vmatpush1.msra.mxu0 0.0
      %1681 = vmatprep.subr.mxu0 0.0
      %1682 = vmatpush1.msra.mxu0 0.0
      %1683 = vmatprep.subr.mxu0 0.0
      %1684 = vmatpush1.msra.mxu0 0.0
      %1685 = vmatprep.subr.mxu0 0.0
      %1686 = vmatpush1.msra.mxu0 0.0
      %1687 = vmatprep.subr.mxu0 0.0
      %1688 = vmatpush1.msra.mxu0 0.0
      %1689 = vmatprep.subr.mxu0 0.0
      %1690 = vmatpush1.msra.mxu0 0.0
      %1691 = vmatprep.subr.mxu0 0.0
      %1692 = vmatpush1.msra.mxu0 %v1667
      %1693 = vmatprep.subr.mxu0 0.0
      %1694 = vmatpush1.msra.mxu0 %v1559
      %1695 = vmatprep.subr.mxu0 0.0
      %1696 = vmatpush1.msra.mxu0 %v1558
      %1697 = vmatprep.subr.mxu0 0.0
      %1698 = vmatpush1.msra.mxu0 %v1557
      %1699 = vmatprep.subr.mxu0 0.0
      %1700 = vmatpush1.msra.mxu0 %v1556
      %1701 = vmatprep.subr.mxu0 0.0
      %1702 = vmatpush2.msra.mxu0 0.0
      %1703 = vmatprep.subr.mxu0 0.0
      %1704 = vmatpush2.msra.mxu0 0.0
      %1705 = vmatprep.subr.mxu0 0.0
      %1706 = vmatpush2.msra.mxu0 0.0
      %1707 = vmatprep.subr.mxu0 0.0
      %1708 = vmatpush2.msra.mxu0 0.0
      %1709 = vmatprep.subr.mxu0 0.0
      %1710 = vmatpush2.msra.mxu0 0.0
      %1711 = vmatprep.subr.mxu0 0.0
      %1712 = vmatpush2.msra.mxu0 0.0
      %1713 = vmatprep.subr.mxu0 0.0
      %1714 = vmatpush2.msra.mxu0 0.0
      %1715 = vmatprep.subr.mxu0 0.0
      %1716 = vmatpush2.msra.mxu0 0.0
      %1717 = vmatprep.subr.mxu0 0.0
      %1718 = vmatpush2.msra.mxu0 0.0
      %1719 = vmatprep.subr.mxu0 0.0
      %1720 = vmatpush2.msra.mxu0 0.0
      %1721 = vmatprep.subr.mxu0 0.0
      %1722 = vmatpush2.msra.mxu0 0.0
      %1723 = vmatprep.subr.mxu0 0.0
      %1724 = vmatpush2.msra.mxu0 0.0
      %1725 = vmatprep.subr.mxu0 0.0
      %1726 = vmatpush2.msra.mxu0 0.0
      %1727 = vmatprep.subr.mxu0 0.0
      %1728 = vmatpush2.msra.mxu0 0.0
      %1729 = vmatprep.subr.mxu0 0.0
      %1730 = vmatpush2.msra.mxu0 0.0
      %1731 = vmatprep.subr.mxu0 0.0
      %1732 = vmatpush2.msra.mxu0 0.0
      %1733 = vmatprep.mubr.f32.mxu0 0.0
      %1734 = vmatmul.mubr.f32.gmra.mxu0 %v1570
      %v1735 = vpop.f32.mrf.mxu0
      %v1736 = vadd.f32 %v1566, %v1735
      %v1737 = vpop.f32.mrf.mxu0
      %1738 = vmatprep.mubr.f32.mxu0 0.0
      %1739 = vmatmul.mubr.f32.gmra.mxu0 %v1573
      %v1740 = vpop.f32.mrf.mxu0
      %v1741 = vadd.f32 %v1566, %v1740
      %v1742 = vpop.f32.mrf.mxu0
      %1743 = vmatprep.mubr.f32.mxu0 0.0
      %1744 = vmatmul.mubr.f32.gmra.mxu0 %v1576
      %v1745 = vpop.f32.mrf.mxu0
      %v1746 = vadd.f32 %v1566, %v1745
      %v1747 = vpop.f32.mrf.mxu0
      %1748 = vmatprep.mubr.f32.mxu0 0.0
      %1749 = vmatmul.mubr.f32.gmra.mxu0 %v1579
      %v1750 = vpop.f32.mrf.mxu0
      %v1751 = vadd.f32 %v1566, %v1750
      %v1752 = vpop.f32.mrf.mxu0
      %1753 = vmatprep.mubr.f32.mxu0 0.0
      %1754 = vmatmul.mubr.f32.gmra.mxu0 %v1582
      %v1755 = vpop.f32.mrf.mxu0
      %v1756 = vadd.f32 %v1566, %v1755
      %v1757 = vpop.f32.mrf.mxu0
      %1758 = vmatprep.mubr.f32.mxu0 0.0
      %1759 = vmatmul.mubr.f32.gmra.mxu0 %v1585
      %v1760 = vpop.f32.mrf.mxu0
      %v1761 = vadd.f32 %v1566, %v1760
      %v1762 = vpop.f32.mrf.mxu0
      %1763 = vmatprep.mubr.f32.mxu0 0.0
      %1764 = vmatmul.mubr.f32.gmra.mxu0 %v1588
      %v1765 = vpop.f32.mrf.mxu0
      %v1766 = vadd.f32 %v1566, %v1765
      %v1767 = vpop.f32.mrf.mxu0
      %1768 = vmatprep.mubr.f32.mxu0 0.0
      %1769 = vmatmul.mubr.f32.gmra.mxu0 %v1591
      %v1770 = vpop.f32.mrf.mxu0
      %v1771 = vadd.f32 %v1566, %v1770
      %v1772 = vpop.f32.mrf.mxu0
      %1773 = vmatprep.mubr.f32.mxu0 0.0
      %1774 = vmatmul.mubr.f32.gmra.mxu0 %v1594
      %v1775 = vpop.f32.mrf.mxu0
      %v1776 = vadd.f32 %v1566, %v1775
      %v1777 = vpop.f32.mrf.mxu0
      %1778 = vmatprep.mubr.f32.mxu0 0.0
      %1779 = vmatmul.mubr.f32.gmra.mxu0 %v1597
      %v1780 = vpop.f32.mrf.mxu0
      %v1781 = vadd.f32 %v1566, %v1780
      %v1782 = vpop.f32.mrf.mxu0
      %1783 = vmatprep.mubr.f32.mxu0 0.0
      %1784 = vmatmul.mubr.f32.gmra.mxu0 %v1600
      %v1785 = vpop.f32.mrf.mxu0
      %v1786 = vadd.f32 %v1566, %v1785
      %v1787 = vpop.f32.mrf.mxu0
      %1788 = vmatprep.mubr.f32.mxu0 0.0
      %1789 = vmatmul.mubr.f32.gmra.mxu0 %v1603
      %v1790 = vpop.f32.mrf.mxu0
      %v1791 = vadd.f32 %v1566, %v1790
      %v1792 = vpop.f32.mrf.mxu0
      %1793 = vmatprep.mubr.f32.mxu0 0.0
      %1794 = vmatmul.mubr.f32.gmra.mxu0 %v1606
      %v1795 = vpop.f32.mrf.mxu0
      %v1796 = vadd.f32 %v1566, %v1795
      %v1797 = vpop.f32.mrf.mxu0
      %1798 = vmatprep.mubr.f32.mxu0 0.0
      %1799 = vmatmul.mubr.f32.gmra.mxu0 %v1609
      %v1800 = vpop.f32.mrf.mxu0
      %v1801 = vadd.f32 %v1566, %v1800
      %v1802 = vpop.f32.mrf.mxu0
      %1803 = vmatprep.mubr.f32.mxu0 0.0
      %1804 = vmatmul.mubr.f32.gmra.mxu0 %v1612
      %v1805 = vpop.f32.mrf.mxu0
      %v1806 = vadd.f32 %v1566, %v1805
      %v1807 = vpop.f32.mrf.mxu0
      %1808 = vmatprep.mubr.f32.mxu0 0.0
      %1809 = vmatmul.mubr.f32.gmra.mxu0 %v1615
      %v1810 = vpop.f32.mrf.mxu0
      %v1811 = vadd.f32 %v1566, %v1810
      %v1812 = vpop.f32.mrf.mxu0
      %1813 = vmatprep.mubr.f32.mxu0 0.0
      %1814 = vmatmul.mubr.f32.gmra.mxu0 %v1618
      %v1815 = vpop.f32.mrf.mxu0
      %v1816 = vadd.f32 %v1566, %v1815
      %v1817 = vpop.f32.mrf.mxu0
      %1818 = vmatprep.mubr.f32.mxu0 0.0
      %1819 = vmatmul.mubr.f32.gmra.mxu0 %v1621
      %v1820 = vpop.f32.mrf.mxu0
      %v1821 = vadd.f32 %v1566, %v1820
      %v1822 = vpop.f32.mrf.mxu0
      %1823 = vmatprep.mubr.f32.mxu0 0.0
      %1824 = vmatmul.mubr.f32.gmra.mxu0 %v1624
      %v1825 = vpop.f32.mrf.mxu0
      %v1826 = vadd.f32 %v1566, %v1825
      %v1827 = vpop.f32.mrf.mxu0
      %1828 = vmatprep.mubr.f32.mxu0 0.0
      %1829 = vmatmul.mubr.f32.gmra.mxu0 %v1627
      %v1830 = vpop.f32.mrf.mxu0
      %v1831 = vadd.f32 %v1566, %v1830
      %v1832 = vpop.f32.mrf.mxu0
      %1833 = vmatprep.mubr.f32.mxu0 0.0
      %1834 = vmatmul.mubr.f32.gmra.mxu0 %v1630
      %v1835 = vpop.f32.mrf.mxu0
      %v1836 = vadd.f32 %v1566, %v1835
      %v1837 = vpop.f32.mrf.mxu0
      %1838 = vmatprep.mubr.f32.mxu0 0.0
      %1839 = vmatmul.mubr.f32.gmra.mxu0 %v1633
      %v1840 = vpop.f32.mrf.mxu0
      %v1841 = vadd.f32 %v1566, %v1840
      %v1842 = vpop.f32.mrf.mxu0
      %1843 = vmatprep.mubr.f32.mxu0 0.0
      %1844 = vmatmul.mubr.f32.gmra.mxu0 %v1636
      %v1845 = vpop.f32.mrf.mxu0
      %v1846 = vadd.f32 %v1566, %v1845
      %v1847 = vpop.f32.mrf.mxu0
      %1848 = vmatprep.mubr.f32.mxu0 0.0
      %1849 = vmatmul.mubr.f32.gmra.mxu0 %v1639
      %v1850 = vpop.f32.mrf.mxu0
      %v1851 = vadd.f32 %v1566, %v1850
      %v1852 = vpop.f32.mrf.mxu0
      %1853 = vmatprep.mubr.f32.mxu0 0.0
      %1854 = vmatmul.mubr.f32.gmra.mxu0 %v1642
      %v1855 = vpop.f32.mrf.mxu0
      %v1856 = vadd.f32 %v1566, %v1855
      %v1857 = vpop.f32.mrf.mxu0
      %1858 = vmatprep.mubr.f32.mxu0 0.0
      %1859 = vmatmul.mubr.f32.gmra.mxu0 %v1645
      %v1860 = vpop.f32.mrf.mxu0
      %v1861 = vadd.f32 %v1566, %v1860
      %v1862 = vpop.f32.mrf.mxu0
      %1863 = vmatprep.mubr.f32.mxu0 0.0
      %1864 = vmatmul.mubr.f32.gmra.mxu0 %v1648
      %v1865 = vpop.f32.mrf.mxu0
      %v1866 = vadd.f32 %v1566, %v1865
      %v1867 = vpop.f32.mrf.mxu0
      %1868 = vmatprep.mubr.f32.mxu0 0.0
      %1869 = vmatmul.mubr.f32.gmra.mxu0 %v1651
      %v1870 = vpop.f32.mrf.mxu0
      %v1871 = vadd.f32 %v1566, %v1870
      %v1872 = vpop.f32.mrf.mxu0
      %1873 = vmatprep.mubr.f32.mxu0 0.0
      %1874 = vmatmul.mubr.f32.gmra.mxu0 %v1654
      %v1875 = vpop.f32.mrf.mxu0
      %v1876 = vadd.f32 %v1566, %v1875
      %v1877 = vpop.f32.mrf.mxu0
      %1878 = vmatprep.mubr.f32.mxu0 0.0
      %1879 = vmatmul.mubr.f32.gmra.mxu0 %v1657
      %v1880 = vpop.f32.mrf.mxu0
      %v1881 = vadd.f32 %v1566, %v1880
      %v1882 = vpop.f32.mrf.mxu0
      %1883 = vmatprep.mubr.f32.mxu0 0.0
      %1884 = vmatmul.mubr.f32.gmra.mxu0 %v1660
      %v1885 = vpop.f32.mrf.mxu0
      %v1886 = vadd.f32 %v1566, %v1885
      %v1887 = vpop.f32.mrf.mxu0
      %1888 = vmatprep.mubr.f32.mxu0 0.0
      %1889 = vmatmul.mubr.f32.gmra.mxu0 %v1663
      %v1890 = vpop.f32.mrf.mxu0
      %v1891 = vadd.f32 %v1566, %v1890
      %v1892 = vpop.f32.mrf.mxu0
      %1893 = vdwg.mxu0
      %v1894 = vadd.f32 %v1736, %v1741
      %v1895 = vadd.f32 %v1894, %v1746
      %v1896 = vadd.f32 %v1895, %v1751
      %v1897 = vadd.f32 %v1896, %v1756
      %v1898 = vadd.f32 %v1897, %v1761
      %v1899 = vadd.f32 %v1898, %v1766
      %v1900 = vadd.f32 %v1899, %v1771
      %v1901 = vadd.f32 %v1900, %v1776
      %v1902 = vadd.f32 %v1901, %v1781
      %v1903 = vadd.f32 %v1902, %v1786
      %v1904 = vadd.f32 %v1903, %v1791
      %v1905 = vadd.f32 %v1904, %v1796
      %v1906 = vadd.f32 %v1905, %v1801
      %v1907 = vadd.f32 %v1906, %v1806
      %v1908 = vadd.f32 %v1907, %v1811
      %v1909 = vadd.f32 %v1908, %v1816
      %v1910 = vadd.f32 %v1909, %v1821
      %v1911 = vadd.f32 %v1910, %v1826
      %v1912 = vadd.f32 %v1911, %v1831
      %v1913 = vadd.f32 %v1912, %v1836
      %v1914 = vadd.f32 %v1913, %v1841
      %v1915 = vadd.f32 %v1914, %v1846
      %v1916 = vadd.f32 %v1915, %v1851
      %v1917 = vadd.f32 %v1916, %v1856
      %v1918 = vadd.f32 %v1917, %v1861
      %v1919 = vadd.f32 %v1918, %v1866
      %v1920 = vadd.f32 %v1919, %v1871
      %v1921 = vadd.f32 %v1920, %v1876
      %v1922 = vadd.f32 %v1921, %v1881
      %v1923 = vadd.f32 %v1922, %v1886
      %v1924 = vadd.f32 %v1923, %v1891
      %v1925 = vrot.slane %v1924, 4
      %v1926 = vadd.f32 %v1924, %v1925
      %v1927 = vrot.slane %v1926, 2
      %v1928 = vadd.f32 %v1926, %v1927
      %v1929 = vrot.slane %v1928, 1
      %v1930 = vadd.f32 %v1928, %v1929
      %1931 = vst [vmem:[%s168] sm:$0x1] %v1930
      %v1932 = vmul.f32 %v1736, %v1736
      %v1933 = vmul.f32 %v1741, %v1741
      %v1934 = vmul.f32 %v1746, %v1746
      %v1935 = vmul.f32 %v1751, %v1751
      %v1936 = vmul.f32 %v1756, %v1756
      %v1937 = vmul.f32 %v1761, %v1761
      %v1938 = vmul.f32 %v1766, %v1766
      %v1939 = vmul.f32 %v1771, %v1771
      %v1940 = vmul.f32 %v1776, %v1776
      %v1941 = vmul.f32 %v1781, %v1781
      %v1942 = vmul.f32 %v1786, %v1786
      %v1943 = vmul.f32 %v1791, %v1791
      %v1944 = vmul.f32 %v1796, %v1796
      %v1945 = vmul.f32 %v1801, %v1801
      %v1946 = vmul.f32 %v1806, %v1806
      %v1947 = vmul.f32 %v1811, %v1811
      %v1948 = vmul.f32 %v1816, %v1816
      %v1949 = vmul.f32 %v1821, %v1821
      %v1950 = vmul.f32 %v1826, %v1826
      %v1951 = vmul.f32 %v1831, %v1831
      %v1952 = vmul.f32 %v1836, %v1836
      %v1953 = vmul.f32 %v1841, %v1841
      %v1954 = vmul.f32 %v1846, %v1846
      %v1955 = vmul.f32 %v1851, %v1851
      %v1956 = vmul.f32 %v1856, %v1856
      %v1957 = vmul.f32 %v1861, %v1861
      %v1958 = vmul.f32 %v1866, %v1866
      %v1959 = vmul.f32 %v1871, %v1871
      %v1960 = vmul.f32 %v1876, %v1876
      %v1961 = vmul.f32 %v1881, %v1881
      %v1962 = vmul.f32 %v1886, %v1886
      %v1963 = vmul.f32 %v1891, %v1891
      %v1964 = vadd.f32 %v1932, %v1933
      %v1965 = vadd.f32 %v1964, %v1934
      %v1966 = vadd.f32 %v1965, %v1935
      %v1967 = vadd.f32 %v1966, %v1936
      %v1968 = vadd.f32 %v1967, %v1937
      %v1969 = vadd.f32 %v1968, %v1938
      %v1970 = vadd.f32 %v1969, %v1939
      %v1971 = vadd.f32 %v1970, %v1940
      %v1972 = vadd.f32 %v1971, %v1941
      %v1973 = vadd.f32 %v1972, %v1942
      %v1974 = vadd.f32 %v1973, %v1943
      %v1975 = vadd.f32 %v1974, %v1944
      %v1976 = vadd.f32 %v1975, %v1945
      %v1977 = vadd.f32 %v1976, %v1946
      %v1978 = vadd.f32 %v1977, %v1947
      %v1979 = vadd.f32 %v1978, %v1948
      %v1980 = vadd.f32 %v1979, %v1949
      %v1981 = vadd.f32 %v1980, %v1950
      %v1982 = vadd.f32 %v1981, %v1951
      %v1983 = vadd.f32 %v1982, %v1952
      %v1984 = vadd.f32 %v1983, %v1953
      %v1985 = vadd.f32 %v1984, %v1954
      %v1986 = vadd.f32 %v1985, %v1955
      %v1987 = vadd.f32 %v1986, %v1956
      %v1988 = vadd.f32 %v1987, %v1957
      %v1989 = vadd.f32 %v1988, %v1958
      %v1990 = vadd.f32 %v1989, %v1959
      %v1991 = vadd.f32 %v1990, %v1960
      %v1992 = vadd.f32 %v1991, %v1961
      %v1993 = vadd.f32 %v1992, %v1962
      %v1994 = vadd.f32 %v1993, %v1963
      %v1995 = vrot.slane %v1994, 4
      %v1996 = vadd.f32 %v1994, %v1995
      %v1997 = vrot.slane %v1996, 2
      %v1998 = vadd.f32 %v1996, %v1997
      %v1999 = vrot.slane %v1998, 1
      %v2000 = vadd.f32 %v1998, %v1999
      %2001 = vst [vmem:[%s168 + $0x1] sm:$0x1] %v2000
      %p2002 = scmp.lt.s32.totalorder %s14, 1
      %s2003 = scalar_select %p2002, %s14, 1
      %s2004 = smul.addr %s2003, 2
      %s2005 = scalar_lea.vmem %s3, %s2004
      // Predicated region
      $region33: #{unit_forward.2} parent=31 // pred_check
        %p2006 = pneg %p100
      $region34: #{unit_forward.2} parent=31 // pred_check_branch
        %2008 = sbr.rel (%p2006) target = $region36
      $region35: #{unit_forward.2} parent=31 // pred_region
        _
      $region36: #{unit_forward.2} parent=31 // pred_fallthru
        _
    $region32: #{unit_forward.2} parent=5 // pred_fallthru
      _
    %p2009 = scmp.le.s32.totalorder 2, %s9
    // Predicated region
    $region37: #{unit_forward.2} parent=5 // pred_check
      %p2010 = pneg %p2009
    $region38: #{unit_forward.2} parent=5 // pred_check_branch
      %2012 = sbr.rel (%p2010) target = $region40
    $region39: #{unit_forward.2} parent=5 // pred_region
      %s2013 = ssub.s32 %s9, 2
      // Predicated region
      $region41: #{unit_forward.2} parent=39 // pred_check
        %p2014 = pneg %p106
      $region42: #{unit_forward.2} parent=39 // pred_check_branch
        %2016 = sbr.rel (%p2014) target = $region44
      $region43: #{unit_forward.2} parent=39 // pred_region
        %p2017 = scmp.lt.s32.totalorder %s15, 1
        %s2018 = scalar_select %p2017, %s15, 1
        %s2019 = smul.addr %s2018, 2
        %s2020 = scalar_lea.vmem %s3, %s2019
      $region44: #{unit_forward.2} parent=39 // pred_fallthru
        _
    $region40: #{unit_forward.2} parent=5 // pred_fallthru
      _
  $region6: #{unit_forward.2} parent=0 // loop_footer
    %s13 = sadd.s32 1, %s9
  $region7: #{unit_forward.2} parent=0 // loop_footer_branch
    %8 = sbr.rel target = $region3
  $region8: #{unit_forward.2} parent=0 // loop_exit
    _

</llo_original>
